<compile_context>
chip_gen: v7x
topology: tpu7x:2x2x1
jax: 0.10.0
libtpu: 0.0.40
codegen_flags: <defaults>
</compile_context>

<pallas_src>
import functools
import math

import jax
import jax.numpy as jnp
from jax import lax
from jax.experimental import pallas as pl
from jax.experimental.pallas import tpu as pltpu


# bf16 inputs to every MXU matmul (f32 accumulation via preferred_element_type).
# Elementwise math stays f32 (v5e VPU/EUP have no bf16).  Weights are stored
# pre-cast at init so no per-tile cast of grid-invariant data happens in-kernel.
MATMUL_DTYPE = jnp.bfloat16

_SQRT_2_OVER_PI = 0.7978845608028654
_GROUP = 8  # sublane-tile granularity of scan loads / stores


# ----------------------------------------------------------------------------
# small in-kernel math helpers (only ops with guaranteed Mosaic lowerings)
# ----------------------------------------------------------------------------
def _silu(x):
    # x * sigmoid(x) == x / (1 + exp(-x)); single exp -> EUP.
    return x / (1.0 + jnp.exp(-x))


def _softplus(y):
    # F.softplus(threshold=20), via log/exp only.
    sp = jnp.maximum(y, 0.0) + jnp.log(1.0 + jnp.exp(-jnp.abs(y)))
    return jnp.where(y > 20.0, y, sp)


def _gelu_tanh(x):
    # tanh-approximate GELU: tanh goes to the otherwise-idle EUP slot instead
    # of ~10 VALU ops of an erf polynomial.
    # TODO(synk): exact-erf GELU if bit-matching PyTorch nn.GELU() is required.
    return 0.5 * x * (1.0 + jnp.tanh(_SQRT_2_OVER_PI * (x + 0.044715 * x * x * x)))


def _layernorm(x, g, b):
    mu = jnp.mean(x, axis=-1, keepdims=True)
    xc = x - mu
    var = jnp.mean(xc * xc, axis=-1, keepdims=True)
    return xc * lax.rsqrt(var + 1e-5) * g + b


def _mm(a, w):
    return jnp.dot(a.astype(MATMUL_DTYPE), w.astype(MATMUL_DTYPE),
                   preferred_element_type=jnp.float32)


def _round_up(x, mult):
    return ((x + mult - 1) // mult) * mult


def _pick_tile_m(m, target=512):
    """Largest multiple-of-8 divisor of m that is <= min(target, m//2), so the
    M-tiled kernels get >=2 grid steps (v7x megacore sharding + DMA/compute
    pipelining) whenever m allows it."""
    cap = min(target, m // 2)
    for t in range(cap, 7, -1):
        if m % t == 0 and t % 8 == 0:
            return t
    return m  # fallback: single full-extent block (always legal)


def _pick_batch_tile(b, n_chunks, cap=4):
    """Batch elements scanned per grid step (independent recurrences get
    interleaved in-register).  Keeps >=2 grid steps when possible so both v7x
    TensorCores get work."""
    if n_chunks == 1:
        cap = min(cap, max(1, b // 2))
    for t in range(min(cap, b), 0, -1):
        if b % t == 0:
            return t
    return 1


# ----------------------------------------------------------------------------
# Kernel 1: LayerNorm1 + in_proj (dt_proj pre-folded) + SiLU/SiLU + softplus
# ----------------------------------------------------------------------------
def _ln_inproj_kernel(x_ref, g_ref, b_ref, w_ref, wb_ref,
                      xp_ref, z_ref, dt_ref, *, p):
    x = x_ref[...].astype(jnp.float32)
    xn = _layernorm(x, g_ref[...], b_ref[...])
    y = _mm(xn, w_ref[...]) + wb_ref[...]                    # (tm, 3p), f32 acc
    xp_ref[...] = _silu(y[:, :p]).astype(xp_ref.dtype)
    z_ref[...] = _silu(y[:, p:2 * p]).astype(z_ref.dtype)
    # dt_proj was folded into in_proj at init time -> softplus directly.
    dt_ref[...] = _softplus(y[:, 2 * p:])


def ln_inproj(x2d, ln_g, ln_b, in_w, in_b, p):
    m, d_model = x2d.shape
    tm = _pick_tile_m(m)
    full = lambda i: (0, 0)
    row = lambda i: (i, 0)
    return pl.pallas_call(
        functools.partial(_ln_inproj_kernel, p=p),
        out_shape=(
            jax.ShapeDtypeStruct((m, p), jnp.bfloat16),      # silu(x_proj)
            jax.ShapeDtypeStruct((m, p), jnp.bfloat16),      # silu(z)
            jax.ShapeDtypeStruct((m, p), jnp.float32),       # dt (kept f32)
        ),
        grid=(m // tm,),
        in_specs=[
            pl.BlockSpec((tm, d_model), row),
            pl.BlockSpec((1, d_model), full),
            pl.BlockSpec((1, d_model), full),
            pl.BlockSpec((d_model, 3 * p), full),
            pl.BlockSpec((1, 3 * p), full),
        ],
        out_specs=(
            pl.BlockSpec((tm, p), row),
            pl.BlockSpec((tm, p), row),
            pl.BlockSpec((tm, p), row),
        ),
        compiler_params=pltpu.CompilerParams(dimension_semantics=("parallel",)),
    )(x2d, ln_g, ln_b, in_w, in_b)


# ----------------------------------------------------------------------------
# Kernel 2: S6 selective scan + gating + fused out_proj
# ----------------------------------------------------------------------------
def _s6_scan_kernel(xp_ref, dt_ref, z_ref, at_ref, d_ref, ow_ref, ob_ref,
                    o_ref, decay_sc, y_sc):
    bt, chunk, _ = xp_ref.shape
    n_groups = chunk // _GROUP
    at = at_ref[...]                                          # (d_state, p) f32

    # Hoist exp off the serial recurrence: bulk-precompute this chunk's decay
    # terms (EUP throughput work) before the latency-bound loop.
    for bi in range(bt):
        dt_b = dt_ref[bi]                                     # (chunk, p) f32
        decay_sc[bi] = jnp.exp(at[None, :, :] * dt_b[:, None, :])

    def group_step(g, h):
        base = pl.multiple_of(g * _GROUP, _GROUP)
        xg = xp_ref[:, pl.ds(base, _GROUP), :].astype(jnp.float32)  # (bt,8,p)
        rows = []
        for j in range(_GROUP):
            dA = decay_sc[:, base + j, :, :]                  # (bt, d_state, p)
            h = h * dA + xg[:, j:j + 1, :]                    # chain: mul + add
            rows.append(jnp.sum(h, axis=1, keepdims=True))    # off-chain (XLU)
        # one aligned (bt, 8, p) store per group instead of 8 masked row stores
        y_sc[:, pl.ds(base, _GROUP), :] = jnp.concatenate(rows, axis=1)
        return h

    h0 = jnp.zeros((bt,) + at_ref.shape, jnp.float32)
    lax.fori_loop(0, n_groups, group_step, h0, unroll=True)

    # Dense epilogue: gate (y*z + x*D) + fused out_proj; y never hits HBM.
    ow = ow_ref[...]
    ob = ob_ref[...]
    dvec = d_ref[...]
    for bi in range(bt):
        x_b = xp_ref[bi].astype(jnp.float32)
        z_b = z_ref[bi].astype(jnp.float32)
        gated = y_sc[bi] * z_b + x_b * dvec                   # (chunk, p)
        o_ref[bi] = (_mm(gated, ow) + ob).astype(o_ref.dtype)


def s6_scan_out(xp3, dt3, z3, At, Dvec, out_w, out_b, chunk, bt):
    b, n_pad, p = xp3.shape
    d_state = At.shape[0]
    d_model = out_w.shape[1]
    n_chunks = n_pad // chunk
    blk = lambda bi, ci: (bi, ci, 0)
    full = lambda bi, ci: (0, 0)
    return pl.pallas_call(
        _s6_scan_kernel,
        out_shape=jax.ShapeDtypeStruct((b, n_pad, d_model), jnp.float32),
        grid=(b // bt, n_chunks),
        in_specs=[
            pl.BlockSpec((bt, chunk, p), blk),
            pl.BlockSpec((bt, chunk, p), blk),
            pl.BlockSpec((bt, chunk, p), blk),
            pl.BlockSpec((d_state, p), full),
            pl.BlockSpec((1, p), full),
            pl.BlockSpec((p, d_model), full),
            pl.BlockSpec((1, d_model), full),
        ],
        out_specs=pl.BlockSpec((bt, chunk, d_model), blk),
        scratch_shapes=[
            pltpu.VMEM((bt, chunk, d_state, p), jnp.float32),   # decay
            pltpu.VMEM((bt, chunk, p), jnp.float32),            # y
        ],
        compiler_params=pltpu.CompilerParams(
            dimension_semantics=("parallel", "parallel")),
    )(xp3, dt3, z3, At, Dvec, out_w, out_b)


# ----------------------------------------------------------------------------
# Kernel 3: residual + LayerNorm2 + FFN (Linear, GELU, Linear) + residual
# ----------------------------------------------------------------------------
def _ffn_kernel(s6_ref, res_ref, g_ref, b_ref, f1w_ref, f1b_ref,
                f2w_ref, f2b_ref, o_ref):
    x1 = s6_ref[...] + res_ref[...]                 # out_proj output + residual
    xn = _layernorm(x1, g_ref[...], b_ref[...])
    h = _gelu_tanh(_mm(xn, f1w_ref[...]) + f1b_ref[...])   # Dropout = identity
    ff = _mm(h, f2w_ref[...]) + f2b_ref[...]
    o_ref[...] = (x1 + ff).astype(o_ref.dtype)


def ffn_block(s6_2d, res2d, ln_g, ln_b, ff1_w, ff1_b, ff2_w, ff2_b):
    m, d_model = res2d.shape
    d_ff = ff1_w.shape[1]
    tm = _pick_tile_m(m)
    full = lambda i: (0, 0)
    row = lambda i: (i, 0)
    return pl.pallas_call(
        _ffn_kernel,
        out_shape=jax.ShapeDtypeStruct((m, d_model), jnp.float32),
        grid=(m // tm,),
        in_specs=[
            pl.BlockSpec((tm, d_model), row),
            pl.BlockSpec((tm, d_model), row),
            pl.BlockSpec((1, d_model), full),
            pl.BlockSpec((1, d_model), full),
            pl.BlockSpec((d_model, d_ff), full),
            pl.BlockSpec((1, d_ff), full),
            pl.BlockSpec((d_ff, d_model), full),
            pl.BlockSpec((1, d_model), full),
        ],
        out_specs=pl.BlockSpec((tm, d_model), row),
        compiler_params=pltpu.CompilerParams(dimension_semantics=("parallel",)),
    )(s6_2d, res2d, ln_g, ln_b, ff1_w, ff1_b, ff2_w, ff2_b)


# ----------------------------------------------------------------------------
# Parameter construction: PyTorch-shaped params, then pre-fused / pre-padded /
# pre-cast ONCE at init.  The returned dict contains ONLY arrays (no Python
# ints), so it can be passed straight through jax.jit.
# ----------------------------------------------------------------------------
def init_params(key, d_model=64, d_state=16, expand=2, d_ff=None):
    d_state_eff = max(8, d_state // 2)            # 8
    expand_eff = max(1.5, expand * 0.75)          # 1.5
    d_inner = int(expand_eff * d_model)           # 96 for d_model=64
    if d_ff is None:
        d_ff = int(d_model * 2)
    p = _round_up(d_inner, 128)                   # lane padding: 96 -> 128

    keys = iter(jax.random.split(key, 16))
    nk = lambda: next(keys)

    def xavier(fan_in, fan_out):
        bound = math.sqrt(6.0 / (fan_in + fan_out))
        return jax.random.uniform(nk(), (fan_in, fan_out), jnp.float32,
                                  -bound, bound)

    def dense(fan_in, fan_out):
        bound = 1.0 / math.sqrt(fan_in)
        w = jax.random.uniform(nk(), (fan_in, fan_out), jnp.float32, -bound, bound)
        b = jax.random.uniform(nk(), (fan_out,), jnp.float32, -bound, bound)
        return w, b

    def lin_bias(fan_in, fan_out):
        bound = 1.0 / math.sqrt(fan_in)
        return jax.random.uniform(nk(), (fan_out,), jnp.float32, -bound, bound)

    # --- raw (PyTorch __init__-shaped) parameters ---
    in_w = xavier(d_model, 3 * d_inner)
    in_b = lin_bias(d_model, 3 * d_inner)
    dt_w, dt_b = dense(d_inner, d_inner)
    A_log = jax.random.normal(nk(), (d_inner, d_state_eff), jnp.float32)
    Dv = jax.random.normal(nk(), (d_inner,), jnp.float32)
    out_w = xavier(d_inner, d_model)
    out_b = lin_bias(d_inner, d_model)
    ff1_w, ff1_b = dense(d_model, d_ff)
    ff2_w, ff2_b = dense(d_ff, d_model)

    # --- fold dt_proj into the dt chunk of in_proj (exact: two chained linears)
    w1 = in_w[:, :d_inner]
    w2 = in_w[:, d_inner:2 * d_inner]
    w3 = in_w[:, 2 * d_inner:] @ dt_w
    b1 = in_b[:d_inner]
    b2 = in_b[d_inner:2 * d_inner]
    b3 = in_b[2 * d_inner:] @ dt_w + dt_b

    # --- pre-pad to 128 lanes and pre-cast weight matrices to bf16 ---
    def pad_last(a, new):
        widths = [(0, 0)] * (a.ndim - 1) + [(0, new - a.shape[-1])]
        return jnp.pad(a, widths)

    in_w_p = jnp.concatenate([pad_last(w1, p), pad_last(w2, p), pad_last(w3, p)],
                             axis=-1)
    in_b_p = jnp.concatenate([pad_last(b1, p), pad_last(b2, p), pad_last(b3, p)],
                             axis=0)
    At = pad_last((-jnp.exp(A_log)).T, p)                       # (d_state, p)
    D_p = pad_last(Dv, p).reshape(1, p)
    out_w_p = jnp.zeros((p, d_model), jnp.float32).at[:d_inner, :].set(out_w)

    wdt = MATMUL_DTYPE
    return {
        "ln1_g": jnp.ones((1, d_model), jnp.float32),
        "ln1_b": jnp.zeros((1, d_model), jnp.float32),
        "in_w": in_w_p.astype(wdt), "in_b": in_b_p.reshape(1, 3 * p),
        "At": At, "D": D_p,
        "out_w": out_w_p.astype(wdt), "out_b": out_b.reshape(1, d_model),
        "ln2_g": jnp.ones((1, d_model), jnp.float32),
        "ln2_b": jnp.zeros((1, d_model), jnp.float32),
        "ff1_w": ff1_w.astype(wdt), "ff1_b": ff1_b.reshape(1, d_ff),
        "ff2_w": ff2_w.astype(wdt), "ff2_b": ff2_b.reshape(1, d_model),
    }


# ----------------------------------------------------------------------------
# Forward pass: 3 fused pallas_calls (glue reshapes are layout no-ops)
# ----------------------------------------------------------------------------
def mamba3d_block_forward(x, params):
    b, n, d_model = x.shape
    p = params["out_w"].shape[0]                  # lane-padded d_inner (static)
    x2d = x.reshape(b * n, d_model)

    # S6 front half: LN1 -> in_proj (dt_proj folded) -> SiLU/SiLU, softplus(dt)
    xp, z, dt = ln_inproj(x2d, params["ln1_g"], params["ln1_b"],
                          params["in_w"], params["in_b"], p)

    # PyTorch scan semantics: seq_len <= 64 -> one scan from h=0; otherwise
    # 32-step chunks that each restart from h=0 -> chunks are independent and
    # become a parallel grid axis.  Pad n so every chunk is full (padded rows
    # sit at the end of the last chunk and are sliced off).
    chunk = _round_up(n, _GROUP) if n <= 64 else 32
    n_pad = _round_up(n, chunk)
    xp3 = xp.reshape(b, n, p)
    dt3 = dt.reshape(b, n, p)
    z3 = z.reshape(b, n, p)
    if n_pad != n:
        pad = ((0, 0), (0, n_pad - n), (0, 0))
        xp3 = jnp.pad(xp3, pad)
        dt3 = jnp.pad(dt3, pad)
        z3 = jnp.pad(z3, pad)
    n_chunks = n_pad // chunk
    bt = _pick_batch_tile(b, n_chunks)

    # selective scan + gating (y*z + x*D) + fused out_proj (+ bias)
    s6 = s6_scan_out(xp3, dt3, z3, params["At"], params["D"],
                     params["out_w"], params["out_b"], chunk, bt)
    s6_2d = s6[:, :n, :].reshape(b * n, d_model)

    # residual add + LN2 + FFN (Linear -> GELU -> Linear) + residual
    out = ffn_block(s6_2d, x2d, params["ln2_g"], params["ln2_b"],
                    params["ff1_w"], params["ff1_b"],
                    params["ff2_w"], params["ff2_b"])
    return out.reshape(b, n, d_model)


# ----------------------------------------------------------------------------
if __name__ == "__main__":
    key = jax.random.PRNGKey(0)
    k_x, k_p = jax.random.split(key)

    B, N, D_MODEL = 2, 16, 64
    x = jax.random.normal(k_x, (B, N, D_MODEL), jnp.float32)
    params = init_params(k_p, d_model=D_MODEL, d_state=16, expand=2)

    fwd = jax.jit(mamba3d_block_forward)
    out = jax.block_until_ready(fwd(x, params))

    assert out.shape == (B, N, D_MODEL), out.shape
    assert bool(jnp.all(jnp.isfinite(out)))
    print("KERNEL_OK")
</pallas_src>

<mosaic_0001>
module attributes {stable_mosaic.version = 11 : i64} {
  func.func @_ffn_kernel(%arg0: i32, %arg1: memref<16x64xf32, #tpu.memory_space<vmem>>, %arg2: memref<16x64xf32, #tpu.memory_space<vmem>>, %arg3: memref<1x64xf32, #tpu.memory_space<vmem>>, %arg4: memref<1x64xf32, #tpu.memory_space<vmem>>, %arg5: memref<64x128xbf16, #tpu.memory_space<vmem>>, %arg6: memref<1x128xf32, #tpu.memory_space<vmem>>, %arg7: memref<128x64xbf16, #tpu.memory_space<vmem>>, %arg8: memref<1x64xf32, #tpu.memory_space<vmem>>, %arg9: memref<16x64xf32, #tpu.memory_space<vmem>>) attributes {dimension_semantics = [#tpu.dimension_semantics<parallel>], iteration_bounds = array<i64: 2>, scalar_prefetch = 0 : i64, scratch_operands = 0 : i64, tpu.core_type = #tpu.core_type<tc>, window_params = [{transform_indices = @transform_0, window_bounds = array<i64: 16, 64>}, {transform_indices = @transform_1, window_bounds = array<i64: 16, 64>}, {pipeline_mode = #tpu.pipeline_mode<synchronous>, transform_indices = @transform_2, window_bounds = array<i64: 1, 64>}, {pipeline_mode = #tpu.pipeline_mode<synchronous>, transform_indices = @transform_3, window_bounds = array<i64: 1, 64>}, {pipeline_mode = #tpu.pipeline_mode<synchronous>, transform_indices = @transform_4, window_bounds = array<i64: 64, 128>}, {pipeline_mode = #tpu.pipeline_mode<synchronous>, transform_indices = @transform_5, window_bounds = array<i64: 1, 128>}, {pipeline_mode = #tpu.pipeline_mode<synchronous>, transform_indices = @transform_6, window_bounds = array<i64: 128, 64>}, {pipeline_mode = #tpu.pipeline_mode<synchronous>, transform_indices = @transform_7, window_bounds = array<i64: 1, 64>}, {transform_indices = @transform_8, window_bounds = array<i64: 16, 64>}]} {
    %c0 = arith.constant 0 : index
    %c0_0 = arith.constant 0 : index
    %0 = vector.load %arg1[%c0, %c0_0] : memref<16x64xf32, #tpu.memory_space<vmem>>, vector<16x64xf32>
    %c0_1 = arith.constant 0 : index
    %c0_2 = arith.constant 0 : index
    %1 = vector.load %arg2[%c0_1, %c0_2] : memref<16x64xf32, #tpu.memory_space<vmem>>, vector<16x64xf32>
    %2 = arith.addf %0, %1 : vector<16x64xf32>
    %c0_3 = arith.constant 0 : index
    %c0_4 = arith.constant 0 : index
    %3 = vector.load %arg3[%c0_3, %c0_4] : memref<1x64xf32, #tpu.memory_space<vmem>>, vector<1x64xf32>
    %c0_5 = arith.constant 0 : index
    %c0_6 = arith.constant 0 : index
    %4 = vector.load %arg4[%c0_5, %c0_6] : memref<1x64xf32, #tpu.memory_space<vmem>>, vector<1x64xf32>
    %cst = arith.constant dense<0.000000e+00> : vector<16xf32>
    %5 = vector.multi_reduction <add>, %2, %cst [1] : vector<16x64xf32> to vector<16xf32>
    %6 = vector.shape_cast %5 : vector<16xf32> to vector<16x1xf32>
    %cst_7 = arith.constant 6.400000e+01 : f32
    %7 = vector.broadcast %cst_7 : f32 to vector<16x1xf32>
    %8 = arith.divf %6, %7 : vector<16x1xf32>
    %9 = vector.broadcast %8 : vector<16x1xf32> to vector<16x64xf32>
    %10 = arith.subf %2, %9 : vector<16x64xf32>
    %11 = arith.mulf %10, %10 : vector<16x64xf32>
    %cst_8 = arith.constant dense<0.000000e+00> : vector<16xf32>
    %12 = vector.multi_reduction <add>, %11, %cst_8 [1] : vector<16x64xf32> to vector<16xf32>
    %13 = vector.shape_cast %12 : vector<16xf32> to vector<16x1xf32>
    %cst_9 = arith.constant 6.400000e+01 : f32
    %14 = vector.broadcast %cst_9 : f32 to vector<16x1xf32>
    %15 = arith.divf %13, %14 : vector<16x1xf32>
    %cst_10 = arith.constant 9.99999974E-6 : f32
    %16 = vector.broadcast %cst_10 : f32 to vector<16x1xf32>
    %17 = arith.addf %15, %16 : vector<16x1xf32>
    %18 = math.rsqrt %17 : vector<16x1xf32>
    %19 = vector.broadcast %18 : vector<16x1xf32> to vector<16x64xf32>
    %20 = arith.mulf %10, %19 : vector<16x64xf32>
    %21 = vector.broadcast %3 : vector<1x64xf32> to vector<16x64xf32>
    %22 = arith.mulf %20, %21 : vector<16x64xf32>
    %23 = vector.broadcast %4 : vector<1x64xf32> to vector<16x64xf32>
    %24 = arith.addf %22, %23 : vector<16x64xf32>
    %c0_11 = arith.constant 0 : index
    %c0_12 = arith.constant 0 : index
    %25 = vector.load %arg5[%c0_11, %c0_12] : memref<64x128xbf16, #tpu.memory_space<vmem>>, vector<64x128xbf16>
    %26 = arith.truncf %24 : vector<16x64xf32> to vector<16x64xbf16>
    %cst_13 = arith.constant dense<0.000000e+00> : vector<16x128xf32>
    %27 = tpu.matmul %26, %25, %cst_13 {dimension_numbers = #tpu.dot_dimension_numbers<[1], [0], [0], [1], [0, 0, 1, 1], [], []>} : vector<16x64xbf16>, vector<64x128xbf16>, vector<16x128xf32> -> vector<16x128xf32>
    %c0_14 = arith.constant 0 : index
    %c0_15 = arith.constant 0 : index
    %28 = vector.load %arg6[%c0_14, %c0_15] : memref<1x128xf32, #tpu.memory_space<vmem>>, vector<1x128xf32>
    %29 = vector.broadcast %28 : vector<1x128xf32> to vector<16x128xf32>
    %30 = arith.addf %27, %29 : vector<16x128xf32>
    %cst_16 = arith.constant 5.000000e-01 : f32
    %31 = vector.broadcast %cst_16 : f32 to vector<16x128xf32>
    %32 = arith.mulf %31, %30 : vector<16x128xf32>
    %cst_17 = arith.constant 4.471500e-02 : f32
    %33 = vector.broadcast %cst_17 : f32 to vector<16x128xf32>
    %34 = arith.mulf %33, %30 : vector<16x128xf32>
    %35 = arith.mulf %34, %30 : vector<16x128xf32>
    %36 = arith.mulf %35, %30 : vector<16x128xf32>
    %37 = arith.addf %30, %36 : vector<16x128xf32>
    %cst_18 = arith.constant 0.797884583 : f32
    %38 = vector.broadcast %cst_18 : f32 to vector<16x128xf32>
    %39 = arith.mulf %38, %37 : vector<16x128xf32>
    %40 = math.tanh %39 : vector<16x128xf32>
    %cst_19 = arith.constant 1.000000e+00 : f32
    %41 = vector.broadcast %cst_19 : f32 to vector<16x128xf32>
    %42 = arith.addf %41, %40 : vector<16x128xf32>
    %43 = arith.mulf %32, %42 : vector<16x128xf32>
    %c0_20 = arith.constant 0 : index
    %c0_21 = arith.constant 0 : index
    %44 = vector.load %arg7[%c0_20, %c0_21] : memref<128x64xbf16, #tpu.memory_space<vmem>>, vector<128x64xbf16>
    %45 = arith.truncf %43 : vector<16x128xf32> to vector<16x128xbf16>
    %cst_22 = arith.constant dense<0.000000e+00> : vector<16x64xf32>
    %46 = tpu.matmul %45, %44, %cst_22 {dimension_numbers = #tpu.dot_dimension_numbers<[1], [0], [0], [1], [0, 0, 1, 1], [], []>} : vector<16x128xbf16>, vector<128x64xbf16>, vector<16x64xf32> -> vector<16x64xf32>
    %c0_23 = arith.constant 0 : index
    %c0_24 = arith.constant 0 : index
    %47 = vector.load %arg8[%c0_23, %c0_24] : memref<1x64xf32, #tpu.memory_space<vmem>>, vector<1x64xf32>
    %48 = vector.broadcast %47 : vector<1x64xf32> to vector<16x64xf32>
    %49 = arith.addf %46, %48 : vector<16x64xf32>
    %50 = arith.addf %2, %49 : vector<16x64xf32>
    %c0_25 = arith.constant 0 : index
    %c0_26 = arith.constant 0 : index
    %51 = vector.load %arg9[%c0_25, %c0_26] : memref<16x64xf32, #tpu.memory_space<vmem>>, vector<16x64xf32>
    tpu.vector_store %arg9[%c0_25, %c0_26], %50 {strides = array<i32>} : memref<16x64xf32, #tpu.memory_space<vmem>>, vector<16x64xf32>,
    return
  }
  func.func @transform_0(%arg0: i32) -> (i32, i32) {
    %c0_i32 = arith.constant 0 : i32
    %c0_i32_0 = arith.constant 0 : i32
    return %arg0, %c0_i32 : i32, i32
  }
  func.func @transform_1(%arg0: i32) -> (i32, i32) {
    %c0_i32 = arith.constant 0 : i32
    %c0_i32_0 = arith.constant 0 : i32
    return %arg0, %c0_i32 : i32, i32
  }
  func.func @transform_2(%arg0: i32) -> (i32, i32) {
    %c0_i32 = arith.constant 0 : i32
    %c0_i32_0 = arith.constant 0 : i32
    %c0_i32_1 = arith.constant 0 : i32
    return %c0_i32, %c0_i32_0 : i32, i32
  }
  func.func @transform_3(%arg0: i32) -> (i32, i32) {
    %c0_i32 = arith.constant 0 : i32
    %c0_i32_0 = arith.constant 0 : i32
    %c0_i32_1 = arith.constant 0 : i32
    return %c0_i32, %c0_i32_0 : i32, i32
  }
  func.func @transform_4(%arg0: i32) -> (i32, i32) {
    %c0_i32 = arith.constant 0 : i32
    %c0_i32_0 = arith.constant 0 : i32
    %c0_i32_1 = arith.constant 0 : i32
    return %c0_i32, %c0_i32_0 : i32, i32
  }
  func.func @transform_5(%arg0: i32) -> (i32, i32) {
    %c0_i32 = arith.constant 0 : i32
    %c0_i32_0 = arith.constant 0 : i32
    %c0_i32_1 = arith.constant 0 : i32
    return %c0_i32, %c0_i32_0 : i32, i32
  }
  func.func @transform_6(%arg0: i32) -> (i32, i32) {
    %c0_i32 = arith.constant 0 : i32
    %c0_i32_0 = arith.constant 0 : i32
    %c0_i32_1 = arith.constant 0 : i32
    return %c0_i32, %c0_i32_0 : i32, i32
  }
  func.func @transform_7(%arg0: i32) -> (i32, i32) {
    %c0_i32 = arith.constant 0 : i32
    %c0_i32_0 = arith.constant 0 : i32
    %c0_i32_1 = arith.constant 0 : i32
    return %c0_i32, %c0_i32_0 : i32, i32
  }
  func.func @transform_8(%arg0: i32) -> (i32, i32) {
    %c0_i32 = arith.constant 0 : i32
    %c0_i32_0 = arith.constant 0 : i32
    return %arg0, %c0_i32 : i32, i32
  }
}

module attributes {stable_mosaic.version = 11 : i64} {
  func.func @_ln_inproj_kernel(%arg0: i32, %arg1: memref<16x64xf32, #tpu.memory_space<vmem>>, %arg2: memref<1x64xf32, #tpu.memory_space<vmem>>, %arg3: memref<1x64xf32, #tpu.memory_space<vmem>>, %arg4: memref<64x384xbf16, #tpu.memory_space<vmem>>, %arg5: memref<1x384xf32, #tpu.memory_space<vmem>>, %arg6: memref<16x128xbf16, #tpu.memory_space<vmem>>, %arg7: memref<16x128xbf16, #tpu.memory_space<vmem>>, %arg8: memref<16x128xf32, #tpu.memory_space<vmem>>) attributes {dimension_semantics = [#tpu.dimension_semantics<parallel>], iteration_bounds = array<i64: 2>, scalar_prefetch = 0 : i64, scratch_operands = 0 : i64, tpu.core_type = #tpu.core_type<tc>, window_params = [{transform_indices = @transform_0, window_bounds = array<i64: 16, 64>}, {pipeline_mode = #tpu.pipeline_mode<synchronous>, transform_indices = @transform_1, window_bounds = array<i64: 1, 64>}, {pipeline_mode = #tpu.pipeline_mode<synchronous>, transform_indices = @transform_2, window_bounds = array<i64: 1, 64>}, {pipeline_mode = #tpu.pipeline_mode<synchronous>, transform_indices = @transform_3, window_bounds = array<i64: 64, 384>}, {pipeline_mode = #tpu.pipeline_mode<synchronous>, transform_indices = @transform_4, window_bounds = array<i64: 1, 384>}, {transform_indices = @transform_5, window_bounds = array<i64: 16, 128>}, {transform_indices = @transform_6, window_bounds = array<i64: 16, 128>}, {transform_indices = @transform_7, window_bounds = array<i64: 16, 128>}]} {
    %c0 = arith.constant 0 : index
    %c0_0 = arith.constant 0 : index
    %0 = vector.load %arg1[%c0, %c0_0] : memref<16x64xf32, #tpu.memory_space<vmem>>, vector<16x64xf32>
    %c0_1 = arith.constant 0 : index
    %c0_2 = arith.constant 0 : index
    %1 = vector.load %arg2[%c0_1, %c0_2] : memref<1x64xf32, #tpu.memory_space<vmem>>, vector<1x64xf32>
    %c0_3 = arith.constant 0 : index
    %c0_4 = arith.constant 0 : index
    %2 = vector.load %arg3[%c0_3, %c0_4] : memref<1x64xf32, #tpu.memory_space<vmem>>, vector<1x64xf32>
    %cst = arith.constant dense<0.000000e+00> : vector<16xf32>
    %3 = vector.multi_reduction <add>, %0, %cst [1] : vector<16x64xf32> to vector<16xf32>
    %4 = vector.shape_cast %3 : vector<16xf32> to vector<16x1xf32>
    %cst_5 = arith.constant 6.400000e+01 : f32
    %5 = vector.broadcast %cst_5 : f32 to vector<16x1xf32>
    %6 = arith.divf %4, %5 : vector<16x1xf32>
    %7 = vector.broadcast %6 : vector<16x1xf32> to vector<16x64xf32>
    %8 = arith.subf %0, %7 : vector<16x64xf32>
    %9 = arith.mulf %8, %8 : vector<16x64xf32>
    %cst_6 = arith.constant dense<0.000000e+00> : vector<16xf32>
    %10 = vector.multi_reduction <add>, %9, %cst_6 [1] : vector<16x64xf32> to vector<16xf32>
    %11 = vector.shape_cast %10 : vector<16xf32> to vector<16x1xf32>
    %cst_7 = arith.constant 6.400000e+01 : f32
    %12 = vector.broadcast %cst_7 : f32 to vector<16x1xf32>
    %13 = arith.divf %11, %12 : vector<16x1xf32>
    %cst_8 = arith.constant 9.99999974E-6 : f32
    %14 = vector.broadcast %cst_8 : f32 to vector<16x1xf32>
    %15 = arith.addf %13, %14 : vector<16x1xf32>
    %16 = math.rsqrt %15 : vector<16x1xf32>
    %17 = vector.broadcast %16 : vector<16x1xf32> to vector<16x64xf32>
    %18 = arith.mulf %8, %17 : vector<16x64xf32>
    %19 = vector.broadcast %1 : vector<1x64xf32> to vector<16x64xf32>
    %20 = arith.mulf %18, %19 : vector<16x64xf32>
    %21 = vector.broadcast %2 : vector<1x64xf32> to vector<16x64xf32>
    %22 = arith.addf %20, %21 : vector<16x64xf32>
    %c0_9 = arith.constant 0 : index
    %c0_10 = arith.constant 0 : index
    %23 = vector.load %arg4[%c0_9, %c0_10] : memref<64x384xbf16, #tpu.memory_space<vmem>>, vector<64x384xbf16>
    %24 = arith.truncf %22 : vector<16x64xf32> to vector<16x64xbf16>
    %cst_11 = arith.constant dense<0.000000e+00> : vector<16x384xf32>
    %25 = tpu.matmul %24, %23, %cst_11 {dimension_numbers = #tpu.dot_dimension_numbers<[1], [0], [0], [1], [0, 0, 1, 1], [], []>} : vector<16x64xbf16>, vector<64x384xbf16>, vector<16x384xf32> -> vector<16x384xf32>
    %c0_12 = arith.constant 0 : index
    %c0_13 = arith.constant 0 : index
    %26 = vector.load %arg5[%c0_12, %c0_13] : memref<1x384xf32, #tpu.memory_space<vmem>>, vector<1x384xf32>
    %27 = vector.broadcast %26 : vector<1x384xf32> to vector<16x384xf32>
    %28 = arith.addf %25, %27 : vector<16x384xf32>
    %29 = vector.extract_strided_slice %28 {offsets = [0, 0], sizes = [16, 128], strides = [1, 1]} : vector<16x384xf32> to vector<16x128xf32>
    %cst_14 = arith.constant 0.000000e+00 : f32
    %30 = vector.broadcast %cst_14 : f32 to vector<16x128xf32>
    %31 = arith.subf %30, %29 : vector<16x128xf32>
    %32 = math.exp %31 : vector<16x128xf32>
    %cst_15 = arith.constant 1.000000e+00 : f32
    %33 = vector.broadcast %cst_15 : f32 to vector<16x128xf32>
    %34 = arith.addf %33, %32 : vector<16x128xf32>
    %35 = arith.divf %29, %34 : vector<16x128xf32>
    %36 = arith.truncf %35 : vector<16x128xf32> to vector<16x128xbf16>
    %c0_16 = arith.constant 0 : index
    %c0_17 = arith.constant 0 : index
    %37 = vector.load %arg6[%c0_16, %c0_17] : memref<16x128xbf16, #tpu.memory_space<vmem>>, vector<16x128xbf16>
    tpu.vector_store %arg6[%c0_16, %c0_17], %36 {strides = array<i32>} : memref<16x128xbf16, #tpu.memory_space<vmem>>, vector<16x128xbf16>,
    %38 = vector.extract_strided_slice %28 {offsets = [0, 128], sizes = [16, 128], strides = [1, 1]} : vector<16x384xf32> to vector<16x128xf32>
    %cst_18 = arith.constant 0.000000e+00 : f32
    %39 = vector.broadcast %cst_18 : f32 to vector<16x128xf32>
    %40 = arith.subf %39, %38 : vector<16x128xf32>
    %41 = math.exp %40 : vector<16x128xf32>
    %cst_19 = arith.constant 1.000000e+00 : f32
    %42 = vector.broadcast %cst_19 : f32 to vector<16x128xf32>
    %43 = arith.addf %42, %41 : vector<16x128xf32>
    %44 = arith.divf %38, %43 : vector<16x128xf32>
    %45 = arith.truncf %44 : vector<16x128xf32> to vector<16x128xbf16>
    %c0_20 = arith.constant 0 : index
    %c0_21 = arith.constant 0 : index
    %46 = vector.load %arg7[%c0_20, %c0_21] : memref<16x128xbf16, #tpu.memory_space<vmem>>, vector<16x128xbf16>
    tpu.vector_store %arg7[%c0_20, %c0_21], %45 {strides = array<i32>} : memref<16x128xbf16, #tpu.memory_space<vmem>>, vector<16x128xbf16>,
    %47 = vector.extract_strided_slice %28 {offsets = [0, 256], sizes = [16, 128], strides = [1, 1]} : vector<16x384xf32> to vector<16x128xf32>
    %cst_22 = arith.constant 0.000000e+00 : f32
    %48 = vector.broadcast %cst_22 : f32 to vector<16x128xf32>
    %49 = arith.maximumf %47, %48 : vector<16x128xf32>
    %50 = math.absf %47 : vector<16x128xf32>
    %cst_23 = arith.constant 0.000000e+00 : f32
    %51 = vector.broadcast %cst_23 : f32 to vector<16x128xf32>
    %52 = arith.subf %51, %50 : vector<16x128xf32>
    %53 = math.exp %52 : vector<16x128xf32>
    %cst_24 = arith.constant 1.000000e+00 : f32
    %54 = vector.broadcast %cst_24 : f32 to vector<16x128xf32>
    %55 = arith.addf %54, %53 : vector<16x128xf32>
    %56 = math.log %55 : vector<16x128xf32>
    %57 = arith.addf %49, %56 : vector<16x128xf32>
    %cst_25 = arith.constant 2.000000e+01 : f32
    %58 = vector.broadcast %cst_25 : f32 to vector<16x128xf32>
    %59 = arith.cmpf ogt, %47, %58 : vector<16x128xf32>
    %60 = arith.select %59, %47, %57 : vector<16x128xi1>, vector<16x128xf32>
    %c0_26 = arith.constant 0 : index
    %c0_27 = arith.constant 0 : index
    %61 = vector.load %arg8[%c0_26, %c0_27] : memref<16x128xf32, #tpu.memory_space<vmem>>, vector<16x128xf32>
    tpu.vector_store %arg8[%c0_26, %c0_27], %60 {strides = array<i32>} : memref<16x128xf32, #tpu.memory_space<vmem>>, vector<16x128xf32>,
    return
  }
  func.func @transform_0(%arg0: i32) -> (i32, i32) {
    %c0_i32 = arith.constant 0 : i32
    %c0_i32_0 = arith.constant 0 : i32
    return %arg0, %c0_i32 : i32, i32
  }
  func.func @transform_1(%arg0: i32) -> (i32, i32) {
    %c0_i32 = arith.constant 0 : i32
    %c0_i32_0 = arith.constant 0 : i32
    %c0_i32_1 = arith.constant 0 : i32
    return %c0_i32, %c0_i32_0 : i32, i32
  }
  func.func @transform_2(%arg0: i32) -> (i32, i32) {
    %c0_i32 = arith.constant 0 : i32
    %c0_i32_0 = arith.constant 0 : i32
    %c0_i32_1 = arith.constant 0 : i32
    return %c0_i32, %c0_i32_0 : i32, i32
  }
  func.func @transform_3(%arg0: i32) -> (i32, i32) {
    %c0_i32 = arith.constant 0 : i32
    %c0_i32_0 = arith.constant 0 : i32
    %c0_i32_1 = arith.constant 0 : i32
    return %c0_i32, %c0_i32_0 : i32, i32
  }
  func.func @transform_4(%arg0: i32) -> (i32, i32) {
    %c0_i32 = arith.constant 0 : i32
    %c0_i32_0 = arith.constant 0 : i32
    %c0_i32_1 = arith.constant 0 : i32
    return %c0_i32, %c0_i32_0 : i32, i32
  }
  func.func @transform_5(%arg0: i32) -> (i32, i32) {
    %c0_i32 = arith.constant 0 : i32
    %c0_i32_0 = arith.constant 0 : i32
    return %arg0, %c0_i32 : i32, i32
  }
  func.func @transform_6(%arg0: i32) -> (i32, i32) {
    %c0_i32 = arith.constant 0 : i32
    %c0_i32_0 = arith.constant 0 : i32
    return %arg0, %c0_i32 : i32, i32
  }
  func.func @transform_7(%arg0: i32) -> (i32, i32) {
    %c0_i32 = arith.constant 0 : i32
    %c0_i32_0 = arith.constant 0 : i32
    return %arg0, %c0_i32 : i32, i32
  }
}

module attributes {stable_mosaic.version = 11 : i64} {
  func.func @_s6_scan_kernel(%arg0: i32, %arg1: i32, %arg2: memref<1x16x128xbf16, #tpu.memory_space<vmem>>, %arg3: memref<1x16x128xf32, #tpu.memory_space<vmem>>, %arg4: memref<1x16x128xbf16, #tpu.memory_space<vmem>>, %arg5: memref<8x128xf32, #tpu.memory_space<vmem>>, %arg6: memref<1x128xf32, #tpu.memory_space<vmem>>, %arg7: memref<128x64xbf16, #tpu.memory_space<vmem>>, %arg8: memref<1x64xf32, #tpu.memory_space<vmem>>, %arg9: memref<1x16x64xf32, #tpu.memory_space<vmem>>, %arg10: memref<1x16x8x128xf32, #tpu.memory_space<vmem>>, %arg11: memref<1x16x128xf32, #tpu.memory_space<vmem>>) attributes {dimension_semantics = [#tpu.dimension_semantics<parallel>, #tpu.dimension_semantics<parallel>], iteration_bounds = array<i64: 2, 1>, scalar_prefetch = 0 : i64, scratch_operands = 2 : i64, tpu.core_type = #tpu.core_type<tc>, window_params = [{transform_indices = @transform_0, window_bounds = array<i64: 1, 16, 128>}, {transform_indices = @transform_1, window_bounds = array<i64: 1, 16, 128>}, {transform_indices = @transform_2, window_bounds = array<i64: 1, 16, 128>}, {pipeline_mode = #tpu.pipeline_mode<synchronous>, transform_indices = @transform_3, window_bounds = array<i64: 8, 128>}, {pipeline_mode = #tpu.pipeline_mode<synchronous>, transform_indices = @transform_4, window_bounds = array<i64: 1, 128>}, {pipeline_mode = #tpu.pipeline_mode<synchronous>, transform_indices = @transform_5, window_bounds = array<i64: 128, 64>}, {pipeline_mode = #tpu.pipeline_mode<synchronous>, transform_indices = @transform_6, window_bounds = array<i64: 1, 64>}, {transform_indices = @transform_7, window_bounds = array<i64: 1, 16, 64>}]} {
    %c0 = arith.constant 0 : index
    %c0_0 = arith.constant 0 : index
    %0 = vector.load %arg5[%c0, %c0_0] : memref<8x128xf32, #tpu.memory_space<vmem>>, vector<8x128xf32>
    %c0_1 = arith.constant 0 : index
    %c0_2 = arith.constant 0 : index
    %c0_3 = arith.constant 0 : index
    %1 = vector.load %arg3[%c0_1, %c0_2, %c0_3] : memref<1x16x128xf32, #tpu.memory_space<vmem>>, vector<1x16x128xf32>
    %2 = vector.shape_cast %1 : vector<1x16x128xf32> to vector<16x128xf32>
    %3 = vector.shape_cast %0 : vector<8x128xf32> to vector<1x8x128xf32>
    %4 = vector.shape_cast %2 : vector<16x128xf32> to vector<16x1x128xf32>
    %5 = vector.broadcast %3 : vector<1x8x128xf32> to vector<16x8x128xf32>
    %6 = vector.broadcast %4 : vector<16x1x128xf32> to vector<16x8x128xf32>
    %7 = arith.mulf %5, %6 : vector<16x8x128xf32>
    %8 = math.exp %7 : vector<16x8x128xf32>
    %c0_4 = arith.constant 0 : index
    %c0_5 = arith.constant 0 : index
    %c0_6 = arith.constant 0 : index
    %c0_7 = arith.constant 0 : index
    %9 = vector.load %arg10[%c0_4, %c0_5, %c0_6, %c0_7] : memref<1x16x8x128xf32, #tpu.memory_space<vmem>>, vector<1x16x8x128xf32>
    %10 = vector.shape_cast %9 : vector<1x16x8x128xf32> to vector<16x8x128xf32>
    %11 = vector.shape_cast %8 : vector<16x8x128xf32> to vector<1x16x8x128xf32>
    tpu.vector_store %arg10[%c0_4, %c0_5, %c0_6, %c0_7], %11 {strides = array<i32>} : memref<1x16x8x128xf32, #tpu.memory_space<vmem>>, vector<1x16x8x128xf32>,
    %cst = arith.constant 0.000000e+00 : f32
    %12 = vector.broadcast %cst : f32 to vector<1x8x128xf32>
    %c0_i32 = arith.constant 0 : i32
    %c8_i32 = arith.constant 8 : i32
    %13 = arith.muli %c0_i32, %c8_i32 : i32
    %14 = tpu.assume_multiple %13, 8 : i32
    %c0_8 = arith.constant 0 : index
    %15 = arith.index_cast %14 : i32 to index
    %c0_9 = arith.constant 0 : index
    %16 = vector.load %arg2[%c0_8, %15, %c0_9] : memref<1x16x128xbf16, #tpu.memory_space<vmem>>, vector<1x8x128xbf16>
    %17 = arith.extf %16 : vector<1x8x128xbf16> to vector<1x8x128xf32>
    %c0_i32_10 = arith.constant 0 : i32
    %18 = arith.addi %14, %c0_i32_10 : i32
    %c0_11 = arith.constant 0 : index
    %19 = arith.index_cast %18 : i32 to index
    %c0_12 = arith.constant 0 : index
    %c0_13 = arith.constant 0 : index
    %20 = vector.load %arg10[%c0_11, %19, %c0_12, %c0_13] : memref<1x16x8x128xf32, #tpu.memory_space<vmem>>, vector<1x1x8x128xf32>
    %21 = vector.shape_cast %20 : vector<1x1x8x128xf32> to vector<1x8x128xf32>
    %22 = arith.mulf %12, %21 : vector<1x8x128xf32>
    %23 = vector.extract_strided_slice %17 {offsets = [0, 0, 0], sizes = [1, 1, 128], strides = [1, 1, 1]} : vector<1x8x128xf32> to vector<1x1x128xf32>
    %24 = vector.broadcast %23 : vector<1x1x128xf32> to vector<1x8x128xf32>
    %25 = arith.addf %22, %24 : vector<1x8x128xf32>
    %cst_14 = arith.constant dense<0.000000e+00> : vector<1x128xf32>
    %26 = vector.multi_reduction <add>, %25, %cst_14 [1] : vector<1x8x128xf32> to vector<1x128xf32>
    %27 = vector.shape_cast %26 : vector<1x128xf32> to vector<1x1x128xf32>
    %c1_i32 = arith.constant 1 : i32
    %28 = arith.addi %14, %c1_i32 : i32
    %c0_15 = arith.constant 0 : index
    %29 = arith.index_cast %28 : i32 to index
    %c0_16 = arith.constant 0 : index
    %c0_17 = arith.constant 0 : index
    %30 = vector.load %arg10[%c0_15, %29, %c0_16, %c0_17] : memref<1x16x8x128xf32, #tpu.memory_space<vmem>>, vector<1x1x8x128xf32>
    %31 = vector.shape_cast %30 : vector<1x1x8x128xf32> to vector<1x8x128xf32>
    %32 = arith.mulf %25, %31 : vector<1x8x128xf32>
    %33 = vector.extract_strided_slice %17 {offsets = [0, 1, 0], sizes = [1, 1, 128], strides = [1, 1, 1]} : vector<1x8x128xf32> to vector<1x1x128xf32>
    %34 = vector.broadcast %33 : vector<1x1x128xf32> to vector<1x8x128xf32>
    %35 = arith.addf %32, %34 : vector<1x8x128xf32>
    %cst_18 = arith.constant dense<0.000000e+00> : vector<1x128xf32>
    %36 = vector.multi_reduction <add>, %35, %cst_18 [1] : vector<1x8x128xf32> to vector<1x128xf32>
    %37 = vector.shape_cast %36 : vector<1x128xf32> to vector<1x1x128xf32>
    %c2_i32 = arith.constant 2 : i32
    %38 = arith.addi %14, %c2_i32 : i32
    %c0_19 = arith.constant 0 : index
    %39 = arith.index_cast %38 : i32 to index
    %c0_20 = arith.constant 0 : index
    %c0_21 = arith.constant 0 : index
    %40 = vector.load %arg10[%c0_19, %39, %c0_20, %c0_21] : memref<1x16x8x128xf32, #tpu.memory_space<vmem>>, vector<1x1x8x128xf32>
    %41 = vector.shape_cast %40 : vector<1x1x8x128xf32> to vector<1x8x128xf32>
    %42 = arith.mulf %35, %41 : vector<1x8x128xf32>
    %43 = vector.extract_strided_slice %17 {offsets = [0, 2, 0], sizes = [1, 1, 128], strides = [1, 1, 1]} : vector<1x8x128xf32> to vector<1x1x128xf32>
    %44 = vector.broadcast %43 : vector<1x1x128xf32> to vector<1x8x128xf32>
    %45 = arith.addf %42, %44 : vector<1x8x128xf32>
    %cst_22 = arith.constant dense<0.000000e+00> : vector<1x128xf32>
    %46 = vector.multi_reduction <add>, %45, %cst_22 [1] : vector<1x8x128xf32> to vector<1x128xf32>
    %47 = vector.shape_cast %46 : vector<1x128xf32> to vector<1x1x128xf32>
    %c3_i32 = arith.constant 3 : i32
    %48 = arith.addi %14, %c3_i32 : i32
    %c0_23 = arith.constant 0 : index
    %49 = arith.index_cast %48 : i32 to index
    %c0_24 = arith.constant 0 : index
    %c0_25 = arith.constant 0 : index
    %50 = vector.load %arg10[%c0_23, %49, %c0_24, %c0_25] : memref<1x16x8x128xf32, #tpu.memory_space<vmem>>, vector<1x1x8x128xf32>
    %51 = vector.shape_cast %50 : vector<1x1x8x128xf32> to vector<1x8x128xf32>
    %52 = arith.mulf %45, %51 : vector<1x8x128xf32>
    %53 = vector.extract_strided_slice %17 {offsets = [0, 3, 0], sizes = [1, 1, 128], strides = [1, 1, 1]} : vector<1x8x128xf32> to vector<1x1x128xf32>
    %54 = vector.broadcast %53 : vector<1x1x128xf32> to vector<1x8x128xf32>
    %55 = arith.addf %52, %54 : vector<1x8x128xf32>
    %cst_26 = arith.constant dense<0.000000e+00> : vector<1x128xf32>
    %56 = vector.multi_reduction <add>, %55, %cst_26 [1] : vector<1x8x128xf32> to vector<1x128xf32>
    %57 = vector.shape_cast %56 : vector<1x128xf32> to vector<1x1x128xf32>
    %c4_i32 = arith.constant 4 : i32
    %58 = arith.addi %14, %c4_i32 : i32
    %c0_27 = arith.constant 0 : index
    %59 = arith.index_cast %58 : i32 to index
    %c0_28 = arith.constant 0 : index
    %c0_29 = arith.constant 0 : index
    %60 = vector.load %arg10[%c0_27, %59, %c0_28, %c0_29] : memref<1x16x8x128xf32, #tpu.memory_space<vmem>>, vector<1x1x8x128xf32>
    %61 = vector.shape_cast %60 : vector<1x1x8x128xf32> to vector<1x8x128xf32>
    %62 = arith.mulf %55, %61 : vector<1x8x128xf32>
    %63 = vector.extract_strided_slice %17 {offsets = [0, 4, 0], sizes = [1, 1, 128], strides = [1, 1, 1]} : vector<1x8x128xf32> to vector<1x1x128xf32>
    %64 = vector.broadcast %63 : vector<1x1x128xf32> to vector<1x8x128xf32>
    %65 = arith.addf %62, %64 : vector<1x8x128xf32>
    %cst_30 = arith.constant dense<0.000000e+00> : vector<1x128xf32>
    %66 = vector.multi_reduction <add>, %65, %cst_30 [1] : vector<1x8x128xf32> to vector<1x128xf32>
    %67 = vector.shape_cast %66 : vector<1x128xf32> to vector<1x1x128xf32>
    %c5_i32 = arith.constant 5 : i32
    %68 = arith.addi %14, %c5_i32 : i32
    %c0_31 = arith.constant 0 : index
    %69 = arith.index_cast %68 : i32 to index
    %c0_32 = arith.constant 0 : index
    %c0_33 = arith.constant 0 : index
    %70 = vector.load %arg10[%c0_31, %69, %c0_32, %c0_33] : memref<1x16x8x128xf32, #tpu.memory_space<vmem>>, vector<1x1x8x128xf32>
    %71 = vector.shape_cast %70 : vector<1x1x8x128xf32> to vector<1x8x128xf32>
    %72 = arith.mulf %65, %71 : vector<1x8x128xf32>
    %73 = vector.extract_strided_slice %17 {offsets = [0, 5, 0], sizes = [1, 1, 128], strides = [1, 1, 1]} : vector<1x8x128xf32> to vector<1x1x128xf32>
    %74 = vector.broadcast %73 : vector<1x1x128xf32> to vector<1x8x128xf32>
    %75 = arith.addf %72, %74 : vector<1x8x128xf32>
    %cst_34 = arith.constant dense<0.000000e+00> : vector<1x128xf32>
    %76 = vector.multi_reduction <add>, %75, %cst_34 [1] : vector<1x8x128xf32> to vector<1x128xf32>
    %77 = vector.shape_cast %76 : vector<1x128xf32> to vector<1x1x128xf32>
    %c6_i32 = arith.constant 6 : i32
    %78 = arith.addi %14, %c6_i32 : i32
    %c0_35 = arith.constant 0 : index
    %79 = arith.index_cast %78 : i32 to index
    %c0_36 = arith.constant 0 : index
    %c0_37 = arith.constant 0 : index
    %80 = vector.load %arg10[%c0_35, %79, %c0_36, %c0_37] : memref<1x16x8x128xf32, #tpu.memory_space<vmem>>, vector<1x1x8x128xf32>
    %81 = vector.shape_cast %80 : vector<1x1x8x128xf32> to vector<1x8x128xf32>
    %82 = arith.mulf %75, %81 : vector<1x8x128xf32>
    %83 = vector.extract_strided_slice %17 {offsets = [0, 6, 0], sizes = [1, 1, 128], strides = [1, 1, 1]} : vector<1x8x128xf32> to vector<1x1x128xf32>
    %84 = vector.broadcast %83 : vector<1x1x128xf32> to vector<1x8x128xf32>
    %85 = arith.addf %82, %84 : vector<1x8x128xf32>
    %cst_38 = arith.constant dense<0.000000e+00> : vector<1x128xf32>
    %86 = vector.multi_reduction <add>, %85, %cst_38 [1] : vector<1x8x128xf32> to vector<1x128xf32>
    %87 = vector.shape_cast %86 : vector<1x128xf32> to vector<1x1x128xf32>
    %c7_i32 = arith.constant 7 : i32
    %88 = arith.addi %14, %c7_i32 : i32
    %c0_39 = arith.constant 0 : index
    %89 = arith.index_cast %88 : i32 to index
    %c0_40 = arith.constant 0 : index
    %c0_41 = arith.constant 0 : index
    %90 = vector.load %arg10[%c0_39, %89, %c0_40, %c0_41] : memref<1x16x8x128xf32, #tpu.memory_space<vmem>>, vector<1x1x8x128xf32>
    %91 = vector.shape_cast %90 : vector<1x1x8x128xf32> to vector<1x8x128xf32>
    %92 = arith.mulf %85, %91 : vector<1x8x128xf32>
    %93 = vector.extract_strided_slice %17 {offsets = [0, 7, 0], sizes = [1, 1, 128], strides = [1, 1, 1]} : vector<1x8x128xf32> to vector<1x1x128xf32>
    %94 = vector.broadcast %93 : vector<1x1x128xf32> to vector<1x8x128xf32>
    %95 = arith.addf %92, %94 : vector<1x8x128xf32>
    %cst_42 = arith.constant dense<0.000000e+00> : vector<1x128xf32>
    %96 = vector.multi_reduction <add>, %95, %cst_42 [1] : vector<1x8x128xf32> to vector<1x128xf32>
    %97 = vector.shape_cast %96 : vector<1x128xf32> to vector<1x1x128xf32>
    %98 = tpu.concatenate %27, %37, %47, %57, %67, %77, %87, %97 in 1 : vector<1x1x128xf32>, vector<1x1x128xf32>, vector<1x1x128xf32>, vector<1x1x128xf32>, vector<1x1x128xf32>, vector<1x1x128xf32>, vector<1x1x128xf32>, vector<1x1x128xf32> -> vector<1x8x128xf32>
    %c0_43 = arith.constant 0 : index
    %99 = arith.index_cast %14 : i32 to index
    %c0_44 = arith.constant 0 : index
    %100 = vector.load %arg11[%c0_43, %99, %c0_44] : memref<1x16x128xf32, #tpu.memory_space<vmem>>, vector<1x8x128xf32>
    tpu.vector_store %arg11[%c0_43, %99, %c0_44], %98 {strides = array<i32>} : memref<1x16x128xf32, #tpu.memory_space<vmem>>, vector<1x8x128xf32>,
    %c1_i32_45 = arith.constant 1 : i32
    %c8_i32_46 = arith.constant 8 : i32
    %101 = arith.muli %c1_i32_45, %c8_i32_46 : i32
    %102 = tpu.assume_multiple %101, 8 : i32
    %c0_47 = arith.constant 0 : index
    %103 = arith.index_cast %102 : i32 to index
    %c0_48 = arith.constant 0 : index
    %104 = vector.load %arg2[%c0_47, %103, %c0_48] : memref<1x16x128xbf16, #tpu.memory_space<vmem>>, vector<1x8x128xbf16>
    %105 = arith.extf %104 : vector<1x8x128xbf16> to vector<1x8x128xf32>
    %c0_i32_49 = arith.constant 0 : i32
    %106 = arith.addi %102, %c0_i32_49 : i32
    %c0_50 = arith.constant 0 : index
    %107 = arith.index_cast %106 : i32 to index
    %c0_51 = arith.constant 0 : index
    %c0_52 = arith.constant 0 : index
    %108 = vector.load %arg10[%c0_50, %107, %c0_51, %c0_52] : memref<1x16x8x128xf32, #tpu.memory_space<vmem>>, vector<1x1x8x128xf32>
    %109 = vector.shape_cast %108 : vector<1x1x8x128xf32> to vector<1x8x128xf32>
    %110 = arith.mulf %95, %109 : vector<1x8x128xf32>
    %111 = vector.extract_strided_slice %105 {offsets = [0, 0, 0], sizes = [1, 1, 128], strides = [1, 1, 1]} : vector<1x8x128xf32> to vector<1x1x128xf32>
    %112 = vector.broadcast %111 : vector<1x1x128xf32> to vector<1x8x128xf32>
    %113 = arith.addf %110, %112 : vector<1x8x128xf32>
    %cst_53 = arith.constant dense<0.000000e+00> : vector<1x128xf32>
    %114 = vector.multi_reduction <add>, %113, %cst_53 [1] : vector<1x8x128xf32> to vector<1x128xf32>
    %115 = vector.shape_cast %114 : vector<1x128xf32> to vector<1x1x128xf32>
    %c1_i32_54 = arith.constant 1 : i32
    %116 = arith.addi %102, %c1_i32_54 : i32
    %c0_55 = arith.constant 0 : index
    %117 = arith.index_cast %116 : i32 to index
    %c0_56 = arith.constant 0 : index
    %c0_57 = arith.constant 0 : index
    %118 = vector.load %arg10[%c0_55, %117, %c0_56, %c0_57] : memref<1x16x8x128xf32, #tpu.memory_space<vmem>>, vector<1x1x8x128xf32>
    %119 = vector.shape_cast %118 : vector<1x1x8x128xf32> to vector<1x8x128xf32>
    %120 = arith.mulf %113, %119 : vector<1x8x128xf32>
    %121 = vector.extract_strided_slice %105 {offsets = [0, 1, 0], sizes = [1, 1, 128], strides = [1, 1, 1]} : vector<1x8x128xf32> to vector<1x1x128xf32>
    %122 = vector.broadcast %121 : vector<1x1x128xf32> to vector<1x8x128xf32>
    %123 = arith.addf %120, %122 : vector<1x8x128xf32>
    %cst_58 = arith.constant dense<0.000000e+00> : vector<1x128xf32>
    %124 = vector.multi_reduction <add>, %123, %cst_58 [1] : vector<1x8x128xf32> to vector<1x128xf32>
    %125 = vector.shape_cast %124 : vector<1x128xf32> to vector<1x1x128xf32>
    %c2_i32_59 = arith.constant 2 : i32
    %126 = arith.addi %102, %c2_i32_59 : i32
    %c0_60 = arith.constant 0 : index
    %127 = arith.index_cast %126 : i32 to index
    %c0_61 = arith.constant 0 : index
    %c0_62 = arith.constant 0 : index
    %128 = vector.load %arg10[%c0_60, %127, %c0_61, %c0_62] : memref<1x16x8x128xf32, #tpu.memory_space<vmem>>, vector<1x1x8x128xf32>
    %129 = vector.shape_cast %128 : vector<1x1x8x128xf32> to vector<1x8x128xf32>
    %130 = arith.mulf %123, %129 : vector<1x8x128xf32>
    %131 = vector.extract_strided_slice %105 {offsets = [0, 2, 0], sizes = [1, 1, 128], strides = [1, 1, 1]} : vector<1x8x128xf32> to vector<1x1x128xf32>
    %132 = vector.broadcast %131 : vector<1x1x128xf32> to vector<1x8x128xf32>
    %133 = arith.addf %130, %132 : vector<1x8x128xf32>
    %cst_63 = arith.constant dense<0.000000e+00> : vector<1x128xf32>
    %134 = vector.multi_reduction <add>, %133, %cst_63 [1] : vector<1x8x128xf32> to vector<1x128xf32>
    %135 = vector.shape_cast %134 : vector<1x128xf32> to vector<1x1x128xf32>
    %c3_i32_64 = arith.constant 3 : i32
    %136 = arith.addi %102, %c3_i32_64 : i32
    %c0_65 = arith.constant 0 : index
    %137 = arith.index_cast %136 : i32 to index
    %c0_66 = arith.constant 0 : index
    %c0_67 = arith.constant 0 : index
    %138 = vector.load %arg10[%c0_65, %137, %c0_66, %c0_67] : memref<1x16x8x128xf32, #tpu.memory_space<vmem>>, vector<1x1x8x128xf32>
    %139 = vector.shape_cast %138 : vector<1x1x8x128xf32> to vector<1x8x128xf32>
    %140 = arith.mulf %133, %139 : vector<1x8x128xf32>
    %141 = vector.extract_strided_slice %105 {offsets = [0, 3, 0], sizes = [1, 1, 128], strides = [1, 1, 1]} : vector<1x8x128xf32> to vector<1x1x128xf32>
    %142 = vector.broadcast %141 : vector<1x1x128xf32> to vector<1x8x128xf32>
    %143 = arith.addf %140, %142 : vector<1x8x128xf32>
    %cst_68 = arith.constant dense<0.000000e+00> : vector<1x128xf32>
    %144 = vector.multi_reduction <add>, %143, %cst_68 [1] : vector<1x8x128xf32> to vector<1x128xf32>
    %145 = vector.shape_cast %144 : vector<1x128xf32> to vector<1x1x128xf32>
    %c4_i32_69 = arith.constant 4 : i32
    %146 = arith.addi %102, %c4_i32_69 : i32
    %c0_70 = arith.constant 0 : index
    %147 = arith.index_cast %146 : i32 to index
    %c0_71 = arith.constant 0 : index
    %c0_72 = arith.constant 0 : index
    %148 = vector.load %arg10[%c0_70, %147, %c0_71, %c0_72] : memref<1x16x8x128xf32, #tpu.memory_space<vmem>>, vector<1x1x8x128xf32>
    %149 = vector.shape_cast %148 : vector<1x1x8x128xf32> to vector<1x8x128xf32>
    %150 = arith.mulf %143, %149 : vector<1x8x128xf32>
    %151 = vector.extract_strided_slice %105 {offsets = [0, 4, 0], sizes = [1, 1, 128], strides = [1, 1, 1]} : vector<1x8x128xf32> to vector<1x1x128xf32>
    %152 = vector.broadcast %151 : vector<1x1x128xf32> to vector<1x8x128xf32>
    %153 = arith.addf %150, %152 : vector<1x8x128xf32>
    %cst_73 = arith.constant dense<0.000000e+00> : vector<1x128xf32>
    %154 = vector.multi_reduction <add>, %153, %cst_73 [1] : vector<1x8x128xf32> to vector<1x128xf32>
    %155 = vector.shape_cast %154 : vector<1x128xf32> to vector<1x1x128xf32>
    %c5_i32_74 = arith.constant 5 : i32
    %156 = arith.addi %102, %c5_i32_74 : i32
    %c0_75 = arith.constant 0 : index
    %157 = arith.index_cast %156 : i32 to index
    %c0_76 = arith.constant 0 : index
    %c0_77 = arith.constant 0 : index
    %158 = vector.load %arg10[%c0_75, %157, %c0_76, %c0_77] : memref<1x16x8x128xf32, #tpu.memory_space<vmem>>, vector<1x1x8x128xf32>
    %159 = vector.shape_cast %158 : vector<1x1x8x128xf32> to vector<1x8x128xf32>
    %160 = arith.mulf %153, %159 : vector<1x8x128xf32>
    %161 = vector.extract_strided_slice %105 {offsets = [0, 5, 0], sizes = [1, 1, 128], strides = [1, 1, 1]} : vector<1x8x128xf32> to vector<1x1x128xf32>
    %162 = vector.broadcast %161 : vector<1x1x128xf32> to vector<1x8x128xf32>
    %163 = arith.addf %160, %162 : vector<1x8x128xf32>
    %cst_78 = arith.constant dense<0.000000e+00> : vector<1x128xf32>
    %164 = vector.multi_reduction <add>, %163, %cst_78 [1] : vector<1x8x128xf32> to vector<1x128xf32>
    %165 = vector.shape_cast %164 : vector<1x128xf32> to vector<1x1x128xf32>
    %c6_i32_79 = arith.constant 6 : i32
    %166 = arith.addi %102, %c6_i32_79 : i32
    %c0_80 = arith.constant 0 : index
    %167 = arith.index_cast %166 : i32 to index
    %c0_81 = arith.constant 0 : index
    %c0_82 = arith.constant 0 : index
    %168 = vector.load %arg10[%c0_80, %167, %c0_81, %c0_82] : memref<1x16x8x128xf32, #tpu.memory_space<vmem>>, vector<1x1x8x128xf32>
    %169 = vector.shape_cast %168 : vector<1x1x8x128xf32> to vector<1x8x128xf32>
    %170 = arith.mulf %163, %169 : vector<1x8x128xf32>
    %171 = vector.extract_strided_slice %105 {offsets = [0, 6, 0], sizes = [1, 1, 128], strides = [1, 1, 1]} : vector<1x8x128xf32> to vector<1x1x128xf32>
    %172 = vector.broadcast %171 : vector<1x1x128xf32> to vector<1x8x128xf32>
    %173 = arith.addf %170, %172 : vector<1x8x128xf32>
    %cst_83 = arith.constant dense<0.000000e+00> : vector<1x128xf32>
    %174 = vector.multi_reduction <add>, %173, %cst_83 [1] : vector<1x8x128xf32> to vector<1x128xf32>
    %175 = vector.shape_cast %174 : vector<1x128xf32> to vector<1x1x128xf32>
    %c7_i32_84 = arith.constant 7 : i32
    %176 = arith.addi %102, %c7_i32_84 : i32
    %c0_85 = arith.constant 0 : index
    %177 = arith.index_cast %176 : i32 to index
    %c0_86 = arith.constant 0 : index
    %c0_87 = arith.constant 0 : index
    %178 = vector.load %arg10[%c0_85, %177, %c0_86, %c0_87] : memref<1x16x8x128xf32, #tpu.memory_space<vmem>>, vector<1x1x8x128xf32>
    %179 = vector.shape_cast %178 : vector<1x1x8x128xf32> to vector<1x8x128xf32>
    %180 = arith.mulf %173, %179 : vector<1x8x128xf32>
    %181 = vector.extract_strided_slice %105 {offsets = [0, 7, 0], sizes = [1, 1, 128], strides = [1, 1, 1]} : vector<1x8x128xf32> to vector<1x1x128xf32>
    %182 = vector.broadcast %181 : vector<1x1x128xf32> to vector<1x8x128xf32>
    %183 = arith.addf %180, %182 : vector<1x8x128xf32>
    %cst_88 = arith.constant dense<0.000000e+00> : vector<1x128xf32>
    %184 = vector.multi_reduction <add>, %183, %cst_88 [1] : vector<1x8x128xf32> to vector<1x128xf32>
    %185 = vector.shape_cast %184 : vector<1x128xf32> to vector<1x1x128xf32>
    %186 = tpu.concatenate %115, %125, %135, %145, %155, %165, %175, %185 in 1 : vector<1x1x128xf32>, vector<1x1x128xf32>, vector<1x1x128xf32>, vector<1x1x128xf32>, vector<1x1x128xf32>, vector<1x1x128xf32>, vector<1x1x128xf32>, vector<1x1x128xf32> -> vector<1x8x128xf32>
    %c0_89 = arith.constant 0 : index
    %187 = arith.index_cast %102 : i32 to index
    %c0_90 = arith.constant 0 : index
    %188 = vector.load %arg11[%c0_89, %187, %c0_90] : memref<1x16x128xf32, #tpu.memory_space<vmem>>, vector<1x8x128xf32>
    tpu.vector_store %arg11[%c0_89, %187, %c0_90], %186 {strides = array<i32>} : memref<1x16x128xf32, #tpu.memory_space<vmem>>, vector<1x8x128xf32>,
    %c2_i32_91 = arith.constant 2 : i32
    %c0_92 = arith.constant 0 : index
    %c0_93 = arith.constant 0 : index
    %189 = vector.load %arg7[%c0_92, %c0_93] : memref<128x64xbf16, #tpu.memory_space<vmem>>, vector<128x64xbf16>
    %c0_94 = arith.constant 0 : index
    %c0_95 = arith.constant 0 : index
    %190 = vector.load %arg8[%c0_94, %c0_95] : memref<1x64xf32, #tpu.memory_space<vmem>>, vector<1x64xf32>
    %c0_96 = arith.constant 0 : index
    %c0_97 = arith.constant 0 : index
    %191 = vector.load %arg6[%c0_96, %c0_97] : memref<1x128xf32, #tpu.memory_space<vmem>>, vector<1x128xf32>
    %c0_98 = arith.constant 0 : index
    %c0_99 = arith.constant 0 : index
    %c0_100 = arith.constant 0 : index
    %192 = vector.load %arg2[%c0_98, %c0_99, %c0_100] : memref<1x16x128xbf16, #tpu.memory_space<vmem>>, vector<1x16x128xbf16>
    %193 = vector.shape_cast %192 : vector<1x16x128xbf16> to vector<16x128xbf16>
    %194 = arith.extf %193 : vector<16x128xbf16> to vector<16x128xf32>
    %c0_101 = arith.constant 0 : index
    %c0_102 = arith.constant 0 : index
    %c0_103 = arith.constant 0 : index
    %195 = vector.load %arg4[%c0_101, %c0_102, %c0_103] : memref<1x16x128xbf16, #tpu.memory_space<vmem>>, vector<1x16x128xbf16>
    %196 = vector.shape_cast %195 : vector<1x16x128xbf16> to vector<16x128xbf16>
    %197 = arith.extf %196 : vector<16x128xbf16> to vector<16x128xf32>
    %c0_104 = arith.constant 0 : index
    %c0_105 = arith.constant 0 : index
    %c0_106 = arith.constant 0 : index
    %198 = vector.load %arg11[%c0_104, %c0_105, %c0_106] : memref<1x16x128xf32, #tpu.memory_space<vmem>>, vector<1x16x128xf32>
    %199 = vector.shape_cast %198 : vector<1x16x128xf32> to vector<16x128xf32>
    %200 = arith.mulf %199, %197 : vector<16x128xf32>
    %201 = vector.broadcast %191 : vector<1x128xf32> to vector<16x128xf32>
    %202 = arith.mulf %194, %201 : vector<16x128xf32>
    %203 = arith.addf %200, %202 : vector<16x128xf32>
    %204 = arith.truncf %203 : vector<16x128xf32> to vector<16x128xbf16>
    %cst_107 = arith.constant dense<0.000000e+00> : vector<16x64xf32>
    %205 = tpu.matmul %204, %189, %cst_107 {dimension_numbers = #tpu.dot_dimension_numbers<[1], [0], [0], [1], [0, 0, 1, 1], [], []>} : vector<16x128xbf16>, vector<128x64xbf16>, vector<16x64xf32> -> vector<16x64xf32>
    %206 = vector.broadcast %190 : vector<1x64xf32> to vector<16x64xf32>
    %207 = arith.addf %205, %206 : vector<16x64xf32>
    %c0_108 = arith.constant 0 : index
    %c0_109 = arith.constant 0 : index
    %c0_110 = arith.constant 0 : index
    %208 = vector.load %arg9[%c0_108, %c0_109, %c0_110] : memref<1x16x64xf32, #tpu.memory_space<vmem>>, vector<1x16x64xf32>
    %209 = vector.shape_cast %208 : vector<1x16x64xf32> to vector<16x64xf32>
    %210 = vector.shape_cast %207 : vector<16x64xf32> to vector<1x16x64xf32>
    tpu.vector_store %arg9[%c0_108, %c0_109, %c0_110], %210 {strides = array<i32>} : memref<1x16x64xf32, #tpu.memory_space<vmem>>, vector<1x16x64xf32>,
    return
  }
  func.func @transform_0(%arg0: i32, %arg1: i32) -> (i32, i32, i32) {
    %c0_i32 = arith.constant 0 : i32
    %c0_i32_0 = arith.constant 0 : i32
    return %arg0, %arg1, %c0_i32 : i32, i32, i32
  }
  func.func @transform_1(%arg0: i32, %arg1: i32) -> (i32, i32, i32) {
    %c0_i32 = arith.constant 0 : i32
    %c0_i32_0 = arith.constant 0 : i32
    return %arg0, %arg1, %c0_i32 : i32, i32, i32
  }
  func.func @transform_2(%arg0: i32, %arg1: i32) -> (i32, i32, i32) {
    %c0_i32 = arith.constant 0 : i32
    %c0_i32_0 = arith.constant 0 : i32
    return %arg0, %arg1, %c0_i32 : i32, i32, i32
  }
  func.func @transform_3(%arg0: i32, %arg1: i32) -> (i32, i32) {
    %c0_i32 = arith.constant 0 : i32
    %c0_i32_0 = arith.constant 0 : i32
    %c0_i32_1 = arith.constant 0 : i32
    return %c0_i32, %c0_i32_0 : i32, i32
  }
  func.func @transform_4(%arg0: i32, %arg1: i32) -> (i32, i32) {
    %c0_i32 = arith.constant 0 : i32
    %c0_i32_0 = arith.constant 0 : i32
    %c0_i32_1 = arith.constant 0 : i32
    return %c0_i32, %c0_i32_0 : i32, i32
  }
  func.func @transform_5(%arg0: i32, %arg1: i32) -> (i32, i32) {
    %c0_i32 = arith.constant 0 : i32
    %c0_i32_0 = arith.constant 0 : i32
    %c0_i32_1 = arith.constant 0 : i32
    return %c0_i32, %c0_i32_0 : i32, i32
  }
  func.func @transform_6(%arg0: i32, %arg1: i32) -> (i32, i32) {
    %c0_i32 = arith.constant 0 : i32
    %c0_i32_0 = arith.constant 0 : i32
    %c0_i32_1 = arith.constant 0 : i32
    return %c0_i32, %c0_i32_0 : i32, i32
  }
  func.func @transform_7(%arg0: i32, %arg1: i32) -> (i32, i32, i32) {
    %c0_i32 = arith.constant 0 : i32
    %c0_i32_0 = arith.constant 0 : i32
    return %arg0, %arg1, %c0_i32 : i32, i32, i32
  }
}

</mosaic_0001>

<llo_original>
// kernel: mamba3d_block_forward.5
$region0: #{mamba3d_block_forward.5}
  #allocation0 [shape = 'u32[]', space=smem, size = 0x4, offset = 0x4, fixed_abs, tag = 'smem constant byte address 0x4 - core index']
  #allocation1 [shape = 'u32[144,128]{1,0:T(1,128)}', space=vmem, size = 0x12000, scoped, tag = 'internal scratch']
  %s0 = inlined_call_operand.vmem [shape: f32[32,64], index: 0, kind: input, shape index: {}]
  %s1 = inlined_call_operand.vmem [shape: f32[32,64], index: 1, kind: input, shape index: {}]
  %s2 = inlined_call_operand.vmem [shape: f32[1,64], index: 2, kind: input, shape index: {}]
  %s3 = inlined_call_operand.vmem [shape: f32[1,64], index: 3, kind: input, shape index: {}]
  %s4 = inlined_call_operand.vmem [shape: bf16[64,128], index: 4, kind: input, shape index: {}]
  %s5 = inlined_call_operand.vmem [shape: f32[1,128], index: 5, kind: input, shape index: {}]
  %s6 = inlined_call_operand.vmem [shape: bf16[128,64], index: 6, kind: input, shape index: {}]
  %s7 = inlined_call_operand.vmem [shape: f32[1,64], index: 7, kind: input, shape index: {}]
  %s8 = inlined_call_operand.hbm [shape: f32[32,64], index: 8, kind: output, shape index: {}]
  %s9 = sld [smem:[#allocation0]]
  $region65: #{mamba3d_block_forward.5} parent=0
    _
  %s11 = ssub.s32 1, %s9
  %s12 = scalar_select 0, %s11, %s9
  $region1: #{mamba3d_block_forward.5} parent=0
    #allocation2 [shape = 'u8[16384]{0}', space=vmem, size = 0x4000, scoped, tag = 'output window, operand 0']
    #allocation3 [shape = 's32[2]{0}', space=sflag, size = 0x8, scoped, tag = 'scoped memory for mamba3d_block_forward.5']
    %13 = vsyncpa [#allocation3], 0
    %s14 = scalar_lea.sflag [#allocation3], 1
    %15 = vsyncpa %s14, 0
    loop: start=0, step=1, limit=4
    $region2: #{mamba3d_block_forward.5} parent=1 // loop_pre_header
      _
    $region3: #{mamba3d_block_forward.5} parent=1 // loop_header
      %s17 = sphi 0, %s21
      %p18 = scmp.ge.s32.totalorder %s17, 4
      %s27 = sphi 0, %s29
      %s30 = sphi 0, %s27
      %s31 = sphi 0, %s30
      %s47 = sphi 0, %s31
      %s53 = sphi 0, %s55
      %s56 = sphi 0, %s53
      %s57 = sphi 0, %s56
      %s73 = sphi 0, %s57
      %s77 = sphi 0, %s77
      %s79 = sphi 0, %s77
      %s80 = sphi 0, %s79
      %s94 = sphi 0, %s80
      %s98 = sphi 0, %s98
      %s100 = sphi 0, %s98
      %s101 = sphi 0, %s100
      %s115 = sphi 0, %s101
      %s119 = sphi 0, %s119
      %s121 = sphi 0, %s119
      %s122 = sphi 0, %s121
      %s136 = sphi 0, %s122
      %s140 = sphi 0, %s140
      %s142 = sphi 0, %s140
      %s143 = sphi 0, %s142
      %s157 = sphi 0, %s143
      %s161 = sphi 0, %s161
      %s163 = sphi 0, %s161
      %s164 = sphi 0, %s163
      %s178 = sphi 0, %s164
      %s182 = sphi 0, %s182
      %s184 = sphi 0, %s182
      %s185 = sphi 0, %s184
      %s199 = sphi 0, %s185
      %s205 = sphi 0, %s207
      %s208 = sphi 0, %s205
      %s209 = sphi 0, %s208
      %s225 = sphi 0, %s209
    $region4: #{mamba3d_block_forward.5} parent=1 // loop_header_branch
      %20 = sbr.rel (%p18) target = $region8
    $region5: #{mamba3d_block_forward.5} parent=1 // loop_body
      %s22 = ssub.s32 %s17, 1
      %s23 = ssub.s32 %s17, 2
      %s24 = sadd.s32 %s17, 1
      %s25 = ssub.s32 %s17, %s24
      %p26 = scmp.eq.s32.totalorder %s25, 0
      %s28 = sadd.s32 %s27, 1
      %s29 = scalar_select %p26, %s27, %s28
      %p32 = pneg %p26
      %p33 = scmp.eq.s32.totalorder %s17, 1
      %p34 = por %p32, %p33
      %p35 = scmp.ne.s32.totalorder %s27, %s30
      %p36 = scmp.eq.s32.totalorder %s17, 0
      %p37 = por %p35, %p36
      %p38 = scmp.ne.s32.totalorder %s27, %s30
      %p39 = scmp.eq.s32.totalorder %s22, 1
      %p40 = por %p38, %p39
      %p41 = scmp.ne.s32.totalorder %s30, %s31
      %p42 = scmp.eq.s32.totalorder %s22, 0
      %p43 = por %p41, %p42
      %p44 = scmp.ne.s32.totalorder %s30, %s31
      %p45 = scmp.eq.s32.totalorder %s23, 1
      %p46 = por %p44, %p45
      %p48 = scmp.ne.s32.totalorder %s31, %s47
      %p49 = scmp.eq.s32.totalorder %s23, 0
      %p50 = por %p48, %p49
      %s51 = ssub.s32 %s17, %s24
      %p52 = scmp.eq.s32.totalorder %s51, 0
      %s54 = sadd.s32 %s53, 1
      %s55 = scalar_select %p52, %s53, %s54
      %p58 = pneg %p52
      %p59 = scmp.eq.s32.totalorder %s17, 1
      %p60 = por %p58, %p59
      %p61 = scmp.ne.s32.totalorder %s53, %s56
      %p62 = scmp.eq.s32.totalorder %s17, 0
      %p63 = por %p61, %p62
      %p64 = scmp.ne.s32.totalorder %s53, %s56
      %p65 = scmp.eq.s32.totalorder %s22, 1
      %p66 = por %p64, %p65
      %p67 = scmp.ne.s32.totalorder %s56, %s57
      %p68 = scmp.eq.s32.totalorder %s22, 0
      %p69 = por %p67, %p68
      %p70 = scmp.ne.s32.totalorder %s56, %s57
      %p71 = scmp.eq.s32.totalorder %s23, 1
      %p72 = por %p70, %p71
      %p74 = scmp.ne.s32.totalorder %s57, %s73
      %p75 = scmp.eq.s32.totalorder %s23, 0
      %p76 = por %p74, %p75
      %s78 = sadd.s32 %s77, 1
      %p81 = scmp.eq.s32.totalorder %s17, 1
      %p82 = scmp.ne.s32.totalorder %s77, %s79
      %p83 = scmp.eq.s32.totalorder %s17, 0
      %p84 = por %p82, %p83
      %p85 = scmp.ne.s32.totalorder %s77, %s79
      %p86 = scmp.eq.s32.totalorder %s22, 1
      %p87 = por %p85, %p86
      %p88 = scmp.ne.s32.totalorder %s79, %s80
      %p89 = scmp.eq.s32.totalorder %s22, 0
      %p90 = por %p88, %p89
      %p91 = scmp.ne.s32.totalorder %s79, %s80
      %p92 = scmp.eq.s32.totalorder %s23, 1
      %p93 = por %p91, %p92
      %p95 = scmp.ne.s32.totalorder %s80, %s94
      %p96 = scmp.eq.s32.totalorder %s23, 0
      %p97 = por %p95, %p96
      %s99 = sadd.s32 %s98, 1
      %p102 = scmp.eq.s32.totalorder %s17, 1
      %p103 = scmp.ne.s32.totalorder %s98, %s100
      %p104 = scmp.eq.s32.totalorder %s17, 0
      %p105 = por %p103, %p104
      %p106 = scmp.ne.s32.totalorder %s98, %s100
      %p107 = scmp.eq.s32.totalorder %s22, 1
      %p108 = por %p106, %p107
      %p109 = scmp.ne.s32.totalorder %s100, %s101
      %p110 = scmp.eq.s32.totalorder %s22, 0
      %p111 = por %p109, %p110
      %p112 = scmp.ne.s32.totalorder %s100, %s101
      %p113 = scmp.eq.s32.totalorder %s23, 1
      %p114 = por %p112, %p113
      %p116 = scmp.ne.s32.totalorder %s101, %s115
      %p117 = scmp.eq.s32.totalorder %s23, 0
      %p118 = por %p116, %p117
      %s120 = sadd.s32 %s119, 1
      %p123 = scmp.eq.s32.totalorder %s17, 1
      %p124 = scmp.ne.s32.totalorder %s119, %s121
      %p125 = scmp.eq.s32.totalorder %s17, 0
      %p126 = por %p124, %p125
      %p127 = scmp.ne.s32.totalorder %s119, %s121
      %p128 = scmp.eq.s32.totalorder %s22, 1
      %p129 = por %p127, %p128
      %p130 = scmp.ne.s32.totalorder %s121, %s122
      %p131 = scmp.eq.s32.totalorder %s22, 0
      %p132 = por %p130, %p131
      %p133 = scmp.ne.s32.totalorder %s121, %s122
      %p134 = scmp.eq.s32.totalorder %s23, 1
      %p135 = por %p133, %p134
      %p137 = scmp.ne.s32.totalorder %s122, %s136
      %p138 = scmp.eq.s32.totalorder %s23, 0
      %p139 = por %p137, %p138
      %s141 = sadd.s32 %s140, 1
      %p144 = scmp.eq.s32.totalorder %s17, 1
      %p145 = scmp.ne.s32.totalorder %s140, %s142
      %p146 = scmp.eq.s32.totalorder %s17, 0
      %p147 = por %p145, %p146
      %p148 = scmp.ne.s32.totalorder %s140, %s142
      %p149 = scmp.eq.s32.totalorder %s22, 1
      %p150 = por %p148, %p149
      %p151 = scmp.ne.s32.totalorder %s142, %s143
      %p152 = scmp.eq.s32.totalorder %s22, 0
      %p153 = por %p151, %p152
      %p154 = scmp.ne.s32.totalorder %s142, %s143
      %p155 = scmp.eq.s32.totalorder %s23, 1
      %p156 = por %p154, %p155
      %p158 = scmp.ne.s32.totalorder %s143, %s157
      %p159 = scmp.eq.s32.totalorder %s23, 0
      %p160 = por %p158, %p159
      %s162 = sadd.s32 %s161, 1
      %p165 = scmp.eq.s32.totalorder %s17, 1
      %p166 = scmp.ne.s32.totalorder %s161, %s163
      %p167 = scmp.eq.s32.totalorder %s17, 0
      %p168 = por %p166, %p167
      %p169 = scmp.ne.s32.totalorder %s161, %s163
      %p170 = scmp.eq.s32.totalorder %s22, 1
      %p171 = por %p169, %p170
      %p172 = scmp.ne.s32.totalorder %s163, %s164
      %p173 = scmp.eq.s32.totalorder %s22, 0
      %p174 = por %p172, %p173
      %p175 = scmp.ne.s32.totalorder %s163, %s164
      %p176 = scmp.eq.s32.totalorder %s23, 1
      %p177 = por %p175, %p176
      %p179 = scmp.ne.s32.totalorder %s164, %s178
      %p180 = scmp.eq.s32.totalorder %s23, 0
      %p181 = por %p179, %p180
      %s183 = sadd.s32 %s182, 1
      %p186 = scmp.eq.s32.totalorder %s17, 1
      %p187 = scmp.ne.s32.totalorder %s182, %s184
      %p188 = scmp.eq.s32.totalorder %s17, 0
      %p189 = por %p187, %p188
      %p190 = scmp.ne.s32.totalorder %s182, %s184
      %p191 = scmp.eq.s32.totalorder %s22, 1
      %p192 = por %p190, %p191
      %p193 = scmp.ne.s32.totalorder %s184, %s185
      %p194 = scmp.eq.s32.totalorder %s22, 0
      %p195 = por %p193, %p194
      %p196 = scmp.ne.s32.totalorder %s184, %s185
      %p197 = scmp.eq.s32.totalorder %s23, 1
      %p198 = por %p196, %p197
      %p200 = scmp.ne.s32.totalorder %s185, %s199
      %p201 = scmp.eq.s32.totalorder %s23, 0
      %p202 = por %p200, %p201
      %s203 = ssub.s32 %s17, %s24
      %p204 = scmp.eq.s32.totalorder %s203, 0
      %s206 = sadd.s32 %s205, 1
      %s207 = scalar_select %p204, %s205, %s206
      %p210 = pneg %p204
      %p211 = scmp.eq.s32.totalorder %s17, 1
      %p212 = por %p210, %p211
      %p213 = scmp.ne.s32.totalorder %s205, %s208
      %p214 = scmp.eq.s32.totalorder %s17, 0
      %p215 = por %p213, %p214
      %p216 = scmp.ne.s32.totalorder %s205, %s208
      %p217 = scmp.eq.s32.totalorder %s22, 1
      %p218 = por %p216, %p217
      %p219 = scmp.ne.s32.totalorder %s208, %s209
      %p220 = scmp.eq.s32.totalorder %s22, 0
      %p221 = por %p219, %p220
      %p222 = scmp.ne.s32.totalorder %s208, %s209
      %p223 = scmp.eq.s32.totalorder %s23, 1
      %p224 = por %p222, %p223
      %p226 = scmp.ne.s32.totalorder %s209, %s225
      %p227 = scmp.eq.s32.totalorder %s23, 0
      %p228 = por %p226, %p227
      %p229 = scmp.le.s32.totalorder 1, %s17
      %p230 = scmp.lt.s32.totalorder %s17, 3
      %p231 = pnand %p229, %p230
      %p232 = pneg %p231
      // Predicated region
      $region9: #{mamba3d_block_forward.5} parent=5 // pred_check
        _
      $region10: #{mamba3d_block_forward.5} parent=5 // pred_check_branch
        %234 = sbr.rel (%p231) target = $region12
      $region11: #{mamba3d_block_forward.5} parent=5 // pred_region
        %s235 = ssub.s32 %s17, 1
        // Predicated region
        $region13: #{mamba3d_block_forward.5} parent=11 // pred_check
          %p236 = pneg %p90
        $region14: #{mamba3d_block_forward.5} parent=11 // pred_check_branch
          %238 = sbr.rel (%p236) target = $region16
        $region15: #{mamba3d_block_forward.5} parent=11 // pred_region
          _
        $region16: #{mamba3d_block_forward.5} parent=11 // pred_fallthru
          _
        // Predicated region
        $region17: #{mamba3d_block_forward.5} parent=11 // pred_check
          %p239 = pneg %p111
        $region18: #{mamba3d_block_forward.5} parent=11 // pred_check_branch
          %241 = sbr.rel (%p239) target = $region20
        $region19: #{mamba3d_block_forward.5} parent=11 // pred_region
          _
        $region20: #{mamba3d_block_forward.5} parent=11 // pred_fallthru
          _
        // Predicated region
        $region21: #{mamba3d_block_forward.5} parent=11 // pred_check
          %p242 = pneg %p132
        $region22: #{mamba3d_block_forward.5} parent=11 // pred_check_branch
          %244 = sbr.rel (%p242) target = $region24
        $region23: #{mamba3d_block_forward.5} parent=11 // pred_region
          _
        $region24: #{mamba3d_block_forward.5} parent=11 // pred_fallthru
          _
        // Predicated region
        $region25: #{mamba3d_block_forward.5} parent=11 // pred_check
          %p245 = pneg %p153
        $region26: #{mamba3d_block_forward.5} parent=11 // pred_check_branch
          %247 = sbr.rel (%p245) target = $region28
        $region27: #{mamba3d_block_forward.5} parent=11 // pred_region
          _
        $region28: #{mamba3d_block_forward.5} parent=11 // pred_fallthru
          _
        // Predicated region
        $region29: #{mamba3d_block_forward.5} parent=11 // pred_check
          %p248 = pneg %p174
        $region30: #{mamba3d_block_forward.5} parent=11 // pred_check_branch
          %250 = sbr.rel (%p248) target = $region32
        $region31: #{mamba3d_block_forward.5} parent=11 // pred_region
          _
        $region32: #{mamba3d_block_forward.5} parent=11 // pred_fallthru
          _
        // Predicated region
        $region33: #{mamba3d_block_forward.5} parent=11 // pred_check
          %p251 = pneg %p195
        $region34: #{mamba3d_block_forward.5} parent=11 // pred_check_branch
          %253 = sbr.rel (%p251) target = $region36
        $region35: #{mamba3d_block_forward.5} parent=11 // pred_region
          _
        $region36: #{mamba3d_block_forward.5} parent=11 // pred_fallthru
          _
      $region12: #{mamba3d_block_forward.5} parent=5 // pred_fallthru
        _
      %p254 = scmp.lt.s32.totalorder %s17, 2
      // Predicated region
      $region37: #{mamba3d_block_forward.5} parent=5 // pred_check
        %p255 = pneg %p254
      $region38: #{mamba3d_block_forward.5} parent=5 // pred_check_branch
        %257 = sbr.rel (%p255) target = $region40
      $region39: #{mamba3d_block_forward.5} parent=5 // pred_region
        // Predicated region
        $region41: #{mamba3d_block_forward.5} parent=39 // pred_check
          %p258 = pneg %p37
        $region42: #{mamba3d_block_forward.5} parent=39 // pred_check_branch
          %260 = sbr.rel (%p258) target = $region44
        $region43: #{mamba3d_block_forward.5} parent=39 // pred_region
          %s261 = smul.u32 2, %s17
          %p262 = scmp.lt.s32.totalorder %s261, 3
          %s263 = scalar_select %p262, %s261, 3
          %s264 = smul.addr %s263, 8
          %s265 = scalar_lea.vmem %s0, %s264
          %s266 = smul.u32 2, %s17
        $region44: #{mamba3d_block_forward.5} parent=39 // pred_fallthru
          _
        // Predicated region
        $region45: #{mamba3d_block_forward.5} parent=39 // pred_check
          %p267 = pneg %p63
        $region46: #{mamba3d_block_forward.5} parent=39 // pred_check_branch
          %269 = sbr.rel (%p267) target = $region48
        $region47: #{mamba3d_block_forward.5} parent=39 // pred_region
          %s270 = smul.u32 2, %s17
          %p271 = scmp.lt.s32.totalorder %s270, 3
          %s272 = scalar_select %p271, %s270, 3
          %s273 = smul.addr %s272, 8
          %s274 = scalar_lea.vmem %s1, %s273
          %s275 = smul.u32 2, %s17
        $region48: #{mamba3d_block_forward.5} parent=39 // pred_fallthru
          _
      $region40: #{mamba3d_block_forward.5} parent=5 // pred_fallthru
        _
      %p276 = scmp.le.s32.totalorder 1, %s17
      %p277 = scmp.lt.s32.totalorder %s17, 3
      %p278 = pnand %p276, %p277
      %p279 = pneg %p278
      // Predicated region
      $region49: #{mamba3d_block_forward.5} parent=5 // pred_check
        _
      $region50: #{mamba3d_block_forward.5} parent=5 // pred_check_branch
        %281 = sbr.rel (%p278) target = $region52
      $region51: #{mamba3d_block_forward.5} parent=5 // pred_region
        %s282 = ssub.s32 %s17, 1
        %s283 = smul.u32 2, %s22
        %p284 = scmp.lt.s32.totalorder %s283, 3
        %s285 = scalar_select %p284, %s283, 3
        %s286 = smul.addr %s285, 8
        %s287 = scalar_lea.vmem %s0, %s286
        %p288 = pneg %p43
        %p289 = pneg %p40
        %s290 = smul.u32 2, %s22
        %p291 = scmp.lt.s32.totalorder %s290, 3
        %s292 = scalar_select %p291, %s290, 3
        %s293 = smul.addr %s292, 8
        %s294 = scalar_lea.vmem %s1, %s293
        %p295 = pneg %p69
        %p296 = pneg %p66
        %p297 = pneg %p90
        %p298 = pneg %p87
        %p299 = pneg %p111
        %p300 = pneg %p108
        %p301 = pneg %p132
        %p302 = pneg %p129
        %p303 = pneg %p153
        %p304 = pneg %p150
        %p305 = pneg %p174
        %p306 = pneg %p171
        %p307 = pneg %p195
        %p308 = pneg %p192
        %p309 = pneg %p221
        %p310 = pneg %p218
        %s311 = sand.u32 %s208, 1
        %s312 = scalar_lea.sflag [#allocation3], %s311
        %s313 = sand.u32 %s208, 1
        %s314 = smul.addr %s313, 16
        %s315 = scalar_lea.vmem [#allocation2], %s314
        %s316 = smul.u32 2, %s22
        %p317 = scmp.lt.s32.totalorder %s316, 3
        %s318 = scalar_select %p317, %s316, 3
        %s319 = smul.addr %s318, 8
        %s320 = scalar_lea.vmem %s0, %s319
        %s321 = smul.u32 2, %s22
        %s322 = smul.u32 2, %s22
        %p323 = scmp.lt.s32.totalorder %s322, 3
        %s324 = scalar_select %p323, %s322, 3
        %s325 = smul.addr %s324, 8
        %s326 = scalar_lea.vmem %s1, %s325
        %s327 = smul.u32 2, %s22
        %s328 = smul.u32 2, %s22
        %v330 = vld [vmem:[%s320] sm:$0xff]
        %v331 = vld [vmem:[%s320 + $0x8] sm:$0xff]
        %v332 = vld [vmem:[%s326] sm:$0xff]
        %v333 = vld [vmem:[%s326 + $0x8] sm:$0xff]
        %v334 = vadd.f32 %v330, %v332
        %v335 = vadd.f32 %v331, %v333
        %v336 = vld [vmem:[%s2] sm:$0x1]
        %v337 = vld [vmem:[%s3] sm:$0x1]
        %vm338 = vcmask 523264
        %v339 = vsel %vm338, %v334, 0.0
        %340 = vadd.xlane.f32.xlu0 %v339
        %v341 = vpop.xlane.xlu0 %340
        %v342 = vsel %vm338, %v335, 0.0
        %343 = vadd.xlane.f32.xlu0 %v342
        %v344 = vpop.xlane.xlu0 %343
        %v345 = vrcp.pop 64.0
        %v346 = vmul.f32 %v341, %v345
        %v347 = vmul.f32 %v344, %v345
        %v348 = vsub.f32 %v334, %v346
        %v349 = vsub.f32 %v335, %v347
        %v350 = vmul.f32 %v348, %v348
        %v351 = vmul.f32 %v349, %v349
        %v352 = vsel %vm338, %v350, 0.0
        %353 = vadd.xlane.f32.xlu0 %v352
        %v354 = vpop.xlane.xlu0 %353
        %v355 = vsel %vm338, %v351, 0.0
        %356 = vadd.xlane.f32.xlu0 %v355
        %v357 = vpop.xlane.xlu0 %356
        %v358 = vmul.f32 %v354, %v345
        %v359 = vmul.f32 %v357, %v345
        %v360 = vadd.f32 %v358, 1e-05
        %v361 = vadd.f32 %v359, 1e-05
        %v362 = vrsqrt.pop %v360
        %v363 = vrsqrt.pop %v361
        %v364 = vmul.f32 %v348, %v362
        %v365 = vmul.f32 %v349, %v363
        %v367 = vlaneseq
        %v368 = vshrl.u32 %v367, 7
        %v369 = vsub.s32 0, %v368
        %v370 = vrot.slane %v336, %v369
        %v372 = vmul.f32 %v364, %v370
        %v373 = vmul.f32 %v365, %v370
        %v375 = vlaneseq
        %v376 = vshrl.u32 %v375, 7
        %v377 = vsub.s32 0, %v376
        %v378 = vrot.slane %v337, %v377
        %v380 = vadd.f32 %v372, %v378
        %v381 = vadd.f32 %v373, %v378
        %v382 = vld [vmem:[%s4] sm:$0xf]
        %v383 = vld [vmem:[%s4 + $0x4] sm:$0xf]
        %v384 = vld [vmem:[%s4 + $0x8] sm:$0xf]
        %v385 = vld [vmem:[%s4 + $0xc] sm:$0xf]
        %v386 = vld [vmem:[%s4 + $0x10] sm:$0xf]
        %v387 = vld [vmem:[%s4 + $0x14] sm:$0xf]
        %v388 = vld [vmem:[%s4 + $0x18] sm:$0xf]
        %v389 = vld [vmem:[%s4 + $0x1c] sm:$0xf]
        %v390 = vpack.c.bf16 %v381, %v380
        %v391 = vld [vmem:[%s5] sm:$0x1]
        %v393 = vlaneseq
        %v394 = vshrl.u32 %v393, 7
        %v395 = vsub.s32 0, %v394
        %v396 = vrot.slane %v391, %v395
        %v406 = vunpack.c.l.b16 %v382
        %v407 = vunpack.c.l.b16 %v383
        %v408 = vunpack.c.l.b16 %v384
        %v409 = vunpack.c.l.b16 %v385
        %v410 = vunpack.c.l.b16 %v386
        %v411 = vunpack.c.l.b16 %v387
        %v412 = vunpack.c.l.b16 %v388
        %v413 = vunpack.c.l.b16 %v389
        %v414 = vpack.c.b16 %v407, %v406
        %v415 = vpack.c.b16 %v409, %v408
        %v416 = vpack.c.b16 %v411, %v410
        %v417 = vpack.c.b16 %v413, %v412
        %v423 = vsel %vm338, %v390, 0
        %425 = vmatprep.subr.bf16.mxu0 0
        %426 = vmatpush1.bf16.msra.mxu0 %v414
        %427 = vmatprep.subr.bf16.mxu0 0
        %428 = vmatpush1.bf16.msra.mxu0 %v415
        %429 = vmatprep.subr.bf16.mxu0 0
        %430 = vmatpush1.bf16.msra.mxu0 %v416
        %431 = vmatprep.subr.bf16.mxu0 0
        %432 = vmatpush1.bf16.msra.mxu0 %v417
        %433 = vmatprep.subr.bf16.mxu0 0
        %434 = vmatpush1.bf16.msra.mxu0 0
        %435 = vmatprep.subr.bf16.mxu0 0
        %436 = vmatpush1.bf16.msra.mxu0 0
        %437 = vmatprep.subr.bf16.mxu0 0
        %438 = vmatpush1.bf16.msra.mxu0 0
        %439 = vmatprep.subr.bf16.mxu0 0
        %440 = vmatpush1.bf16.msra.mxu0 0
        %441 = vmatprep.subr.bf16.mxu0 0
        %442 = vmatpush1.bf16.msra.mxu0 0
        %443 = vmatprep.subr.bf16.mxu0 0
        %444 = vmatpush1.bf16.msra.mxu0 0
        %445 = vmatprep.subr.bf16.mxu0 0
        %446 = vmatpush1.bf16.msra.mxu0 0
        %447 = vmatprep.subr.bf16.mxu0 0
        %448 = vmatpush1.bf16.msra.mxu0 0
        %449 = vmatprep.subr.bf16.mxu0 0
        %450 = vmatpush1.bf16.msra.mxu0 0
        %451 = vmatprep.subr.bf16.mxu0 0
        %452 = vmatpush1.bf16.msra.mxu0 0
        %453 = vmatprep.subr.bf16.mxu0 0
        %454 = vmatpush1.bf16.msra.mxu0 0
        %455 = vmatprep.subr.bf16.mxu0 0
        %456 = vmatpush1.bf16.msra.mxu0 0
        %457 = vmatprep.mubr.bf16.mxu0 0
        %458 = vmatmul.mubr.bf16.gmra.mrb[0].mxu0 %v423
        %v459 = vpop.f32.mrb[0].mxu0
        %v460 = vadd.f32 %v396, %v459
        %v461 = vpop.f32.mrb[0].mxu0
        %v462 = vpop.f32.mrb[0].mxu0
        %v463 = vadd.f32 %v396, %v462
        %v464 = vpop.f32.mrb[0].mxu0
        %465 = vdwg.mxu0
        %v466 = vmul.f32 %v460, 0.5
        %v467 = vmul.f32 %v463, 0.5
        %v468 = vmul.f32 %v460, 0.044715
        %v469 = vmul.f32 %v463, 0.044715
        %v470 = vmul.f32 %v468, %v460
        %v471 = vmul.f32 %v469, %v463
        %v472 = vmul.f32 %v470, %v460
        %v473 = vmul.f32 %v471, %v463
        %v474 = vadd.f32 %v460, %v472
        %v475 = vadd.f32 %v463, %v473
        %v476 = vmul.f32 %v474, 0.7978846
        %v477 = vmul.f32 %v475, 0.7978846
        %v478 = vtanh.pop %v476
        %v479 = vtanh.pop %v477
        %v480 = vadd.f32 %v478, 1.0
        %v481 = vadd.f32 %v479, 1.0
        %v482 = vmul.f32 %v466, %v480
        %v483 = vmul.f32 %v467, %v481
        %v484 = vld [vmem:[%s6] sm:$0xf]
        %v485 = vld [vmem:[%s6 + $0x4] sm:$0xf]
        %v486 = vld [vmem:[%s6 + $0x8] sm:$0xf]
        %v487 = vld [vmem:[%s6 + $0xc] sm:$0xf]
        %v488 = vld [vmem:[%s6 + $0x10] sm:$0xf]
        %v489 = vld [vmem:[%s6 + $0x14] sm:$0xf]
        %v490 = vld [vmem:[%s6 + $0x18] sm:$0xf]
        %v491 = vld [vmem:[%s6 + $0x1c] sm:$0xf]
        %v492 = vld [vmem:[%s6 + $0x20] sm:$0xf]
        %v493 = vld [vmem:[%s6 + $0x24] sm:$0xf]
        %v494 = vld [vmem:[%s6 + $0x28] sm:$0xf]
        %v495 = vld [vmem:[%s6 + $0x2c] sm:$0xf]
        %v496 = vld [vmem:[%s6 + $0x30] sm:$0xf]
        %v497 = vld [vmem:[%s6 + $0x34] sm:$0xf]
        %v498 = vld [vmem:[%s6 + $0x38] sm:$0xf]
        %v499 = vld [vmem:[%s6 + $0x3c] sm:$0xf]
        %v500 = vpack.c.bf16 %v483, %v482
        %v501 = vld [vmem:[%s7] sm:$0x1]
        %v503 = vlaneseq
        %v504 = vshrl.u32 %v503, 7
        %v505 = vsub.s32 0, %v504
        %v506 = vrot.slane %v501, %v505
        %v524 = vunpack.c.l.b16 %v484
        %v525 = vunpack.c.l.b16 %v485
        %v526 = vunpack.c.l.b16 %v486
        %v527 = vunpack.c.l.b16 %v487
        %v528 = vunpack.c.l.b16 %v488
        %v529 = vunpack.c.l.b16 %v489
        %v530 = vunpack.c.l.b16 %v490
        %v531 = vunpack.c.l.b16 %v491
        %v532 = vunpack.c.l.b16 %v492
        %v533 = vunpack.c.l.b16 %v493
        %v534 = vunpack.c.l.b16 %v494
        %v535 = vunpack.c.l.b16 %v495
        %v536 = vunpack.c.l.b16 %v496
        %v537 = vunpack.c.l.b16 %v497
        %v538 = vunpack.c.l.b16 %v498
        %v539 = vunpack.c.l.b16 %v499
        %v540 = vpack.c.b16 %v525, %v524
        %v541 = vpack.c.b16 %v527, %v526
        %v542 = vpack.c.b16 %v529, %v528
        %v543 = vpack.c.b16 %v531, %v530
        %v544 = vpack.c.b16 %v533, %v532
        %v545 = vpack.c.b16 %v535, %v534
        %v546 = vpack.c.b16 %v537, %v536
        %v547 = vpack.c.b16 %v539, %v538
        %556 = vmatprep.subr.bf16.mxu0 0
        %557 = vmatpush1.bf16.msra.mxu0 %v540
        %558 = vmatprep.subr.bf16.mxu0 0
        %559 = vmatpush1.bf16.msra.mxu0 %v541
        %560 = vmatprep.subr.bf16.mxu0 0
        %561 = vmatpush1.bf16.msra.mxu0 %v542
        %562 = vmatprep.subr.bf16.mxu0 0
        %563 = vmatpush1.bf16.msra.mxu0 %v543
        %564 = vmatprep.subr.bf16.mxu0 0
        %565 = vmatpush1.bf16.msra.mxu0 %v544
        %566 = vmatprep.subr.bf16.mxu0 0
        %567 = vmatpush1.bf16.msra.mxu0 %v545
        %568 = vmatprep.subr.bf16.mxu0 0
        %569 = vmatpush1.bf16.msra.mxu0 %v546
        %570 = vmatprep.subr.bf16.mxu0 0
        %571 = vmatpush1.bf16.msra.mxu0 %v547
        %572 = vmatprep.subr.bf16.mxu0 0
        %573 = vmatpush1.bf16.msra.mxu0 0
        %574 = vmatprep.subr.bf16.mxu0 0
        %575 = vmatpush1.bf16.msra.mxu0 0
        %576 = vmatprep.subr.bf16.mxu0 0
        %577 = vmatpush1.bf16.msra.mxu0 0
        %578 = vmatprep.subr.bf16.mxu0 0
        %579 = vmatpush1.bf16.msra.mxu0 0
        %580 = vmatprep.subr.bf16.mxu0 0
        %581 = vmatpush1.bf16.msra.mxu0 0
        %582 = vmatprep.subr.bf16.mxu0 0
        %583 = vmatpush1.bf16.msra.mxu0 0
        %584 = vmatprep.subr.bf16.mxu0 0
        %585 = vmatpush1.bf16.msra.mxu0 0
        %586 = vmatprep.subr.bf16.mxu0 0
        %587 = vmatpush1.bf16.msra.mxu0 0
        %588 = vmatprep.mubr.bf16.mxu0 0
        %589 = vmatmul.mubr.bf16.gmra.mrb[0].mxu0 %v500
        %v590 = vpop.f32.mrb[0].mxu0
        %v591 = vadd.f32 %v506, %v590
        %v592 = vpop.f32.mrb[0].mxu0
        %v593 = vpop.f32.mrb[0].mxu0
        %v594 = vadd.f32 %v506, %v593
        %v595 = vpop.f32.mrb[0].mxu0
        %596 = vdwg.mxu0
        %v597 = vadd.f32 %v334, %v591
        %v598 = vadd.f32 %v335, %v594
        %599 = vst.msk [vmem:[%s315] sm:$0xff] %vm338, %v597
        %600 = vst.msk [vmem:[%s315 + $0x8] sm:$0xff] %vm338, %v598
        %s601 = sand.u32 %s208, 1
        %s602 = scalar_lea.sflag [#allocation3], %s601
        %s603 = sand.u32 %s208, 1
        %s604 = smul.addr %s603, 16
        %s605 = scalar_lea.vmem [#allocation2], %s604
        // Predicated region
        $region53: #{mamba3d_block_forward.5} parent=51 // pred_check
          %p606 = pneg %p218
        $region54: #{mamba3d_block_forward.5} parent=51 // pred_check_branch
          %608 = sbr.rel (%p606) target = $region56
        $region55: #{mamba3d_block_forward.5} parent=51 // pred_region
          %s609 = smul.u32 2, %s22
          %s611 = ssub.s32 256, 256
          %612 = vsyncadd %s602, %s611
          %s613 = smul.addr %s609, 128
          %s614 = scalar_lea.hbm %s8, %s613
          %s615 = sshll.u32 %s605, 4
          %s616 = int_to_ptr.vmem [resolvable:$true] %s615
          %621 = dma.vmem_to_hbm [thread:$0]  %s616, 256, %s614, %s602, 128, 128, 8
        $region56: #{mamba3d_block_forward.5} parent=51 // pred_fallthru
          _
      $region52: #{mamba3d_block_forward.5} parent=5 // pred_fallthru
        _
      %p622 = scmp.le.s32.totalorder 2, %s17
      // Predicated region
      $region57: #{mamba3d_block_forward.5} parent=5 // pred_check
        %p623 = pneg %p622
      $region58: #{mamba3d_block_forward.5} parent=5 // pred_check_branch
        %625 = sbr.rel (%p623) target = $region60
      $region59: #{mamba3d_block_forward.5} parent=5 // pred_region
        %s626 = ssub.s32 %s17, 2
        // Predicated region
        $region61: #{mamba3d_block_forward.5} parent=59 // pred_check
          %p627 = pneg %p224
        $region62: #{mamba3d_block_forward.5} parent=59 // pred_check_branch
          %629 = sbr.rel (%p627) target = $region64
        $region63: #{mamba3d_block_forward.5} parent=59 // pred_region
          %s630 = sand.u32 %s209, 1
          %s631 = scalar_lea.sflag [#allocation3], %s630
          %s632 = sand.u32 %s209, 1
          %s633 = smul.addr %s632, 16
          %s634 = scalar_lea.vmem [#allocation2], %s633
          %635 = dma.done %s631, 256
        $region64: #{mamba3d_block_forward.5} parent=59 // pred_fallthru
          _
      $region60: #{mamba3d_block_forward.5} parent=5 // pred_fallthru
        _
    $region6: #{mamba3d_block_forward.5} parent=1 // loop_footer
      %s21 = sadd.s32 1, %s17
    $region7: #{mamba3d_block_forward.5} parent=1 // loop_footer_branch
      %16 = sbr.rel target = $region3
    $region8: #{mamba3d_block_forward.5} parent=1 // loop_exit
      _
    %636 = vsyncpa [#allocation3], 1
    %s637 = scalar_lea.sflag [#allocation3], 1
    %638 = vsyncpa %s637, 1

// kernel: mamba3d_block_forward.3
$region0: #{mamba3d_block_forward.3}
  #allocation0 [shape = 'u32[]', space=smem, size = 0x4, offset = 0x4, fixed_abs, tag = 'smem constant byte address 0x4 - core index']
  #allocation1 [shape = 'u32[144,128]{1,0:T(1,128)}', space=vmem, size = 0x12000, scoped, tag = 'internal scratch']
  %s0 = inlined_call_operand.vmem [shape: f32[32,64], index: 0, kind: input, shape index: {}]
  %s1 = inlined_call_operand.vmem [shape: f32[1,64], index: 1, kind: input, shape index: {}]
  %s2 = inlined_call_operand.vmem [shape: f32[1,64], index: 2, kind: input, shape index: {}]
  %s3 = inlined_call_operand.hbm [shape: bf16[64,384], index: 3, kind: input, shape index: {}]
  %s4 = inlined_call_operand.vmem [shape: f32[1,384], index: 4, kind: input, shape index: {}]
  %s5 = inlined_call_operand.vmem [shape: bf16[32,128], index: 5, kind: output, shape index: {0}]
  %s6 = inlined_call_operand.vmem [shape: bf16[32,128], index: 6, kind: output, shape index: {1}]
  %s7 = inlined_call_operand.vmem [shape: f32[32,128], index: 7, kind: output, shape index: {2}]
  %8 = xla_tuple %s5, %s6, %s7
  %s9 = sld [smem:[#allocation0]]
  $region73: #{mamba3d_block_forward.3} parent=0
    _
  %s11 = ssub.s32 1, %s9
  %s12 = scalar_select 0, %s11, %s9
  $region1: #{mamba3d_block_forward.3} parent=0
    #allocation2 [shape = 'u8[49152]{0}', space=vmem, size = 0xc000, scoped, tag = 'input window, operand 3, single buffered']
    #allocation3 [shape = 's32[2]{0}', space=sflag, size = 0x8, scoped, tag = 'scoped memory for mamba3d_block_forward.3']
    %13 = vsyncpa [#allocation3], 0
    loop: start=0, step=1, limit=4
    $region2: #{mamba3d_block_forward.3} parent=1 // loop_pre_header
      _
    $region3: #{mamba3d_block_forward.3} parent=1 // loop_header
      %s15 = sphi 0, %s19
      %p16 = scmp.ge.s32.totalorder %s15, 4
      %s25 = sphi 0, %s27
      %s28 = sphi 0, %s25
      %s29 = sphi 0, %s28
      %s45 = sphi 0, %s29
      %s49 = sphi 0, %s49
      %s51 = sphi 0, %s49
      %s52 = sphi 0, %s51
      %s66 = sphi 0, %s52
      %s70 = sphi 0, %s70
      %s72 = sphi 0, %s70
      %s73 = sphi 0, %s72
      %s87 = sphi 0, %s73
      %s91 = sphi 0, %s91
      %s93 = sphi 0, %s91
      %s94 = sphi 0, %s93
      %s108 = sphi 0, %s94
      %s112 = sphi 0, %s112
      %s114 = sphi 0, %s112
      %s115 = sphi 0, %s114
      %s129 = sphi 0, %s115
      %s135 = sphi 0, %s137
      %s138 = sphi 0, %s135
      %s139 = sphi 0, %s138
      %s155 = sphi 0, %s139
      %s161 = sphi 0, %s163
      %s164 = sphi 0, %s161
      %s165 = sphi 0, %s164
      %s181 = sphi 0, %s165
      %s187 = sphi 0, %s189
      %s190 = sphi 0, %s187
      %s191 = sphi 0, %s190
      %s207 = sphi 0, %s191
    $region4: #{mamba3d_block_forward.3} parent=1 // loop_header_branch
      %18 = sbr.rel (%p16) target = $region8
    $region5: #{mamba3d_block_forward.3} parent=1 // loop_body
      %s20 = ssub.s32 %s15, 1
      %s21 = ssub.s32 %s15, 2
      %s22 = sadd.s32 %s15, 1
      %s23 = ssub.s32 %s15, %s22
      %p24 = scmp.eq.s32.totalorder %s23, 0
      %s26 = sadd.s32 %s25, 1
      %s27 = scalar_select %p24, %s25, %s26
      %p30 = pneg %p24
      %p31 = scmp.eq.s32.totalorder %s15, 1
      %p32 = por %p30, %p31
      %p33 = scmp.ne.s32.totalorder %s25, %s28
      %p34 = scmp.eq.s32.totalorder %s15, 0
      %p35 = por %p33, %p34
      %p36 = scmp.ne.s32.totalorder %s25, %s28
      %p37 = scmp.eq.s32.totalorder %s20, 1
      %p38 = por %p36, %p37
      %p39 = scmp.ne.s32.totalorder %s28, %s29
      %p40 = scmp.eq.s32.totalorder %s20, 0
      %p41 = por %p39, %p40
      %p42 = scmp.ne.s32.totalorder %s28, %s29
      %p43 = scmp.eq.s32.totalorder %s21, 1
      %p44 = por %p42, %p43
      %p46 = scmp.ne.s32.totalorder %s29, %s45
      %p47 = scmp.eq.s32.totalorder %s21, 0
      %p48 = por %p46, %p47
      %s50 = sadd.s32 %s49, 1
      %p53 = scmp.eq.s32.totalorder %s15, 1
      %p54 = scmp.ne.s32.totalorder %s49, %s51
      %p55 = scmp.eq.s32.totalorder %s15, 0
      %p56 = por %p54, %p55
      %p57 = scmp.ne.s32.totalorder %s49, %s51
      %p58 = scmp.eq.s32.totalorder %s20, 1
      %p59 = por %p57, %p58
      %p60 = scmp.ne.s32.totalorder %s51, %s52
      %p61 = scmp.eq.s32.totalorder %s20, 0
      %p62 = por %p60, %p61
      %p63 = scmp.ne.s32.totalorder %s51, %s52
      %p64 = scmp.eq.s32.totalorder %s21, 1
      %p65 = por %p63, %p64
      %p67 = scmp.ne.s32.totalorder %s52, %s66
      %p68 = scmp.eq.s32.totalorder %s21, 0
      %p69 = por %p67, %p68
      %s71 = sadd.s32 %s70, 1
      %p74 = scmp.eq.s32.totalorder %s15, 1
      %p75 = scmp.ne.s32.totalorder %s70, %s72
      %p76 = scmp.eq.s32.totalorder %s15, 0
      %p77 = por %p75, %p76
      %p78 = scmp.ne.s32.totalorder %s70, %s72
      %p79 = scmp.eq.s32.totalorder %s20, 1
      %p80 = por %p78, %p79
      %p81 = scmp.ne.s32.totalorder %s72, %s73
      %p82 = scmp.eq.s32.totalorder %s20, 0
      %p83 = por %p81, %p82
      %p84 = scmp.ne.s32.totalorder %s72, %s73
      %p85 = scmp.eq.s32.totalorder %s21, 1
      %p86 = por %p84, %p85
      %p88 = scmp.ne.s32.totalorder %s73, %s87
      %p89 = scmp.eq.s32.totalorder %s21, 0
      %p90 = por %p88, %p89
      %s92 = sadd.s32 %s91, 1
      %p95 = scmp.eq.s32.totalorder %s15, 1
      %p96 = scmp.ne.s32.totalorder %s91, %s93
      %p97 = scmp.eq.s32.totalorder %s15, 0
      %p98 = por %p96, %p97
      %p99 = scmp.ne.s32.totalorder %s91, %s93
      %p100 = scmp.eq.s32.totalorder %s20, 1
      %p101 = por %p99, %p100
      %p102 = scmp.ne.s32.totalorder %s93, %s94
      %p103 = scmp.eq.s32.totalorder %s20, 0
      %p104 = por %p102, %p103
      %p105 = scmp.ne.s32.totalorder %s93, %s94
      %p106 = scmp.eq.s32.totalorder %s21, 1
      %p107 = por %p105, %p106
      %p109 = scmp.ne.s32.totalorder %s94, %s108
      %p110 = scmp.eq.s32.totalorder %s21, 0
      %p111 = por %p109, %p110
      %s113 = sadd.s32 %s112, 1
      %p116 = scmp.eq.s32.totalorder %s15, 1
      %p117 = scmp.ne.s32.totalorder %s112, %s114
      %p118 = scmp.eq.s32.totalorder %s15, 0
      %p119 = por %p117, %p118
      %p120 = scmp.ne.s32.totalorder %s112, %s114
      %p121 = scmp.eq.s32.totalorder %s20, 1
      %p122 = por %p120, %p121
      %p123 = scmp.ne.s32.totalorder %s114, %s115
      %p124 = scmp.eq.s32.totalorder %s20, 0
      %p125 = por %p123, %p124
      %p126 = scmp.ne.s32.totalorder %s114, %s115
      %p127 = scmp.eq.s32.totalorder %s21, 1
      %p128 = por %p126, %p127
      %p130 = scmp.ne.s32.totalorder %s115, %s129
      %p131 = scmp.eq.s32.totalorder %s21, 0
      %p132 = por %p130, %p131
      %s133 = ssub.s32 %s15, %s22
      %p134 = scmp.eq.s32.totalorder %s133, 0
      %s136 = sadd.s32 %s135, 1
      %s137 = scalar_select %p134, %s135, %s136
      %p140 = pneg %p134
      %p141 = scmp.eq.s32.totalorder %s15, 1
      %p142 = por %p140, %p141
      %p143 = scmp.ne.s32.totalorder %s135, %s138
      %p144 = scmp.eq.s32.totalorder %s15, 0
      %p145 = por %p143, %p144
      %p146 = scmp.ne.s32.totalorder %s135, %s138
      %p147 = scmp.eq.s32.totalorder %s20, 1
      %p148 = por %p146, %p147
      %p149 = scmp.ne.s32.totalorder %s138, %s139
      %p150 = scmp.eq.s32.totalorder %s20, 0
      %p151 = por %p149, %p150
      %p152 = scmp.ne.s32.totalorder %s138, %s139
      %p153 = scmp.eq.s32.totalorder %s21, 1
      %p154 = por %p152, %p153
      %p156 = scmp.ne.s32.totalorder %s139, %s155
      %p157 = scmp.eq.s32.totalorder %s21, 0
      %p158 = por %p156, %p157
      %s159 = ssub.s32 %s15, %s22
      %p160 = scmp.eq.s32.totalorder %s159, 0
      %s162 = sadd.s32 %s161, 1
      %s163 = scalar_select %p160, %s161, %s162
      %p166 = pneg %p160
      %p167 = scmp.eq.s32.totalorder %s15, 1
      %p168 = por %p166, %p167
      %p169 = scmp.ne.s32.totalorder %s161, %s164
      %p170 = scmp.eq.s32.totalorder %s15, 0
      %p171 = por %p169, %p170
      %p172 = scmp.ne.s32.totalorder %s161, %s164
      %p173 = scmp.eq.s32.totalorder %s20, 1
      %p174 = por %p172, %p173
      %p175 = scmp.ne.s32.totalorder %s164, %s165
      %p176 = scmp.eq.s32.totalorder %s20, 0
      %p177 = por %p175, %p176
      %p178 = scmp.ne.s32.totalorder %s164, %s165
      %p179 = scmp.eq.s32.totalorder %s21, 1
      %p180 = por %p178, %p179
      %p182 = scmp.ne.s32.totalorder %s165, %s181
      %p183 = scmp.eq.s32.totalorder %s21, 0
      %p184 = por %p182, %p183
      %s185 = ssub.s32 %s15, %s22
      %p186 = scmp.eq.s32.totalorder %s185, 0
      %s188 = sadd.s32 %s187, 1
      %s189 = scalar_select %p186, %s187, %s188
      %p192 = pneg %p186
      %p193 = scmp.eq.s32.totalorder %s15, 1
      %p194 = por %p192, %p193
      %p195 = scmp.ne.s32.totalorder %s187, %s190
      %p196 = scmp.eq.s32.totalorder %s15, 0
      %p197 = por %p195, %p196
      %p198 = scmp.ne.s32.totalorder %s187, %s190
      %p199 = scmp.eq.s32.totalorder %s20, 1
      %p200 = por %p198, %p199
      %p201 = scmp.ne.s32.totalorder %s190, %s191
      %p202 = scmp.eq.s32.totalorder %s20, 0
      %p203 = por %p201, %p202
      %p204 = scmp.ne.s32.totalorder %s190, %s191
      %p205 = scmp.eq.s32.totalorder %s21, 1
      %p206 = por %p204, %p205
      %p208 = scmp.ne.s32.totalorder %s191, %s207
      %p209 = scmp.eq.s32.totalorder %s21, 0
      %p210 = por %p208, %p209
      %p211 = scmp.le.s32.totalorder 1, %s15
      %p212 = scmp.lt.s32.totalorder %s15, 3
      %p213 = pnand %p211, %p212
      %p214 = pneg %p213
      // Predicated region
      $region9: #{mamba3d_block_forward.3} parent=5 // pred_check
        _
      $region10: #{mamba3d_block_forward.3} parent=5 // pred_check_branch
        %216 = sbr.rel (%p213) target = $region12
      $region11: #{mamba3d_block_forward.3} parent=5 // pred_region
        %s217 = ssub.s32 %s15, 1
        // Predicated region
        $region13: #{mamba3d_block_forward.3} parent=11 // pred_check
          %p218 = pneg %p62
        $region14: #{mamba3d_block_forward.3} parent=11 // pred_check_branch
          %220 = sbr.rel (%p218) target = $region16
        $region15: #{mamba3d_block_forward.3} parent=11 // pred_region
          _
        $region16: #{mamba3d_block_forward.3} parent=11 // pred_fallthru
          _
        // Predicated region
        $region17: #{mamba3d_block_forward.3} parent=11 // pred_check
          %p221 = pneg %p83
        $region18: #{mamba3d_block_forward.3} parent=11 // pred_check_branch
          %223 = sbr.rel (%p221) target = $region20
        $region19: #{mamba3d_block_forward.3} parent=11 // pred_region
          _
        $region20: #{mamba3d_block_forward.3} parent=11 // pred_fallthru
          _
        // Predicated region
        $region21: #{mamba3d_block_forward.3} parent=11 // pred_check
          %p224 = pneg %p104
        $region22: #{mamba3d_block_forward.3} parent=11 // pred_check_branch
          %226 = sbr.rel (%p224) target = $region24
        $region23: #{mamba3d_block_forward.3} parent=11 // pred_region
          %s228 = ssub.s32 1536, 1536
          %229 = vsyncadd [#allocation3], %s228
          %s230 = sshll.u32 [#allocation2], 4
          %s231 = int_to_ptr.vmem [resolvable:$true] %s230
          %236 = dma.hbm_to_vmem [thread:$0]  %s3, 1536, %s231, [#allocation3], 192, 192, 12
        $region24: #{mamba3d_block_forward.3} parent=11 // pred_fallthru
          _
        // Predicated region
        $region25: #{mamba3d_block_forward.3} parent=11 // pred_check
          %p237 = pneg %p125
        $region26: #{mamba3d_block_forward.3} parent=11 // pred_check_branch
          %239 = sbr.rel (%p237) target = $region28
        $region27: #{mamba3d_block_forward.3} parent=11 // pred_region
          _
        $region28: #{mamba3d_block_forward.3} parent=11 // pred_fallthru
          _
      $region12: #{mamba3d_block_forward.3} parent=5 // pred_fallthru
        _
      %p240 = scmp.lt.s32.totalorder %s15, 2
      // Predicated region
      $region29: #{mamba3d_block_forward.3} parent=5 // pred_check
        %p241 = pneg %p240
      $region30: #{mamba3d_block_forward.3} parent=5 // pred_check_branch
        %243 = sbr.rel (%p241) target = $region32
      $region31: #{mamba3d_block_forward.3} parent=5 // pred_region
        // Predicated region
        $region33: #{mamba3d_block_forward.3} parent=31 // pred_check
          %p244 = pneg %p35
        $region34: #{mamba3d_block_forward.3} parent=31 // pred_check_branch
          %246 = sbr.rel (%p244) target = $region36
        $region35: #{mamba3d_block_forward.3} parent=31 // pred_region
          %s247 = smul.u32 2, %s15
          %p248 = scmp.lt.s32.totalorder %s247, 3
          %s249 = scalar_select %p248, %s247, 3
          %s250 = smul.addr %s249, 8
          %s251 = scalar_lea.vmem %s0, %s250
          %s252 = smul.u32 2, %s15
        $region36: #{mamba3d_block_forward.3} parent=31 // pred_fallthru
          _
      $region32: #{mamba3d_block_forward.3} parent=5 // pred_fallthru
        _
      %p253 = scmp.le.s32.totalorder 1, %s15
      %p254 = scmp.lt.s32.totalorder %s15, 3
      %p255 = pnand %p253, %p254
      %p256 = pneg %p255
      // Predicated region
      $region37: #{mamba3d_block_forward.3} parent=5 // pred_check
        _
      $region38: #{mamba3d_block_forward.3} parent=5 // pred_check_branch
        %258 = sbr.rel (%p255) target = $region40
      $region39: #{mamba3d_block_forward.3} parent=5 // pred_region
        %s259 = ssub.s32 %s15, 1
        // Predicated region
        $region41: #{mamba3d_block_forward.3} parent=39 // pred_check
          %p260 = pneg %p104
        $region42: #{mamba3d_block_forward.3} parent=39 // pred_check_branch
          %262 = sbr.rel (%p260) target = $region44
        $region43: #{mamba3d_block_forward.3} parent=39 // pred_region
          %263 = dma.done [#allocation3], 1536
        $region44: #{mamba3d_block_forward.3} parent=39 // pred_fallthru
          _
        %s264 = smul.u32 2, %s20
        %p265 = scmp.lt.s32.totalorder %s264, 3
        %s266 = scalar_select %p265, %s264, 3
        %s267 = smul.addr %s266, 8
        %s268 = scalar_lea.vmem %s0, %s267
        %p269 = pneg %p41
        %p270 = pneg %p38
        %p271 = pneg %p62
        %p272 = pneg %p59
        %p273 = pneg %p83
        %p274 = pneg %p80
        %p275 = pneg %p104
        %p276 = pneg %p101
        %p277 = pneg %p125
        %p278 = pneg %p122
        %p279 = pneg %p151
        %p280 = pneg %p148
        %s281 = smul.u32 2, %s20
        %p282 = scmp.lt.s32.totalorder %s281, 3
        %s283 = scalar_select %p282, %s281, 3
        %s284 = smul.addr %s283, 4
        %s285 = scalar_lea.vmem %s5, %s284
        %p286 = pneg %p177
        %p287 = pneg %p174
        %s288 = smul.u32 2, %s20
        %p289 = scmp.lt.s32.totalorder %s288, 3
        %s290 = scalar_select %p289, %s288, 3
        %s291 = smul.addr %s290, 4
        %s292 = scalar_lea.vmem %s6, %s291
        %p293 = pneg %p203
        %p294 = pneg %p200
        %s295 = smul.u32 2, %s20
        %p296 = scmp.lt.s32.totalorder %s295, 3
        %s297 = scalar_select %p296, %s295, 3
        %s298 = smul.addr %s297, 8
        %s299 = scalar_lea.vmem %s7, %s298
        %s300 = smul.u32 2, %s20
        %p301 = scmp.lt.s32.totalorder %s300, 3
        %s302 = scalar_select %p301, %s300, 3
        %s303 = smul.addr %s302, 8
        %s304 = scalar_lea.vmem %s0, %s303
        %s305 = smul.u32 2, %s20
        %s306 = smul.u32 2, %s20
        %p307 = scmp.lt.s32.totalorder %s306, 3
        %s308 = scalar_select %p307, %s306, 3
        %s309 = smul.addr %s308, 4
        %s310 = scalar_lea.vmem %s5, %s309
        %s311 = smul.u32 2, %s20
        %s312 = smul.u32 2, %s20
        %p313 = scmp.lt.s32.totalorder %s312, 3
        %s314 = scalar_select %p313, %s312, 3
        %s315 = smul.addr %s314, 4
        %s316 = scalar_lea.vmem %s6, %s315
        %s317 = smul.u32 2, %s20
        %s318 = smul.u32 2, %s20
        %p319 = scmp.lt.s32.totalorder %s318, 3
        %s320 = scalar_select %p319, %s318, 3
        %s321 = smul.addr %s320, 8
        %s322 = scalar_lea.vmem %s7, %s321
        %s323 = smul.u32 2, %s20
        %v325 = vld [vmem:[%s304] sm:$0xff]
        %v326 = vld [vmem:[%s304 + $0x8] sm:$0xff]
        %v327 = vld [vmem:[%s1] sm:$0x1]
        %v328 = vld [vmem:[%s2] sm:$0x1]
        %vm329 = vcmask 523264
        %v330 = vsel %vm329, %v325, 0.0
        %331 = vadd.xlane.f32.xlu0 %v330
        %v332 = vpop.xlane.xlu0 %331
        %v333 = vsel %vm329, %v326, 0.0
        %334 = vadd.xlane.f32.xlu0 %v333
        %v335 = vpop.xlane.xlu0 %334
        %v336 = vrcp.pop 64.0
        %v337 = vmul.f32 %v332, %v336
        %v338 = vmul.f32 %v335, %v336
        %v339 = vsub.f32 %v325, %v337
        %v340 = vsub.f32 %v326, %v338
        %v341 = vmul.f32 %v339, %v339
        %v342 = vmul.f32 %v340, %v340
        %v343 = vsel %vm329, %v341, 0.0
        %344 = vadd.xlane.f32.xlu0 %v343
        %v345 = vpop.xlane.xlu0 %344
        %v346 = vsel %vm329, %v342, 0.0
        %347 = vadd.xlane.f32.xlu0 %v346
        %v348 = vpop.xlane.xlu0 %347
        %v349 = vmul.f32 %v345, %v336
        %v350 = vmul.f32 %v348, %v336
        %v351 = vadd.f32 %v349, 1e-05
        %v352 = vadd.f32 %v350, 1e-05
        %v353 = vrsqrt.pop %v351
        %v354 = vrsqrt.pop %v352
        %v355 = vmul.f32 %v339, %v353
        %v356 = vmul.f32 %v340, %v354
        %v358 = vlaneseq
        %v359 = vshrl.u32 %v358, 7
        %v360 = vsub.s32 0, %v359
        %v361 = vrot.slane %v327, %v360
        %v363 = vmul.f32 %v355, %v361
        %v364 = vmul.f32 %v356, %v361
        %v366 = vlaneseq
        %v367 = vshrl.u32 %v366, 7
        %v368 = vsub.s32 0, %v367
        %v369 = vrot.slane %v328, %v368
        %v371 = vadd.f32 %v363, %v369
        %v372 = vadd.f32 %v364, %v369
        %v373 = vld [vmem:[#allocation2] sm:$0xff]
        %v374 = vld [vmem:[#allocation2 + $0x8] sm:$0xf]
        %v375 = vld [vmem:[#allocation2 + $0xc] sm:$0xff]
        %v376 = vld [vmem:[#allocation2 + $0x14] sm:$0xf]
        %v377 = vld [vmem:[#allocation2 + $0x18] sm:$0xff]
        %v378 = vld [vmem:[#allocation2 + $0x20] sm:$0xf]
        %v379 = vld [vmem:[#allocation2 + $0x24] sm:$0xff]
        %v380 = vld [vmem:[#allocation2 + $0x2c] sm:$0xf]
        %v381 = vld [vmem:[#allocation2 + $0x30] sm:$0xff]
        %v382 = vld [vmem:[#allocation2 + $0x38] sm:$0xf]
        %v383 = vld [vmem:[#allocation2 + $0x3c] sm:$0xff]
        %v384 = vld [vmem:[#allocation2 + $0x44] sm:$0xf]
        %v385 = vld [vmem:[#allocation2 + $0x48] sm:$0xff]
        %v386 = vld [vmem:[#allocation2 + $0x50] sm:$0xf]
        %v387 = vld [vmem:[#allocation2 + $0x54] sm:$0xff]
        %v388 = vld [vmem:[#allocation2 + $0x5c] sm:$0xf]
        %v389 = vpack.c.bf16 %v372, %v371
        %v390 = vld [vmem:[%s4] sm:$0x7]
        %v392 = vlaneseq
        %v393 = vshrl.u32 %v392, 7
        %v394 = vsub.s32 0, %v393
        %v395 = vrot.slane %v390, %v394
        %v396 = vlaneseq
        %v397 = vshrl.u32 %v396, 7
        %v398 = vsub.s32 1, %v397
        %v399 = vrot.slane %v390, %v398
        %v400 = vlaneseq
        %v401 = vshrl.u32 %v400, 7
        %v402 = vsub.s32 2, %v401
        %v403 = vrot.slane %v390, %v402
        %v423 = vunpack.c.l.b16 %v373
        %v424 = vunpack.c.h.b16 %v373
        %v425 = vunpack.c.l.b16 %v374
        %v426 = vunpack.c.l.b16 %v375
        %v427 = vunpack.c.h.b16 %v375
        %v428 = vunpack.c.l.b16 %v376
        %v429 = vunpack.c.l.b16 %v377
        %v430 = vunpack.c.h.b16 %v377
        %v431 = vunpack.c.l.b16 %v378
        %v432 = vunpack.c.l.b16 %v379
        %v433 = vunpack.c.h.b16 %v379
        %v434 = vunpack.c.l.b16 %v380
        %v435 = vunpack.c.l.b16 %v381
        %v436 = vunpack.c.h.b16 %v381
        %v437 = vunpack.c.l.b16 %v382
        %v438 = vunpack.c.l.b16 %v383
        %v439 = vunpack.c.h.b16 %v383
        %v440 = vunpack.c.l.b16 %v384
        %v441 = vunpack.c.l.b16 %v385
        %v442 = vunpack.c.h.b16 %v385
        %v443 = vunpack.c.l.b16 %v386
        %v444 = vunpack.c.l.b16 %v387
        %v445 = vunpack.c.h.b16 %v387
        %v446 = vunpack.c.l.b16 %v388
        %v447 = vpack.c.b16 %v426, %v423
        %v448 = vpack.c.b16 %v427, %v424
        %v449 = vpack.c.b16 %v428, %v425
        %v450 = vpack.c.b16 %v432, %v429
        %v451 = vpack.c.b16 %v433, %v430
        %v452 = vpack.c.b16 %v434, %v431
        %v453 = vpack.c.b16 %v438, %v435
        %v454 = vpack.c.b16 %v439, %v436
        %v455 = vpack.c.b16 %v440, %v437
        %v456 = vpack.c.b16 %v444, %v441
        %v457 = vpack.c.b16 %v445, %v442
        %v458 = vpack.c.b16 %v446, %v443
        %v472 = vsel %vm329, %v389, 0
        %474 = vmatprep.subr.bf16.mxu0 %v448
        %475 = vmatpush1.bf16.msra.mxu0 %v447
        %476 = vmatprep.subr.bf16.mxu0 %v451
        %477 = vmatpush1.bf16.msra.mxu0 %v450
        %478 = vmatprep.subr.bf16.mxu0 %v454
        %479 = vmatpush1.bf16.msra.mxu0 %v453
        %480 = vmatprep.subr.bf16.mxu0 %v457
        %481 = vmatpush1.bf16.msra.mxu0 %v456
        %482 = vmatprep.subr.bf16.mxu0 0
        %483 = vmatpush1.bf16.msra.mxu0 0
        %484 = vmatprep.subr.bf16.mxu0 0
        %485 = vmatpush1.bf16.msra.mxu0 0
        %486 = vmatprep.subr.bf16.mxu0 0
        %487 = vmatpush1.bf16.msra.mxu0 0
        %488 = vmatprep.subr.bf16.mxu0 0
        %489 = vmatpush1.bf16.msra.mxu0 0
        %490 = vmatprep.subr.bf16.mxu0 0
        %491 = vmatpush1.bf16.msra.mxu0 0
        %492 = vmatprep.subr.bf16.mxu0 0
        %493 = vmatpush1.bf16.msra.mxu0 0
        %494 = vmatprep.subr.bf16.mxu0 0
        %495 = vmatpush1.bf16.msra.mxu0 0
        %496 = vmatprep.subr.bf16.mxu0 0
        %497 = vmatpush1.bf16.msra.mxu0 0
        %498 = vmatprep.subr.bf16.mxu0 0
        %499 = vmatpush1.bf16.msra.mxu0 0
        %500 = vmatprep.subr.bf16.mxu0 0
        %501 = vmatpush1.bf16.msra.mxu0 0
        %502 = vmatprep.subr.bf16.mxu0 0
        %503 = vmatpush1.bf16.msra.mxu0 0
        %504 = vmatprep.subr.bf16.mxu0 0
        %505 = vmatpush1.bf16.msra.mxu0 0
        %506 = vmatprep.mubr.bf16.mxu0 0
        %507 = vmatmul.mubr.bf16.gmra.mrb[0].mxu0 %v472
        %v508 = vpop.f32.mrb[0].mxu0
        %v509 = vadd.f32 %v395, %v508
        %v510 = vpop.f32.mrb[0].mxu0
        %v511 = vadd.f32 %v399, %v510
        %v512 = vpop.f32.mrb[0].mxu0
        %v513 = vadd.f32 %v395, %v512
        %v514 = vpop.f32.mrb[0].mxu0
        %v515 = vadd.f32 %v399, %v514
        %516 = vdwg.mxu0
        %517 = vmatprep.subr.bf16.mxu0 0
        %518 = vmatpush1.bf16.msra.mxu0 %v449
        %519 = vmatprep.subr.bf16.mxu0 0
        %520 = vmatpush1.bf16.msra.mxu0 %v452
        %521 = vmatprep.subr.bf16.mxu0 0
        %522 = vmatpush1.bf16.msra.mxu0 %v455
        %523 = vmatprep.subr.bf16.mxu0 0
        %524 = vmatpush1.bf16.msra.mxu0 %v458
        %525 = vmatprep.subr.bf16.mxu0 0
        %526 = vmatpush1.bf16.msra.mxu0 0
        %527 = vmatprep.subr.bf16.mxu0 0
        %528 = vmatpush1.bf16.msra.mxu0 0
        %529 = vmatprep.subr.bf16.mxu0 0
        %530 = vmatpush1.bf16.msra.mxu0 0
        %531 = vmatprep.subr.bf16.mxu0 0
        %532 = vmatpush1.bf16.msra.mxu0 0
        %533 = vmatprep.subr.bf16.mxu0 0
        %534 = vmatpush1.bf16.msra.mxu0 0
        %535 = vmatprep.subr.bf16.mxu0 0
        %536 = vmatpush1.bf16.msra.mxu0 0
        %537 = vmatprep.subr.bf16.mxu0 0
        %538 = vmatpush1.bf16.msra.mxu0 0
        %539 = vmatprep.subr.bf16.mxu0 0
        %540 = vmatpush1.bf16.msra.mxu0 0
        %541 = vmatprep.subr.bf16.mxu0 0
        %542 = vmatpush1.bf16.msra.mxu0 0
        %543 = vmatprep.subr.bf16.mxu0 0
        %544 = vmatpush1.bf16.msra.mxu0 0
        %545 = vmatprep.subr.bf16.mxu0 0
        %546 = vmatpush1.bf16.msra.mxu0 0
        %547 = vmatprep.subr.bf16.mxu0 0
        %548 = vmatpush1.bf16.msra.mxu0 0
        %549 = vmatprep.mubr.bf16.mxu0 0
        %550 = vmatmul.mubr.bf16.gmra.mrb[0].mxu0 %v472
        %v551 = vpop.f32.mrb[0].mxu0
        %v552 = vadd.f32 %v403, %v551
        %v553 = vpop.f32.mrb[0].mxu0
        %v554 = vpop.f32.mrb[0].mxu0
        %v555 = vadd.f32 %v403, %v554
        %v556 = vpop.f32.mrb[0].mxu0
        %557 = vdwg.mxu0
        %v558 = vsub.f32 0.0, %v509
        %v559 = vsub.f32 0.0, %v513
        %v560 = vmul.f32 %v558, 1.442695
        %v561 = vpow.pop %v560
        %v562 = vmul.f32 %v559, 1.442695
        %v563 = vpow.pop %v562
        %v564 = vadd.f32 %v561, 1.0
        %v565 = vadd.f32 %v563, 1.0
        %v566 = vrcp.pop %v564
        %v567 = vmul.f32 %v509, %v566
        %v568 = vrcp.pop %v565
        %v569 = vmul.f32 %v513, %v568
        %v570 = vpack.c.bf16 %v569, %v567
        %v572 = vunpack.c.l.b16 %v570
        %v573 = vunpack.c.h.b16 %v570
        %v574 = vpack.c.b16 %v572, %v572
        %v575 = vpack.c.b16 %v573, %v573
        %578 = vst [vmem:[%s310] sm:$0xf] %v574
        %579 = vst [vmem:[%s310 + $0x4] sm:$0xf] %v575
        %v580 = vsub.f32 0.0, %v511
        %v581 = vsub.f32 0.0, %v515
        %v582 = vmul.f32 %v580, 1.442695
        %v583 = vpow.pop %v582
        %v584 = vmul.f32 %v581, 1.442695
        %v585 = vpow.pop %v584
        %v586 = vadd.f32 %v583, 1.0
        %v587 = vadd.f32 %v585, 1.0
        %v588 = vrcp.pop %v586
        %v589 = vmul.f32 %v511, %v588
        %v590 = vrcp.pop %v587
        %v591 = vmul.f32 %v515, %v590
        %v592 = vpack.c.bf16 %v591, %v589
        %v594 = vunpack.c.l.b16 %v592
        %v595 = vunpack.c.h.b16 %v592
        %v596 = vpack.c.b16 %v594, %v594
        %v597 = vpack.c.b16 %v595, %v595
        %600 = vst [vmem:[%s316] sm:$0xf] %v596
        %601 = vst [vmem:[%s316 + $0x4] sm:$0xf] %v597
        %v602 = vmax.f32 %v552, 0.0
        %v603 = vmax.f32 %v555, 0.0
        %v604 = vand.u32 2147483647, %v552
        %v605 = vand.u32 2147483647, %v555
        %v606 = vsub.f32 0.0, %v604
        %v607 = vsub.f32 0.0, %v605
        %v608 = vmul.f32 %v606, 1.442695
        %v609 = vpow.pop %v608
        %v610 = vmul.f32 %v607, 1.442695
        %v611 = vpow.pop %v610
        %v612 = vadd.f32 %v609, 1.0
        %v613 = vadd.f32 %v611, 1.0
        %v614 = vlog2.pop %v612
        %v615 = vmul.f32 %v614, 0.6931472
        %v616 = vlog2.pop %v613
        %v617 = vmul.f32 %v616, 0.6931472
        %v618 = vadd.f32 %v602, %v615
        %v619 = vadd.f32 %v603, %v617
        %vm620 = vcmp.gt.f32.partialorder %v552, 20.0
        %vm621 = vcmp.gt.f32.partialorder %v555, 20.0
        %v622 = vsel %vm620, %v552, %v618
        %v623 = vsel %vm621, %v555, %v619
        %624 = vst [vmem:[%s322] sm:$0xff] %v622
        %625 = vst [vmem:[%s322 + $0x8] sm:$0xff] %v623
        %s626 = smul.u32 2, %s20
        %p627 = scmp.lt.s32.totalorder %s626, 3
        %s628 = scalar_select %p627, %s626, 3
        %s629 = smul.addr %s628, 4
        %s630 = scalar_lea.vmem %s5, %s629
        %s631 = smul.u32 2, %s20
        %p632 = scmp.lt.s32.totalorder %s631, 3
        %s633 = scalar_select %p632, %s631, 3
        %s634 = smul.addr %s633, 4
        %s635 = scalar_lea.vmem %s6, %s634
        %s636 = smul.u32 2, %s20
        %p637 = scmp.lt.s32.totalorder %s636, 3
        %s638 = scalar_select %p637, %s636, 3
        %s639 = smul.addr %s638, 8
        %s640 = scalar_lea.vmem %s7, %s639
        // Predicated region
        $region45: #{mamba3d_block_forward.3} parent=39 // pred_check
          %p641 = pneg %p148
        $region46: #{mamba3d_block_forward.3} parent=39 // pred_check_branch
          %643 = sbr.rel (%p641) target = $region48
        $region47: #{mamba3d_block_forward.3} parent=39 // pred_region
          %s644 = smul.u32 2, %s20
        $region48: #{mamba3d_block_forward.3} parent=39 // pred_fallthru
          _
        // Predicated region
        $region49: #{mamba3d_block_forward.3} parent=39 // pred_check
          %p645 = pneg %p174
        $region50: #{mamba3d_block_forward.3} parent=39 // pred_check_branch
          %647 = sbr.rel (%p645) target = $region52
        $region51: #{mamba3d_block_forward.3} parent=39 // pred_region
          %s648 = smul.u32 2, %s20
        $region52: #{mamba3d_block_forward.3} parent=39 // pred_fallthru
          _
        // Predicated region
        $region53: #{mamba3d_block_forward.3} parent=39 // pred_check
          %p649 = pneg %p200
        $region54: #{mamba3d_block_forward.3} parent=39 // pred_check_branch
          %651 = sbr.rel (%p649) target = $region56
        $region55: #{mamba3d_block_forward.3} parent=39 // pred_region
          %s652 = smul.u32 2, %s20
        $region56: #{mamba3d_block_forward.3} parent=39 // pred_fallthru
          _
      $region40: #{mamba3d_block_forward.3} parent=5 // pred_fallthru
        _
      %p653 = scmp.le.s32.totalorder 2, %s15
      // Predicated region
      $region57: #{mamba3d_block_forward.3} parent=5 // pred_check
        %p654 = pneg %p653
      $region58: #{mamba3d_block_forward.3} parent=5 // pred_check_branch
        %656 = sbr.rel (%p654) target = $region60
      $region59: #{mamba3d_block_forward.3} parent=5 // pred_region
        %s657 = ssub.s32 %s15, 2
        // Predicated region
        $region61: #{mamba3d_block_forward.3} parent=59 // pred_check
          %p658 = pneg %p154
        $region62: #{mamba3d_block_forward.3} parent=59 // pred_check_branch
          %660 = sbr.rel (%p658) target = $region64
        $region63: #{mamba3d_block_forward.3} parent=59 // pred_region
          %s661 = smul.u32 2, %s21
          %p662 = scmp.lt.s32.totalorder %s661, 3
          %s663 = scalar_select %p662, %s661, 3
          %s664 = smul.addr %s663, 4
          %s665 = scalar_lea.vmem %s5, %s664
        $region64: #{mamba3d_block_forward.3} parent=59 // pred_fallthru
          _
        // Predicated region
        $region65: #{mamba3d_block_forward.3} parent=59 // pred_check
          %p666 = pneg %p180
        $region66: #{mamba3d_block_forward.3} parent=59 // pred_check_branch
          %668 = sbr.rel (%p666) target = $region68
        $region67: #{mamba3d_block_forward.3} parent=59 // pred_region
          %s669 = smul.u32 2, %s21
          %p670 = scmp.lt.s32.totalorder %s669, 3
          %s671 = scalar_select %p670, %s669, 3
          %s672 = smul.addr %s671, 4
          %s673 = scalar_lea.vmem %s6, %s672
        $region68: #{mamba3d_block_forward.3} parent=59 // pred_fallthru
          _
        // Predicated region
        $region69: #{mamba3d_block_forward.3} parent=59 // pred_check
          %p674 = pneg %p206
        $region70: #{mamba3d_block_forward.3} parent=59 // pred_check_branch
          %676 = sbr.rel (%p674) target = $region72
        $region71: #{mamba3d_block_forward.3} parent=59 // pred_region
          %s677 = smul.u32 2, %s21
          %p678 = scmp.lt.s32.totalorder %s677, 3
          %s679 = scalar_select %p678, %s677, 3
          %s680 = smul.addr %s679, 8
          %s681 = scalar_lea.vmem %s7, %s680
        $region72: #{mamba3d_block_forward.3} parent=59 // pred_fallthru
          _
      $region60: #{mamba3d_block_forward.3} parent=5 // pred_fallthru
        _
    $region6: #{mamba3d_block_forward.3} parent=1 // loop_footer
      %s19 = sadd.s32 1, %s15
    $region7: #{mamba3d_block_forward.3} parent=1 // loop_footer_branch
      %14 = sbr.rel target = $region3
    $region8: #{mamba3d_block_forward.3} parent=1 // loop_exit
      _
    %682 = vsyncpa [#allocation3], 1
    %s683 = scalar_lea.sflag [#allocation3], 1
    %684 = vsyncpa %s683, 1

// kernel: mamba3d_block_forward.4
$region0: #{mamba3d_block_forward.4}
  #allocation0 [shape = 'u32[]', space=smem, size = 0x4, offset = 0x4, fixed_abs, tag = 'smem constant byte address 0x4 - core index']
  #allocation1 [shape = 'u32[144,128]{1,0:T(1,128)}', space=vmem, size = 0x12000, scoped, tag = 'internal scratch']
  #allocation2 [shape = 'f32[1,16,8,128]{3,2,1,0:T(8,128)}', space=vmem, size = 0x10000, scoped, tag = 'scratch operand']
  #allocation3 [shape = 'f32[1,16,128]{2,1,0:T(8,128)}', space=vmem, size = 0x2000, scoped, tag = 'scratch operand']
  %s0 = inlined_call_operand.vmem [shape: bf16[2,16,128], index: 0, kind: input, shape index: {}]
  %s1 = inlined_call_operand.vmem [shape: f32[2,16,128], index: 1, kind: input, shape index: {}]
  %s2 = inlined_call_operand.vmem [shape: bf16[2,16,128], index: 2, kind: input, shape index: {}]
  %s3 = inlined_call_operand.vmem [shape: f32[8,128], index: 3, kind: input, shape index: {}]
  %s4 = inlined_call_operand.vmem [shape: f32[1,128], index: 4, kind: input, shape index: {}]
  %s5 = inlined_call_operand.vmem [shape: bf16[128,64], index: 5, kind: input, shape index: {}]
  %s6 = inlined_call_operand.vmem [shape: f32[1,64], index: 6, kind: input, shape index: {}]
  %s7 = inlined_call_operand.vmem [shape: f32[2,16,64], index: 7, kind: output, shape index: {}]
  %s8 = sld [smem:[#allocation0]]
  $region61: #{mamba3d_block_forward.4} parent=0
    _
  %s10 = ssub.s32 1, %s8
  %s11 = scalar_select 0, %s10, %s8
  loop: start=0, step=1, limit=4
  $region2: #{mamba3d_block_forward.4} parent=0 // loop_pre_header
    _
  $region3: #{mamba3d_block_forward.4} parent=0 // loop_header
    %s13 = sphi 0, %s17
    %p14 = scmp.ge.s32.totalorder %s13, 4
    %s20 = sphi 0, %s32
    %s21 = sphi 0, %s28
    %s22 = sphi 0, %s20
    %s23 = sphi 0, %s21
    %s24 = sphi 0, %s22
    %s25 = sphi 0, %s23
    %s37 = sphi 0, %s39
    %s40 = sphi 0, %s37
    %s41 = sphi 0, %s40
    %s57 = sphi 0, %s41
    %s65 = sphi 0, %s67
    %s68 = sphi 0, %s65
    %s69 = sphi 0, %s68
    %s85 = sphi 0, %s69
    %s93 = sphi 0, %s95
    %s96 = sphi 0, %s93
    %s97 = sphi 0, %s96
    %s113 = sphi 0, %s97
    %s117 = sphi 0, %s117
    %s119 = sphi 0, %s117
    %s120 = sphi 0, %s119
    %s134 = sphi 0, %s120
    %s138 = sphi 0, %s138
    %s140 = sphi 0, %s138
    %s141 = sphi 0, %s140
    %s155 = sphi 0, %s141
    %s159 = sphi 0, %s159
    %s161 = sphi 0, %s159
    %s162 = sphi 0, %s161
    %s176 = sphi 0, %s162
    %s180 = sphi 0, %s180
    %s182 = sphi 0, %s180
    %s183 = sphi 0, %s182
    %s197 = sphi 0, %s183
    %s205 = sphi 0, %s207
    %s208 = sphi 0, %s205
    %s209 = sphi 0, %s208
    %s225 = sphi 0, %s209
  $region4: #{mamba3d_block_forward.4} parent=0 // loop_header_branch
    %16 = sbr.rel (%p14) target = $region8
  $region5: #{mamba3d_block_forward.4} parent=0 // loop_body
    %s18 = ssub.s32 %s13, 1
    %s19 = ssub.s32 %s13, 2
    %s26 = sadd.s32 1, %s21
    %p27 = scmp.ge.s32.totalorder %s26, 1
    %s28 = scalar_select %p27, 0, %s26
    %s29 = sadd.s32 1, %s20
    %s30 = scalar_select %p27, %s29, %s20
    %p31 = scmp.ge.s32.totalorder %s30, 2
    %s32 = scalar_select %p31, 0, %s30
    %s33 = ssub.s32 %s20, %s32
    %s34 = ssub.s32 %s21, %s28
    %s35 = sor.u32 %s33, %s34
    %p36 = scmp.eq.s32.totalorder %s35, 0
    %s38 = sadd.s32 %s37, 1
    %s39 = scalar_select %p36, %s37, %s38
    %p42 = pneg %p36
    %p43 = scmp.eq.s32.totalorder %s13, 1
    %p44 = por %p42, %p43
    %p45 = scmp.ne.s32.totalorder %s37, %s40
    %p46 = scmp.eq.s32.totalorder %s13, 0
    %p47 = por %p45, %p46
    %p48 = scmp.ne.s32.totalorder %s37, %s40
    %p49 = scmp.eq.s32.totalorder %s18, 1
    %p50 = por %p48, %p49
    %p51 = scmp.ne.s32.totalorder %s40, %s41
    %p52 = scmp.eq.s32.totalorder %s18, 0
    %p53 = por %p51, %p52
    %p54 = scmp.ne.s32.totalorder %s40, %s41
    %p55 = scmp.eq.s32.totalorder %s19, 1
    %p56 = por %p54, %p55
    %p58 = scmp.ne.s32.totalorder %s41, %s57
    %p59 = scmp.eq.s32.totalorder %s19, 0
    %p60 = por %p58, %p59
    %s61 = ssub.s32 %s20, %s32
    %s62 = ssub.s32 %s21, %s28
    %s63 = sor.u32 %s61, %s62
    %p64 = scmp.eq.s32.totalorder %s63, 0
    %s66 = sadd.s32 %s65, 1
    %s67 = scalar_select %p64, %s65, %s66
    %p70 = pneg %p64
    %p71 = scmp.eq.s32.totalorder %s13, 1
    %p72 = por %p70, %p71
    %p73 = scmp.ne.s32.totalorder %s65, %s68
    %p74 = scmp.eq.s32.totalorder %s13, 0
    %p75 = por %p73, %p74
    %p76 = scmp.ne.s32.totalorder %s65, %s68
    %p77 = scmp.eq.s32.totalorder %s18, 1
    %p78 = por %p76, %p77
    %p79 = scmp.ne.s32.totalorder %s68, %s69
    %p80 = scmp.eq.s32.totalorder %s18, 0
    %p81 = por %p79, %p80
    %p82 = scmp.ne.s32.totalorder %s68, %s69
    %p83 = scmp.eq.s32.totalorder %s19, 1
    %p84 = por %p82, %p83
    %p86 = scmp.ne.s32.totalorder %s69, %s85
    %p87 = scmp.eq.s32.totalorder %s19, 0
    %p88 = por %p86, %p87
    %s89 = ssub.s32 %s20, %s32
    %s90 = ssub.s32 %s21, %s28
    %s91 = sor.u32 %s89, %s90
    %p92 = scmp.eq.s32.totalorder %s91, 0
    %s94 = sadd.s32 %s93, 1
    %s95 = scalar_select %p92, %s93, %s94
    %p98 = pneg %p92
    %p99 = scmp.eq.s32.totalorder %s13, 1
    %p100 = por %p98, %p99
    %p101 = scmp.ne.s32.totalorder %s93, %s96
    %p102 = scmp.eq.s32.totalorder %s13, 0
    %p103 = por %p101, %p102
    %p104 = scmp.ne.s32.totalorder %s93, %s96
    %p105 = scmp.eq.s32.totalorder %s18, 1
    %p106 = por %p104, %p105
    %p107 = scmp.ne.s32.totalorder %s96, %s97
    %p108 = scmp.eq.s32.totalorder %s18, 0
    %p109 = por %p107, %p108
    %p110 = scmp.ne.s32.totalorder %s96, %s97
    %p111 = scmp.eq.s32.totalorder %s19, 1
    %p112 = por %p110, %p111
    %p114 = scmp.ne.s32.totalorder %s97, %s113
    %p115 = scmp.eq.s32.totalorder %s19, 0
    %p116 = por %p114, %p115
    %s118 = sadd.s32 %s117, 1
    %p121 = scmp.eq.s32.totalorder %s13, 1
    %p122 = scmp.ne.s32.totalorder %s117, %s119
    %p123 = scmp.eq.s32.totalorder %s13, 0
    %p124 = por %p122, %p123
    %p125 = scmp.ne.s32.totalorder %s117, %s119
    %p126 = scmp.eq.s32.totalorder %s18, 1
    %p127 = por %p125, %p126
    %p128 = scmp.ne.s32.totalorder %s119, %s120
    %p129 = scmp.eq.s32.totalorder %s18, 0
    %p130 = por %p128, %p129
    %p131 = scmp.ne.s32.totalorder %s119, %s120
    %p132 = scmp.eq.s32.totalorder %s19, 1
    %p133 = por %p131, %p132
    %p135 = scmp.ne.s32.totalorder %s120, %s134
    %p136 = scmp.eq.s32.totalorder %s19, 0
    %p137 = por %p135, %p136
    %s139 = sadd.s32 %s138, 1
    %p142 = scmp.eq.s32.totalorder %s13, 1
    %p143 = scmp.ne.s32.totalorder %s138, %s140
    %p144 = scmp.eq.s32.totalorder %s13, 0
    %p145 = por %p143, %p144
    %p146 = scmp.ne.s32.totalorder %s138, %s140
    %p147 = scmp.eq.s32.totalorder %s18, 1
    %p148 = por %p146, %p147
    %p149 = scmp.ne.s32.totalorder %s140, %s141
    %p150 = scmp.eq.s32.totalorder %s18, 0
    %p151 = por %p149, %p150
    %p152 = scmp.ne.s32.totalorder %s140, %s141
    %p153 = scmp.eq.s32.totalorder %s19, 1
    %p154 = por %p152, %p153
    %p156 = scmp.ne.s32.totalorder %s141, %s155
    %p157 = scmp.eq.s32.totalorder %s19, 0
    %p158 = por %p156, %p157
    %s160 = sadd.s32 %s159, 1
    %p163 = scmp.eq.s32.totalorder %s13, 1
    %p164 = scmp.ne.s32.totalorder %s159, %s161
    %p165 = scmp.eq.s32.totalorder %s13, 0
    %p166 = por %p164, %p165
    %p167 = scmp.ne.s32.totalorder %s159, %s161
    %p168 = scmp.eq.s32.totalorder %s18, 1
    %p169 = por %p167, %p168
    %p170 = scmp.ne.s32.totalorder %s161, %s162
    %p171 = scmp.eq.s32.totalorder %s18, 0
    %p172 = por %p170, %p171
    %p173 = scmp.ne.s32.totalorder %s161, %s162
    %p174 = scmp.eq.s32.totalorder %s19, 1
    %p175 = por %p173, %p174
    %p177 = scmp.ne.s32.totalorder %s162, %s176
    %p178 = scmp.eq.s32.totalorder %s19, 0
    %p179 = por %p177, %p178
    %s181 = sadd.s32 %s180, 1
    %p184 = scmp.eq.s32.totalorder %s13, 1
    %p185 = scmp.ne.s32.totalorder %s180, %s182
    %p186 = scmp.eq.s32.totalorder %s13, 0
    %p187 = por %p185, %p186
    %p188 = scmp.ne.s32.totalorder %s180, %s182
    %p189 = scmp.eq.s32.totalorder %s18, 1
    %p190 = por %p188, %p189
    %p191 = scmp.ne.s32.totalorder %s182, %s183
    %p192 = scmp.eq.s32.totalorder %s18, 0
    %p193 = por %p191, %p192
    %p194 = scmp.ne.s32.totalorder %s182, %s183
    %p195 = scmp.eq.s32.totalorder %s19, 1
    %p196 = por %p194, %p195
    %p198 = scmp.ne.s32.totalorder %s183, %s197
    %p199 = scmp.eq.s32.totalorder %s19, 0
    %p200 = por %p198, %p199
    %s201 = ssub.s32 %s20, %s32
    %s202 = ssub.s32 %s21, %s28
    %s203 = sor.u32 %s201, %s202
    %p204 = scmp.eq.s32.totalorder %s203, 0
    %s206 = sadd.s32 %s205, 1
    %s207 = scalar_select %p204, %s205, %s206
    %p210 = pneg %p204
    %p211 = scmp.eq.s32.totalorder %s13, 1
    %p212 = por %p210, %p211
    %p213 = scmp.ne.s32.totalorder %s205, %s208
    %p214 = scmp.eq.s32.totalorder %s13, 0
    %p215 = por %p213, %p214
    %p216 = scmp.ne.s32.totalorder %s205, %s208
    %p217 = scmp.eq.s32.totalorder %s18, 1
    %p218 = por %p216, %p217
    %p219 = scmp.ne.s32.totalorder %s208, %s209
    %p220 = scmp.eq.s32.totalorder %s18, 0
    %p221 = por %p219, %p220
    %p222 = scmp.ne.s32.totalorder %s208, %s209
    %p223 = scmp.eq.s32.totalorder %s19, 1
    %p224 = por %p222, %p223
    %p226 = scmp.ne.s32.totalorder %s209, %s225
    %p227 = scmp.eq.s32.totalorder %s19, 0
    %p228 = por %p226, %p227
    %p229 = scmp.le.s32.totalorder 1, %s13
    %p230 = scmp.lt.s32.totalorder %s13, 3
    %p231 = pnand %p229, %p230
    %p232 = pneg %p231
    // Predicated region
    $region9: #{mamba3d_block_forward.4} parent=5 // pred_check
      _
    $region10: #{mamba3d_block_forward.4} parent=5 // pred_check_branch
      %234 = sbr.rel (%p231) target = $region12
    $region11: #{mamba3d_block_forward.4} parent=5 // pred_region
      %s235 = ssub.s32 %s13, 1
      // Predicated region
      $region13: #{mamba3d_block_forward.4} parent=11 // pred_check
        %p236 = pneg %p130
      $region14: #{mamba3d_block_forward.4} parent=11 // pred_check_branch
        %238 = sbr.rel (%p236) target = $region16
      $region15: #{mamba3d_block_forward.4} parent=11 // pred_region
        _
      $region16: #{mamba3d_block_forward.4} parent=11 // pred_fallthru
        _
      // Predicated region
      $region17: #{mamba3d_block_forward.4} parent=11 // pred_check
        %p239 = pneg %p151
      $region18: #{mamba3d_block_forward.4} parent=11 // pred_check_branch
        %241 = sbr.rel (%p239) target = $region20
      $region19: #{mamba3d_block_forward.4} parent=11 // pred_region
        _
      $region20: #{mamba3d_block_forward.4} parent=11 // pred_fallthru
        _
      // Predicated region
      $region21: #{mamba3d_block_forward.4} parent=11 // pred_check
        %p242 = pneg %p172
      $region22: #{mamba3d_block_forward.4} parent=11 // pred_check_branch
        %244 = sbr.rel (%p242) target = $region24
      $region23: #{mamba3d_block_forward.4} parent=11 // pred_region
        _
      $region24: #{mamba3d_block_forward.4} parent=11 // pred_fallthru
        _
      // Predicated region
      $region25: #{mamba3d_block_forward.4} parent=11 // pred_check
        %p245 = pneg %p193
      $region26: #{mamba3d_block_forward.4} parent=11 // pred_check_branch
        %247 = sbr.rel (%p245) target = $region28
      $region27: #{mamba3d_block_forward.4} parent=11 // pred_region
        _
      $region28: #{mamba3d_block_forward.4} parent=11 // pred_fallthru
        _
    $region12: #{mamba3d_block_forward.4} parent=5 // pred_fallthru
      _
    %p248 = scmp.lt.s32.totalorder %s13, 2
    // Predicated region
    $region29: #{mamba3d_block_forward.4} parent=5 // pred_check
      %p249 = pneg %p248
    $region30: #{mamba3d_block_forward.4} parent=5 // pred_check_branch
      %251 = sbr.rel (%p249) target = $region32
    $region31: #{mamba3d_block_forward.4} parent=5 // pred_region
      // Predicated region
      $region33: #{mamba3d_block_forward.4} parent=31 // pred_check
        %p252 = pneg %p47
      $region34: #{mamba3d_block_forward.4} parent=31 // pred_check_branch
        %254 = sbr.rel (%p252) target = $region36
      $region35: #{mamba3d_block_forward.4} parent=31 // pred_region
        %s255 = smul.u32 2, %s21
        %p256 = scmp.lt.s32.totalorder %s20, 1
        %s257 = scalar_select %p256, %s20, 1
        %p258 = scmp.lt.s32.totalorder %s255, 1
        %s259 = scalar_select %p258, %s255, 1
        %s260 = smul.addr %s257, 2
        %s261 = sadd.s32 %s259, %s260
        %s262 = smul.addr %s261, 4
        %s263 = scalar_lea.vmem %s0, %s262
        %s264 = smul.u32 2, %s21
      $region36: #{mamba3d_block_forward.4} parent=31 // pred_fallthru
        _
      // Predicated region
      $region37: #{mamba3d_block_forward.4} parent=31 // pred_check
        %p265 = pneg %p75
      $region38: #{mamba3d_block_forward.4} parent=31 // pred_check_branch
        %267 = sbr.rel (%p265) target = $region40
      $region39: #{mamba3d_block_forward.4} parent=31 // pred_region
        %s268 = smul.u32 2, %s21
        %p269 = scmp.lt.s32.totalorder %s20, 1
        %s270 = scalar_select %p269, %s20, 1
        %p271 = scmp.lt.s32.totalorder %s268, 1
        %s272 = scalar_select %p271, %s268, 1
        %s273 = smul.addr %s270, 2
        %s274 = sadd.s32 %s272, %s273
        %s275 = smul.addr %s274, 8
        %s276 = scalar_lea.vmem %s1, %s275
        %s277 = smul.u32 2, %s21
      $region40: #{mamba3d_block_forward.4} parent=31 // pred_fallthru
        _
      // Predicated region
      $region41: #{mamba3d_block_forward.4} parent=31 // pred_check
        %p278 = pneg %p103
      $region42: #{mamba3d_block_forward.4} parent=31 // pred_check_branch
        %280 = sbr.rel (%p278) target = $region44
      $region43: #{mamba3d_block_forward.4} parent=31 // pred_region
        %s281 = smul.u32 2, %s21
        %p282 = scmp.lt.s32.totalorder %s20, 1
        %s283 = scalar_select %p282, %s20, 1
        %p284 = scmp.lt.s32.totalorder %s281, 1
        %s285 = scalar_select %p284, %s281, 1
        %s286 = smul.addr %s283, 2
        %s287 = sadd.s32 %s285, %s286
        %s288 = smul.addr %s287, 4
        %s289 = scalar_lea.vmem %s2, %s288
        %s290 = smul.u32 2, %s21
      $region44: #{mamba3d_block_forward.4} parent=31 // pred_fallthru
        _
    $region32: #{mamba3d_block_forward.4} parent=5 // pred_fallthru
      _
    %p291 = scmp.le.s32.totalorder 1, %s13
    %p292 = scmp.lt.s32.totalorder %s13, 3
    %p293 = pnand %p291, %p292
    %p294 = pneg %p293
    // Predicated region
    $region45: #{mamba3d_block_forward.4} parent=5 // pred_check
      _
    $region46: #{mamba3d_block_forward.4} parent=5 // pred_check_branch
      %296 = sbr.rel (%p293) target = $region48
    $region47: #{mamba3d_block_forward.4} parent=5 // pred_region
      %s297 = ssub.s32 %s13, 1
      %s298 = smul.u32 2, %s23
      %p299 = scmp.lt.s32.totalorder %s22, 1
      %s300 = scalar_select %p299, %s22, 1
      %p301 = scmp.lt.s32.totalorder %s298, 1
      %s302 = scalar_select %p301, %s298, 1
      %s303 = smul.addr %s300, 2
      %s304 = sadd.s32 %s302, %s303
      %s305 = smul.addr %s304, 4
      %s306 = scalar_lea.vmem %s0, %s305
      %p307 = pneg %p53
      %p308 = pneg %p50
      %s309 = smul.u32 2, %s23
      %p310 = scmp.lt.s32.totalorder %s22, 1
      %s311 = scalar_select %p310, %s22, 1
      %p312 = scmp.lt.s32.totalorder %s309, 1
      %s313 = scalar_select %p312, %s309, 1
      %s314 = smul.addr %s311, 2
      %s315 = sadd.s32 %s313, %s314
      %s316 = smul.addr %s315, 8
      %s317 = scalar_lea.vmem %s1, %s316
      %p318 = pneg %p81
      %p319 = pneg %p78
      %s320 = smul.u32 2, %s23
      %p321 = scmp.lt.s32.totalorder %s22, 1
      %s322 = scalar_select %p321, %s22, 1
      %p323 = scmp.lt.s32.totalorder %s320, 1
      %s324 = scalar_select %p323, %s320, 1
      %s325 = smul.addr %s322, 2
      %s326 = sadd.s32 %s324, %s325
      %s327 = smul.addr %s326, 4
      %s328 = scalar_lea.vmem %s2, %s327
      %p329 = pneg %p109
      %p330 = pneg %p106
      %p331 = pneg %p130
      %p332 = pneg %p127
      %p333 = pneg %p151
      %p334 = pneg %p148
      %p335 = pneg %p172
      %p336 = pneg %p169
      %p337 = pneg %p193
      %p338 = pneg %p190
      %p339 = pneg %p221
      %p340 = pneg %p218
      %s341 = smul.u32 2, %s23
      %p342 = scmp.lt.s32.totalorder %s22, 1
      %s343 = scalar_select %p342, %s22, 1
      %p344 = scmp.lt.s32.totalorder %s341, 1
      %s345 = scalar_select %p344, %s341, 1
      %s346 = smul.addr %s343, 2
      %s347 = sadd.s32 %s345, %s346
      %s348 = smul.addr %s347, 8
      %s349 = scalar_lea.vmem %s7, %s348
      %s350 = smul.u32 2, %s23
      %p351 = scmp.lt.s32.totalorder %s22, 1
      %s352 = scalar_select %p351, %s22, 1
      %p353 = scmp.lt.s32.totalorder %s350, 1
      %s354 = scalar_select %p353, %s350, 1
      %s355 = smul.addr %s352, 2
      %s356 = sadd.s32 %s354, %s355
      %s357 = smul.addr %s356, 4
      %s358 = scalar_lea.vmem %s0, %s357
      %s359 = smul.u32 2, %s23
      %s360 = smul.u32 2, %s23
      %p361 = scmp.lt.s32.totalorder %s22, 1
      %s362 = scalar_select %p361, %s22, 1
      %p363 = scmp.lt.s32.totalorder %s360, 1
      %s364 = scalar_select %p363, %s360, 1
      %s365 = smul.addr %s362, 2
      %s366 = sadd.s32 %s364, %s365
      %s367 = smul.addr %s366, 8
      %s368 = scalar_lea.vmem %s1, %s367
      %s369 = smul.u32 2, %s23
      %s370 = smul.u32 2, %s23
      %p371 = scmp.lt.s32.totalorder %s22, 1
      %s372 = scalar_select %p371, %s22, 1
      %p373 = scmp.lt.s32.totalorder %s370, 1
      %s374 = scalar_select %p373, %s370, 1
      %s375 = smul.addr %s372, 2
      %s376 = sadd.s32 %s374, %s375
      %s377 = smul.addr %s376, 4
      %s378 = scalar_lea.vmem %s2, %s377
      %s379 = smul.u32 2, %s23
      %s380 = smul.u32 2, %s23
      %p381 = scmp.lt.s32.totalorder %s22, 1
      %s382 = scalar_select %p381, %s22, 1
      %p383 = scmp.lt.s32.totalorder %s380, 1
      %s384 = scalar_select %p383, %s380, 1
      %s385 = smul.addr %s382, 2
      %s386 = sadd.s32 %s384, %s385
      %s387 = smul.addr %s386, 8
      %s388 = scalar_lea.vmem %s7, %s387
      %s389 = smul.u32 2, %s23
      %v391 = vld [vmem:[%s3] sm:$0xff]
      %v392 = vld [vmem:[%s368] sm:$0xff]
      %v393 = vld [vmem:[%s368 + $0x8] sm:$0xff]
      %v396 = vcombine.high %v392, %v392
      %v398 = vunpack.c.l.s4 1966171168
      %v399 = vunpack.c.0.s8 %v398
      %v400 = vlaneseq
      %v401 = vshrl.u32 %v400, 7
      %v402 = vsub.s32 %v399, %v401
      %v403 = vrot.slane %v392, %v402
      %v405 = vunpack.c.l.s4 1966171168
      %v406 = vunpack.c.0.s8 %v405
      %v407 = vlaneseq
      %v408 = vshrl.u32 %v407, 7
      %v409 = vsub.s32 %v406, %v408
      %v410 = vrot.slane %v396, %v409
      %v411 = vcombine.high %v403, %v403
      %v412 = vcombine.high %v410, %v410
      %v414 = vunpack.c.l.s4 1966171168
      %v415 = vunpack.c.0.s8 %v414
      %v416 = vlaneseq
      %v417 = vshrl.u32 %v416, 7
      %v418 = vsub.s32 %v415, %v417
      %v419 = vrot.slane %v403, %v418
      %v421 = vunpack.c.l.s4 1966171168
      %v422 = vunpack.c.0.s8 %v421
      %v423 = vlaneseq
      %v424 = vshrl.u32 %v423, 7
      %v425 = vsub.s32 %v422, %v424
      %v426 = vrot.slane %v410, %v425
      %v428 = vunpack.c.l.s4 1966171168
      %v429 = vunpack.c.0.s8 %v428
      %v430 = vlaneseq
      %v431 = vshrl.u32 %v430, 7
      %v432 = vsub.s32 %v429, %v431
      %v433 = vrot.slane %v411, %v432
      %v435 = vunpack.c.l.s4 1966171168
      %v436 = vunpack.c.0.s8 %v435
      %v437 = vlaneseq
      %v438 = vshrl.u32 %v437, 7
      %v439 = vsub.s32 %v436, %v438
      %v440 = vrot.slane %v412, %v439
      %v441 = vcombine.high %v419, %v419
      %v442 = vcombine.high %v426, %v426
      %v443 = vcombine.high %v433, %v433
      %v444 = vcombine.high %v440, %v440
      %v445 = vcombine.high %v393, %v393
      %v447 = vunpack.c.l.s4 1966171168
      %v448 = vunpack.c.0.s8 %v447
      %v449 = vlaneseq
      %v450 = vshrl.u32 %v449, 7
      %v451 = vsub.s32 %v448, %v450
      %v452 = vrot.slane %v393, %v451
      %v454 = vunpack.c.l.s4 1966171168
      %v455 = vunpack.c.0.s8 %v454
      %v456 = vlaneseq
      %v457 = vshrl.u32 %v456, 7
      %v458 = vsub.s32 %v455, %v457
      %v459 = vrot.slane %v445, %v458
      %v460 = vcombine.high %v452, %v452
      %v461 = vcombine.high %v459, %v459
      %v463 = vunpack.c.l.s4 1966171168
      %v464 = vunpack.c.0.s8 %v463
      %v465 = vlaneseq
      %v466 = vshrl.u32 %v465, 7
      %v467 = vsub.s32 %v464, %v466
      %v468 = vrot.slane %v452, %v467
      %v470 = vunpack.c.l.s4 1966171168
      %v471 = vunpack.c.0.s8 %v470
      %v472 = vlaneseq
      %v473 = vshrl.u32 %v472, 7
      %v474 = vsub.s32 %v471, %v473
      %v475 = vrot.slane %v459, %v474
      %v477 = vunpack.c.l.s4 1966171168
      %v478 = vunpack.c.0.s8 %v477
      %v479 = vlaneseq
      %v480 = vshrl.u32 %v479, 7
      %v481 = vsub.s32 %v478, %v480
      %v482 = vrot.slane %v460, %v481
      %v484 = vunpack.c.l.s4 1966171168
      %v485 = vunpack.c.0.s8 %v484
      %v486 = vlaneseq
      %v487 = vshrl.u32 %v486, 7
      %v488 = vsub.s32 %v485, %v487
      %v489 = vrot.slane %v461, %v488
      %v490 = vcombine.high %v468, %v468
      %v491 = vcombine.high %v475, %v475
      %v492 = vcombine.high %v482, %v482
      %v493 = vcombine.high %v489, %v489
      %v494 = vlaneseq
      %v495 = vshrl.u32 %v494, 7
      %v496 = vsub.s32 0, %v495
      %v497 = vrot.slane %v419, %v496
      %v498 = vlaneseq
      %v499 = vshrl.u32 %v498, 7
      %v500 = vsub.s32 0, %v499
      %v501 = vrot.slane %v433, %v500
      %v502 = vlaneseq
      %v503 = vshrl.u32 %v502, 7
      %v504 = vsub.s32 0, %v503
      %v505 = vrot.slane %v441, %v504
      %v506 = vlaneseq
      %v507 = vshrl.u32 %v506, 7
      %v508 = vsub.s32 0, %v507
      %v509 = vrot.slane %v443, %v508
      %v510 = vlaneseq
      %v511 = vshrl.u32 %v510, 7
      %v512 = vsub.s32 0, %v511
      %v513 = vrot.slane %v426, %v512
      %v514 = vlaneseq
      %v515 = vshrl.u32 %v514, 7
      %v516 = vsub.s32 0, %v515
      %v517 = vrot.slane %v440, %v516
      %v518 = vlaneseq
      %v519 = vshrl.u32 %v518, 7
      %v520 = vsub.s32 0, %v519
      %v521 = vrot.slane %v442, %v520
      %v522 = vlaneseq
      %v523 = vshrl.u32 %v522, 7
      %v524 = vsub.s32 0, %v523
      %v525 = vrot.slane %v444, %v524
      %v526 = vlaneseq
      %v527 = vshrl.u32 %v526, 7
      %v528 = vsub.s32 0, %v527
      %v529 = vrot.slane %v468, %v528
      %v530 = vlaneseq
      %v531 = vshrl.u32 %v530, 7
      %v532 = vsub.s32 0, %v531
      %v533 = vrot.slane %v482, %v532
      %v534 = vlaneseq
      %v535 = vshrl.u32 %v534, 7
      %v536 = vsub.s32 0, %v535
      %v537 = vrot.slane %v490, %v536
      %v538 = vlaneseq
      %v539 = vshrl.u32 %v538, 7
      %v540 = vsub.s32 0, %v539
      %v541 = vrot.slane %v492, %v540
      %v542 = vlaneseq
      %v543 = vshrl.u32 %v542, 7
      %v544 = vsub.s32 0, %v543
      %v545 = vrot.slane %v475, %v544
      %v546 = vlaneseq
      %v547 = vshrl.u32 %v546, 7
      %v548 = vsub.s32 0, %v547
      %v549 = vrot.slane %v489, %v548
      %v550 = vlaneseq
      %v551 = vshrl.u32 %v550, 7
      %v552 = vsub.s32 0, %v551
      %v553 = vrot.slane %v491, %v552
      %v554 = vlaneseq
      %v555 = vshrl.u32 %v554, 7
      %v556 = vsub.s32 0, %v555
      %v557 = vrot.slane %v493, %v556
      %v574 = vmul.f32 %v391, %v497
      %v575 = vmul.f32 %v391, %v501
      %v576 = vmul.f32 %v391, %v505
      %v577 = vmul.f32 %v391, %v509
      %v578 = vmul.f32 %v391, %v513
      %v579 = vmul.f32 %v391, %v517
      %v580 = vmul.f32 %v391, %v521
      %v581 = vmul.f32 %v391, %v525
      %v582 = vmul.f32 %v391, %v529
      %v583 = vmul.f32 %v391, %v533
      %v584 = vmul.f32 %v391, %v537
      %v585 = vmul.f32 %v391, %v541
      %v586 = vmul.f32 %v391, %v545
      %v587 = vmul.f32 %v391, %v549
      %v588 = vmul.f32 %v391, %v553
      %v589 = vmul.f32 %v391, %v557
      %v590 = vmul.f32 %v574, 1.442695
      %v591 = vpow.pop %v590
      %v592 = vmul.f32 %v575, 1.442695
      %v593 = vpow.pop %v592
      %v594 = vmul.f32 %v576, 1.442695
      %v595 = vpow.pop %v594
      %v596 = vmul.f32 %v577, 1.442695
      %v597 = vpow.pop %v596
      %v598 = vmul.f32 %v578, 1.442695
      %v599 = vpow.pop %v598
      %v600 = vmul.f32 %v579, 1.442695
      %v601 = vpow.pop %v600
      %v602 = vmul.f32 %v580, 1.442695
      %v603 = vpow.pop %v602
      %v604 = vmul.f32 %v581, 1.442695
      %v605 = vpow.pop %v604
      %v606 = vmul.f32 %v582, 1.442695
      %v607 = vpow.pop %v606
      %v608 = vmul.f32 %v583, 1.442695
      %v609 = vpow.pop %v608
      %v610 = vmul.f32 %v584, 1.442695
      %v611 = vpow.pop %v610
      %v612 = vmul.f32 %v585, 1.442695
      %v613 = vpow.pop %v612
      %v614 = vmul.f32 %v586, 1.442695
      %v615 = vpow.pop %v614
      %v616 = vmul.f32 %v587, 1.442695
      %v617 = vpow.pop %v616
      %v618 = vmul.f32 %v588, 1.442695
      %v619 = vpow.pop %v618
      %v620 = vmul.f32 %v589, 1.442695
      %v621 = vpow.pop %v620
      %622 = vst [vmem:[#allocation2] sm:$0xff] %v591
      %623 = vst [vmem:[#allocation2 + $0x8] sm:$0xff] %v593
      %624 = vst [vmem:[#allocation2 + $0x10] sm:$0xff] %v595
      %625 = vst [vmem:[#allocation2 + $0x18] sm:$0xff] %v597
      %626 = vst [vmem:[#allocation2 + $0x20] sm:$0xff] %v599
      %627 = vst [vmem:[#allocation2 + $0x28] sm:$0xff] %v601
      %628 = vst [vmem:[#allocation2 + $0x30] sm:$0xff] %v603
      %629 = vst [vmem:[#allocation2 + $0x38] sm:$0xff] %v605
      %630 = vst [vmem:[#allocation2 + $0x40] sm:$0xff] %v607
      %631 = vst [vmem:[#allocation2 + $0x48] sm:$0xff] %v609
      %632 = vst [vmem:[#allocation2 + $0x50] sm:$0xff] %v611
      %633 = vst [vmem:[#allocation2 + $0x58] sm:$0xff] %v613
      %634 = vst [vmem:[#allocation2 + $0x60] sm:$0xff] %v615
      %635 = vst [vmem:[#allocation2 + $0x68] sm:$0xff] %v617
      %636 = vst [vmem:[#allocation2 + $0x70] sm:$0xff] %v619
      %637 = vst [vmem:[#allocation2 + $0x78] sm:$0xff] %v621
      %v638 = vld [vmem:[%s358] sm:$0xf]
      %v639 = vunpack.c.l.bf16 %v638
      %s640 = smul.u32 0, 8
      %s641 = scalar_lea.vmem [#allocation2], %s640
      %v642 = vld [vmem:[%s641] sm:$0xff]
      %v643 = vmul.f32 %v642, 0.0
      %v644 = vlaneseq
      %v645 = vshrl.u32 %v644, 7
      %v646 = vsub.s32 0, %v645
      %v647 = vrot.slane %v639, %v646
      %v648 = vadd.f32 %v643, %v647
      %v649 = vrot.slane %v648, 4
      %v650 = vadd.f32 %v648, %v649
      %v651 = vrot.slane %v650, 2
      %v652 = vadd.f32 %v650, %v651
      %v653 = vrot.slane %v652, 1
      %v654 = vadd.f32 %v652, %v653
      %s655 = sadd.s32 0, 1
      %s656 = smul.u32 %s655, 8
      %s657 = scalar_lea.vmem [#allocation2], %s656
      %v658 = vld [vmem:[%s657] sm:$0xff]
      %v659 = vmul.f32 %v648, %v658
      %v660 = vlaneseq
      %v661 = vshrl.u32 %v660, 7
      %v662 = vsub.s32 1, %v661
      %v663 = vrot.slane %v639, %v662
      %v664 = vadd.f32 %v659, %v663
      %v665 = vrot.slane %v664, 4
      %v666 = vadd.f32 %v664, %v665
      %v667 = vrot.slane %v666, 2
      %v668 = vadd.f32 %v666, %v667
      %v669 = vrot.slane %v668, 1
      %v670 = vadd.f32 %v668, %v669
      %s671 = sadd.s32 0, 2
      %s672 = smul.u32 %s671, 8
      %s673 = scalar_lea.vmem [#allocation2], %s672
      %v674 = vld [vmem:[%s673] sm:$0xff]
      %v675 = vmul.f32 %v664, %v674
      %v676 = vlaneseq
      %v677 = vshrl.u32 %v676, 7
      %v678 = vsub.s32 2, %v677
      %v679 = vrot.slane %v639, %v678
      %v680 = vadd.f32 %v675, %v679
      %v681 = vrot.slane %v680, 4
      %v682 = vadd.f32 %v680, %v681
      %v683 = vrot.slane %v682, 2
      %v684 = vadd.f32 %v682, %v683
      %v685 = vrot.slane %v684, 1
      %v686 = vadd.f32 %v684, %v685
      %s687 = sadd.s32 0, 3
      %s688 = smul.u32 %s687, 8
      %s689 = scalar_lea.vmem [#allocation2], %s688
      %v690 = vld [vmem:[%s689] sm:$0xff]
      %v691 = vmul.f32 %v680, %v690
      %v692 = vlaneseq
      %v693 = vshrl.u32 %v692, 7
      %v694 = vsub.s32 3, %v693
      %v695 = vrot.slane %v639, %v694
      %v696 = vadd.f32 %v691, %v695
      %v697 = vrot.slane %v696, 4
      %v698 = vadd.f32 %v696, %v697
      %v699 = vrot.slane %v698, 2
      %v700 = vadd.f32 %v698, %v699
      %v701 = vrot.slane %v700, 1
      %v702 = vadd.f32 %v700, %v701
      %s703 = sadd.s32 0, 4
      %s704 = smul.u32 %s703, 8
      %s705 = scalar_lea.vmem [#allocation2], %s704
      %v706 = vld [vmem:[%s705] sm:$0xff]
      %v707 = vmul.f32 %v696, %v706
      %v708 = vlaneseq
      %v709 = vshrl.u32 %v708, 7
      %v710 = vsub.s32 4, %v709
      %v711 = vrot.slane %v639, %v710
      %v712 = vadd.f32 %v707, %v711
      %v713 = vrot.slane %v712, 4
      %v714 = vadd.f32 %v712, %v713
      %v715 = vrot.slane %v714, 2
      %v716 = vadd.f32 %v714, %v715
      %v717 = vrot.slane %v716, 1
      %v718 = vadd.f32 %v716, %v717
      %s719 = sadd.s32 0, 5
      %s720 = smul.u32 %s719, 8
      %s721 = scalar_lea.vmem [#allocation2], %s720
      %v722 = vld [vmem:[%s721] sm:$0xff]
      %v723 = vmul.f32 %v712, %v722
      %v724 = vlaneseq
      %v725 = vshrl.u32 %v724, 7
      %v726 = vsub.s32 5, %v725
      %v727 = vrot.slane %v639, %v726
      %v728 = vadd.f32 %v723, %v727
      %v729 = vrot.slane %v728, 4
      %v730 = vadd.f32 %v728, %v729
      %v731 = vrot.slane %v730, 2
      %v732 = vadd.f32 %v730, %v731
      %v733 = vrot.slane %v732, 1
      %v734 = vadd.f32 %v732, %v733
      %s735 = sadd.s32 0, 6
      %s736 = smul.u32 %s735, 8
      %s737 = scalar_lea.vmem [#allocation2], %s736
      %v738 = vld [vmem:[%s737] sm:$0xff]
      %v739 = vmul.f32 %v728, %v738
      %v740 = vlaneseq
      %v741 = vshrl.u32 %v740, 7
      %v742 = vsub.s32 6, %v741
      %v743 = vrot.slane %v639, %v742
      %v744 = vadd.f32 %v739, %v743
      %v745 = vrot.slane %v744, 4
      %v746 = vadd.f32 %v744, %v745
      %v747 = vrot.slane %v746, 2
      %v748 = vadd.f32 %v746, %v747
      %v749 = vrot.slane %v748, 1
      %v750 = vadd.f32 %v748, %v749
      %s751 = sadd.s32 0, 7
      %s752 = smul.u32 %s751, 8
      %s753 = scalar_lea.vmem [#allocation2], %s752
      %v754 = vld [vmem:[%s753] sm:$0xff]
      %v755 = vmul.f32 %v744, %v754
      %v756 = vlaneseq
      %v757 = vshrl.u32 %v756, 7
      %v758 = vsub.s32 7, %v757
      %v759 = vrot.slane %v639, %v758
      %v760 = vadd.f32 %v755, %v759
      %v761 = vrot.slane %v760, 4
      %v762 = vadd.f32 %v760, %v761
      %v763 = vrot.slane %v762, 2
      %v764 = vadd.f32 %v762, %v763
      %v765 = vrot.slane %v764, 1
      %v766 = vadd.f32 %v764, %v765
      %vm767 = vcmask 1040384
      %v768 = vsel %vm767, %v654, %v670
      %vm769 = vcmask 1041408
      %v770 = vsel %vm769, %v768, %v686
      %vm771 = vcmask 1042432
      %v772 = vsel %vm771, %v770, %v702
      %vm773 = vcmask 1043456
      %v774 = vsel %vm773, %v772, %v718
      %vm775 = vcmask 1044480
      %v776 = vsel %vm775, %v774, %v734
      %vm777 = vcmask 1045504
      %v778 = vsel %vm777, %v776, %v750
      %vm779 = vcmask 1046528
      %v780 = vsel %vm779, %v778, %v766
      %781 = vst [vmem:[#allocation3] sm:$0xff] %v780
      %s782 = scalar_lea.vmem %s358, 4
      %v783 = vld [vmem:[%s782] sm:$0xf]
      %v784 = vunpack.c.l.bf16 %v783
      %s785 = smul.u32 8, 8
      %s786 = scalar_lea.vmem [#allocation2], %s785
      %v787 = vld [vmem:[%s786] sm:$0xff]
      %v788 = vmul.f32 %v760, %v787
      %v789 = vlaneseq
      %v790 = vshrl.u32 %v789, 7
      %v791 = vsub.s32 0, %v790
      %v792 = vrot.slane %v784, %v791
      %v793 = vadd.f32 %v788, %v792
      %v794 = vrot.slane %v793, 4
      %v795 = vadd.f32 %v793, %v794
      %v796 = vrot.slane %v795, 2
      %v797 = vadd.f32 %v795, %v796
      %v798 = vrot.slane %v797, 1
      %v799 = vadd.f32 %v797, %v798
      %s800 = sadd.s32 8, 1
      %s801 = smul.u32 %s800, 8
      %s802 = scalar_lea.vmem [#allocation2], %s801
      %v803 = vld [vmem:[%s802] sm:$0xff]
      %v804 = vmul.f32 %v793, %v803
      %v805 = vlaneseq
      %v806 = vshrl.u32 %v805, 7
      %v807 = vsub.s32 1, %v806
      %v808 = vrot.slane %v784, %v807
      %v809 = vadd.f32 %v804, %v808
      %v810 = vrot.slane %v809, 4
      %v811 = vadd.f32 %v809, %v810
      %v812 = vrot.slane %v811, 2
      %v813 = vadd.f32 %v811, %v812
      %v814 = vrot.slane %v813, 1
      %v815 = vadd.f32 %v813, %v814
      %s816 = sadd.s32 8, 2
      %s817 = smul.u32 %s816, 8
      %s818 = scalar_lea.vmem [#allocation2], %s817
      %v819 = vld [vmem:[%s818] sm:$0xff]
      %v820 = vmul.f32 %v809, %v819
      %v821 = vlaneseq
      %v822 = vshrl.u32 %v821, 7
      %v823 = vsub.s32 2, %v822
      %v824 = vrot.slane %v784, %v823
      %v825 = vadd.f32 %v820, %v824
      %v826 = vrot.slane %v825, 4
      %v827 = vadd.f32 %v825, %v826
      %v828 = vrot.slane %v827, 2
      %v829 = vadd.f32 %v827, %v828
      %v830 = vrot.slane %v829, 1
      %v831 = vadd.f32 %v829, %v830
      %s832 = sadd.s32 8, 3
      %s833 = smul.u32 %s832, 8
      %s834 = scalar_lea.vmem [#allocation2], %s833
      %v835 = vld [vmem:[%s834] sm:$0xff]
      %v836 = vmul.f32 %v825, %v835
      %v837 = vlaneseq
      %v838 = vshrl.u32 %v837, 7
      %v839 = vsub.s32 3, %v838
      %v840 = vrot.slane %v784, %v839
      %v841 = vadd.f32 %v836, %v840
      %v842 = vrot.slane %v841, 4
      %v843 = vadd.f32 %v841, %v842
      %v844 = vrot.slane %v843, 2
      %v845 = vadd.f32 %v843, %v844
      %v846 = vrot.slane %v845, 1
      %v847 = vadd.f32 %v845, %v846
      %s848 = sadd.s32 8, 4
      %s849 = smul.u32 %s848, 8
      %s850 = scalar_lea.vmem [#allocation2], %s849
      %v851 = vld [vmem:[%s850] sm:$0xff]
      %v852 = vmul.f32 %v841, %v851
      %v853 = vlaneseq
      %v854 = vshrl.u32 %v853, 7
      %v855 = vsub.s32 4, %v854
      %v856 = vrot.slane %v784, %v855
      %v857 = vadd.f32 %v852, %v856
      %v858 = vrot.slane %v857, 4
      %v859 = vadd.f32 %v857, %v858
      %v860 = vrot.slane %v859, 2
      %v861 = vadd.f32 %v859, %v860
      %v862 = vrot.slane %v861, 1
      %v863 = vadd.f32 %v861, %v862
      %s864 = sadd.s32 8, 5
      %s865 = smul.u32 %s864, 8
      %s866 = scalar_lea.vmem [#allocation2], %s865
      %v867 = vld [vmem:[%s866] sm:$0xff]
      %v868 = vmul.f32 %v857, %v867
      %v869 = vlaneseq
      %v870 = vshrl.u32 %v869, 7
      %v871 = vsub.s32 5, %v870
      %v872 = vrot.slane %v784, %v871
      %v873 = vadd.f32 %v868, %v872
      %v874 = vrot.slane %v873, 4
      %v875 = vadd.f32 %v873, %v874
      %v876 = vrot.slane %v875, 2
      %v877 = vadd.f32 %v875, %v876
      %v878 = vrot.slane %v877, 1
      %v879 = vadd.f32 %v877, %v878
      %s880 = sadd.s32 8, 6
      %s881 = smul.u32 %s880, 8
      %s882 = scalar_lea.vmem [#allocation2], %s881
      %v883 = vld [vmem:[%s882] sm:$0xff]
      %v884 = vmul.f32 %v873, %v883
      %v885 = vlaneseq
      %v886 = vshrl.u32 %v885, 7
      %v887 = vsub.s32 6, %v886
      %v888 = vrot.slane %v784, %v887
      %v889 = vadd.f32 %v884, %v888
      %v890 = vrot.slane %v889, 4
      %v891 = vadd.f32 %v889, %v890
      %v892 = vrot.slane %v891, 2
      %v893 = vadd.f32 %v891, %v892
      %v894 = vrot.slane %v893, 1
      %v895 = vadd.f32 %v893, %v894
      %s896 = sadd.s32 8, 7
      %s897 = smul.u32 %s896, 8
      %s898 = scalar_lea.vmem [#allocation2], %s897
      %v899 = vld [vmem:[%s898] sm:$0xff]
      %v900 = vmul.f32 %v889, %v899
      %v901 = vlaneseq
      %v902 = vshrl.u32 %v901, 7
      %v903 = vsub.s32 7, %v902
      %v904 = vrot.slane %v784, %v903
      %v905 = vadd.f32 %v900, %v904
      %v906 = vrot.slane %v905, 4
      %v907 = vadd.f32 %v905, %v906
      %v908 = vrot.slane %v907, 2
      %v909 = vadd.f32 %v907, %v908
      %v910 = vrot.slane %v909, 1
      %v911 = vadd.f32 %v909, %v910
      %v912 = vsel %vm767, %v799, %v815
      %v913 = vsel %vm769, %v912, %v831
      %v914 = vsel %vm771, %v913, %v847
      %v915 = vsel %vm773, %v914, %v863
      %v916 = vsel %vm775, %v915, %v879
      %v917 = vsel %vm777, %v916, %v895
      %v918 = vsel %vm779, %v917, %v911
      %s919 = scalar_lea.vmem [#allocation3], 8
      %920 = vst [vmem:[%s919] sm:$0xff] %v918
      %v921 = vld [vmem:[%s5] sm:$0xf]
      %v922 = vld [vmem:[%s5 + $0x4] sm:$0xf]
      %v923 = vld [vmem:[%s5 + $0x8] sm:$0xf]
      %v924 = vld [vmem:[%s5 + $0xc] sm:$0xf]
      %v925 = vld [vmem:[%s5 + $0x10] sm:$0xf]
      %v926 = vld [vmem:[%s5 + $0x14] sm:$0xf]
      %v927 = vld [vmem:[%s5 + $0x18] sm:$0xf]
      %v928 = vld [vmem:[%s5 + $0x1c] sm:$0xf]
      %v929 = vld [vmem:[%s5 + $0x20] sm:$0xf]
      %v930 = vld [vmem:[%s5 + $0x24] sm:$0xf]
      %v931 = vld [vmem:[%s5 + $0x28] sm:$0xf]
      %v932 = vld [vmem:[%s5 + $0x2c] sm:$0xf]
      %v933 = vld [vmem:[%s5 + $0x30] sm:$0xf]
      %v934 = vld [vmem:[%s5 + $0x34] sm:$0xf]
      %v935 = vld [vmem:[%s5 + $0x38] sm:$0xf]
      %v936 = vld [vmem:[%s5 + $0x3c] sm:$0xf]
      %v937 = vld [vmem:[%s6] sm:$0x1]
      %v938 = vld [vmem:[%s4] sm:$0x1]
      %v939 = vld [vmem:[%s358] sm:$0xf]
      %v940 = vld [vmem:[%s358 + $0x4] sm:$0xf]
      %v941 = vunpack.c.l.bf16 %v939
      %v942 = vunpack.c.l.bf16 %v940
      %v943 = vld [vmem:[%s378] sm:$0xf]
      %v944 = vld [vmem:[%s378 + $0x4] sm:$0xf]
      %v945 = vunpack.c.l.bf16 %v943
      %v946 = vunpack.c.l.bf16 %v944
      %v947 = vld [vmem:[#allocation3] sm:$0xff]
      %v948 = vld [vmem:[#allocation3 + $0x8] sm:$0xff]
      %v949 = vmul.f32 %v947, %v945
      %v950 = vmul.f32 %v948, %v946
      %v952 = vlaneseq
      %v953 = vshrl.u32 %v952, 7
      %v954 = vsub.s32 0, %v953
      %v955 = vrot.slane %v938, %v954
      %v957 = vmul.f32 %v941, %v955
      %v958 = vmul.f32 %v942, %v955
      %v959 = vadd.f32 %v949, %v957
      %v960 = vadd.f32 %v950, %v958
      %v961 = vpack.c.bf16 %v960, %v959
      %v963 = vlaneseq
      %v964 = vshrl.u32 %v963, 7
      %v965 = vsub.s32 0, %v964
      %v966 = vrot.slane %v937, %v965
      %v984 = vunpack.c.l.b16 %v921
      %v985 = vunpack.c.l.b16 %v922
      %v986 = vunpack.c.l.b16 %v923
      %v987 = vunpack.c.l.b16 %v924
      %v988 = vunpack.c.l.b16 %v925
      %v989 = vunpack.c.l.b16 %v926
      %v990 = vunpack.c.l.b16 %v927
      %v991 = vunpack.c.l.b16 %v928
      %v992 = vunpack.c.l.b16 %v929
      %v993 = vunpack.c.l.b16 %v930
      %v994 = vunpack.c.l.b16 %v931
      %v995 = vunpack.c.l.b16 %v932
      %v996 = vunpack.c.l.b16 %v933
      %v997 = vunpack.c.l.b16 %v934
      %v998 = vunpack.c.l.b16 %v935
      %v999 = vunpack.c.l.b16 %v936
      %v1000 = vpack.c.b16 %v985, %v984
      %v1001 = vpack.c.b16 %v987, %v986
      %v1002 = vpack.c.b16 %v989, %v988
      %v1003 = vpack.c.b16 %v991, %v990
      %v1004 = vpack.c.b16 %v993, %v992
      %v1005 = vpack.c.b16 %v995, %v994
      %v1006 = vpack.c.b16 %v997, %v996
      %v1007 = vpack.c.b16 %v999, %v998
      %1016 = vmatprep.subr.bf16.mxu0 0
      %1017 = vmatpush1.bf16.msra.mxu0 %v1000
      %1018 = vmatprep.subr.bf16.mxu0 0
      %1019 = vmatpush1.bf16.msra.mxu0 %v1001
      %1020 = vmatprep.subr.bf16.mxu0 0
      %1021 = vmatpush1.bf16.msra.mxu0 %v1002
      %1022 = vmatprep.subr.bf16.mxu0 0
      %1023 = vmatpush1.bf16.msra.mxu0 %v1003
      %1024 = vmatprep.subr.bf16.mxu0 0
      %1025 = vmatpush1.bf16.msra.mxu0 %v1004
      %1026 = vmatprep.subr.bf16.mxu0 0
      %1027 = vmatpush1.bf16.msra.mxu0 %v1005
      %1028 = vmatprep.subr.bf16.mxu0 0
      %1029 = vmatpush1.bf16.msra.mxu0 %v1006
      %1030 = vmatprep.subr.bf16.mxu0 0
      %1031 = vmatpush1.bf16.msra.mxu0 %v1007
      %1032 = vmatprep.subr.bf16.mxu0 0
      %1033 = vmatpush1.bf16.msra.mxu0 0
      %1034 = vmatprep.subr.bf16.mxu0 0
      %1035 = vmatpush1.bf16.msra.mxu0 0
      %1036 = vmatprep.subr.bf16.mxu0 0
      %1037 = vmatpush1.bf16.msra.mxu0 0
      %1038 = vmatprep.subr.bf16.mxu0 0
      %1039 = vmatpush1.bf16.msra.mxu0 0
      %1040 = vmatprep.subr.bf16.mxu0 0
      %1041 = vmatpush1.bf16.msra.mxu0 0
      %1042 = vmatprep.subr.bf16.mxu0 0
      %1043 = vmatpush1.bf16.msra.mxu0 0
      %1044 = vmatprep.subr.bf16.mxu0 0
      %1045 = vmatpush1.bf16.msra.mxu0 0
      %1046 = vmatprep.subr.bf16.mxu0 0
      %1047 = vmatpush1.bf16.msra.mxu0 0
      %1048 = vmatprep.mubr.bf16.mxu0 0
      %1049 = vmatmul.mubr.bf16.gmra.mrb[0].mxu0 %v961
      %v1050 = vpop.f32.mrb[0].mxu0
      %v1051 = vadd.f32 %v966, %v1050
      %v1052 = vpop.f32.mrb[0].mxu0
      %v1053 = vpop.f32.mrb[0].mxu0
      %v1054 = vadd.f32 %v966, %v1053
      %v1055 = vpop.f32.mrb[0].mxu0
      %1056 = vdwg.mxu0
      %vm1057 = vcmask 523264
      %1058 = vst.msk [vmem:[%s388] sm:$0xff] %vm1057, %v1051
      %1059 = vst.msk [vmem:[%s388 + $0x8] sm:$0xff] %vm1057, %v1054
      %s1060 = smul.u32 2, %s23
      %p1061 = scmp.lt.s32.totalorder %s22, 1
      %s1062 = scalar_select %p1061, %s22, 1
      %p1063 = scmp.lt.s32.totalorder %s1060, 1
      %s1064 = scalar_select %p1063, %s1060, 1
      %s1065 = smul.addr %s1062, 2
      %s1066 = sadd.s32 %s1064, %s1065
      %s1067 = smul.addr %s1066, 8
      %s1068 = scalar_lea.vmem %s7, %s1067
      // Predicated region
      $region49: #{mamba3d_block_forward.4} parent=47 // pred_check
        %p1069 = pneg %p218
      $region50: #{mamba3d_block_forward.4} parent=47 // pred_check_branch
        %1071 = sbr.rel (%p1069) target = $region52
      $region51: #{mamba3d_block_forward.4} parent=47 // pred_region
        %s1072 = smul.u32 2, %s23
      $region52: #{mamba3d_block_forward.4} parent=47 // pred_fallthru
        _
    $region48: #{mamba3d_block_forward.4} parent=5 // pred_fallthru
      _
    %p1073 = scmp.le.s32.totalorder 2, %s13
    // Predicated region
    $region53: #{mamba3d_block_forward.4} parent=5 // pred_check
      %p1074 = pneg %p1073
    $region54: #{mamba3d_block_forward.4} parent=5 // pred_check_branch
      %1076 = sbr.rel (%p1074) target = $region56
    $region55: #{mamba3d_block_forward.4} parent=5 // pred_region
      %s1077 = ssub.s32 %s13, 2
      // Predicated region
      $region57: #{mamba3d_block_forward.4} parent=55 // pred_check
        %p1078 = pneg %p224
      $region58: #{mamba3d_block_forward.4} parent=55 // pred_check_branch
        %1080 = sbr.rel (%p1078) target = $region60
      $region59: #{mamba3d_block_forward.4} parent=55 // pred_region
        %s1081 = smul.u32 2, %s25
        %p1082 = scmp.lt.s32.totalorder %s24, 1
        %s1083 = scalar_select %p1082, %s24, 1
        %p1084 = scmp.lt.s32.totalorder %s1081, 1
        %s1085 = scalar_select %p1084, %s1081, 1
        %s1086 = smul.addr %s1083, 2
        %s1087 = sadd.s32 %s1085, %s1086
        %s1088 = smul.addr %s1087, 8
        %s1089 = scalar_lea.vmem %s7, %s1088
      $region60: #{mamba3d_block_forward.4} parent=55 // pred_fallthru
        _
    $region56: #{mamba3d_block_forward.4} parent=5 // pred_fallthru
      _
  $region6: #{mamba3d_block_forward.4} parent=0 // loop_footer
    %s17 = sadd.s32 1, %s13
  $region7: #{mamba3d_block_forward.4} parent=0 // loop_footer_branch
    %12 = sbr.rel target = $region3
  $region8: #{mamba3d_block_forward.4} parent=0 // loop_exit
    _

</llo_original>
